<compile_context>
chip_gen: v7x
topology: tpu7x:2x2x1
jax: 0.10.0
libtpu: 0.0.40
codegen_flags: <defaults>
</compile_context>

<pallas_src>
import math

import jax
import jax.numpy as jnp
import numpy as np
from jax import lax
from jax.experimental import pallas as pl
from jax.experimental.pallas import tpu as pltpu

D_MODEL = 32
N_HEAD = 4
D_FF = 64
D_K = D_MODEL // N_HEAD
D_V = D_MODEL // N_HEAD


def _layer_norm(v, g, b, eps=1e-5):
    mu = jnp.mean(v, axis=-1, keepdims=True)
    var = jnp.mean((v - mu) ** 2, axis=-1, keepdims=True)
    return (v - mu) * lax.rsqrt(var + eps) * g + b


def encoder_layer_kernel(
    mask_ref, x_ref,
    wqkv_ref, bqkv_ref, w_od_ref, w_conv_ref, w1_ref, b1_ref, w2_ref, bias_ref,
    out_ref, attn_ref=None,
):
    f32 = jnp.float32
    cdt = wqkv_ref.dtype                      # MXU operand dtype (bf16 default)

    x = x_ref[...]                            # (N, D): N = block_b * S tokens
    N, D = x.shape
    Bt, S, _ = mask_ref.shape
    H = N_HEAD
    Dk = D // H

    biases = bias_ref[...]                    # (8, D) packed f32 bias / LN rows
    b_o, ln1g, ln1b = biases[0:1], biases[1:2], biases[2:3]
    b_2, b_conv, b_f = biases[3:4], biases[4:5], biases[5:6]
    ln2g, ln2b = biases[6:7], biases[7:8]

    # --- fused Q/K/V projection: one (N,D)x(D,3D) MXU push over all rows -----
    qkv = jnp.dot(x.astype(cdt), wqkv_ref[...],
                  preferred_element_type=f32) + bqkv_ref[...]
    q_proj = qkv[:, 0 * D:1 * D]              # f32; also the attention residual
    k_proj = qkv[:, 1 * D:2 * D]
    v_proj = qkv[:, 2 * D:3 * D]

    # --- MultiHeadAttention: heads folded into ONE batched einsum pair -------
    def to_heads(t):                          # (N, D) -> (H*Bt, S, Dk), head-major
        t3 = t.astype(cdt).reshape(Bt, S, D)
        return jnp.concatenate(
            [t3[:, :, h * Dk:(h + 1) * Dk] for h in range(H)], axis=0)

    qh, kh, vh = to_heads(q_proj), to_heads(k_proj), to_heads(v_proj)
    s = jnp.einsum('bqd,bkd->bqk', qh, kh,
                   preferred_element_type=f32) * (1.0 / math.sqrt(Dk))
    s = s.reshape(H, Bt, S, S)
    s = jnp.where((mask_ref[...] > 0)[None, ...], -1e9, s)
    # f32 softmax (VPU/EUP); denominator reciprocal goes to the EUP slot.
    s = s - jnp.max(s, axis=-1, keepdims=True)
    e = jnp.exp(s)
    a = e * pl.reciprocal(jnp.sum(e, axis=-1, keepdims=True), approx=True)
    a = a.reshape(H * Bt, S, S)
    ctx = jnp.einsum('bqk,bkd->bqd', a.astype(cdt), vh,
                     preferred_element_type=f32)          # (H*Bt, S, Dk)
    context = jnp.concatenate([ctx[h * Bt:(h + 1) * Bt] for h in range(H)],
                              axis=-1).reshape(N, D)

    if attn_ref is not None:
        # (Bt, S, H*S): heads concatenated along lanes, one store per step;
        # the wrapper reshapes/transposes back to (B, H, S, S).
        attn_ref[...] = jnp.concatenate(
            [a[h * Bt:(h + 1) * Bt] for h in range(H)], axis=-1)

    mha = jnp.dot(context.astype(cdt), w_od_ref[0],
                  preferred_element_type=f32) + b_o
    # Residual is the *projected* Q, exactly as in the PyTorch module.
    attn_out = _layer_norm(mha + q_proj, ln1g, ln1b)

    # --- FeedForwardNetwork ---------------------------------------------------
    h1 = jnp.maximum(
        jnp.dot(attn_out.astype(cdt), w1_ref[...], preferred_element_type=f32)
        + b1_ref[...], 0.0)
    ffn = jnp.dot(h1.astype(cdt), w2_ref[...], preferred_element_type=f32) + b_2

    # --- FeatureOptimizationBlock: Conv1d(k=3, pad=1) as ONE fused matmul ----
    ffn3 = ffn.reshape(Bt, S, D)
    zrow = jnp.zeros((Bt, 1, D), f32)
    prev3 = jnp.concatenate([zrow, ffn3[:, :S - 1, :]], axis=1)  # x[i-1], 0-pad
    nxt3 = jnp.concatenate([ffn3[:, 1:, :], zrow], axis=1)       # x[i+1], 0-pad
    cat = jnp.concatenate([prev3, ffn3, nxt3], axis=-1).reshape(N, 3 * D)
    conv = jnp.maximum(
        jnp.dot(cat.astype(cdt), w_conv_ref[...], preferred_element_type=f32)
        + b_conv, 0.0)
    # TODO(synk): nn.Dropout(0.3) is treated as identity (eval-mode semantics).
    feat = jnp.dot(conv.astype(cdt), w_od_ref[1], preferred_element_type=f32) + b_f

    # --- Final residual + LayerNorm -------------------------------------------
    out_ref[...] = _layer_norm(feat + attn_out, ln2g, ln2b)


def _pack_params(params, mxu_dtype):
    (wq, bq, wk, bk, wv, bv, wo, bo, ln1g, ln1b,
     w1, b1, w2, b2, convw, convb, wf, bf_, ln2g, ln2b) = params
    wqkv = jnp.concatenate([wq, wk, wv], axis=1).astype(mxu_dtype)      # (D, 3D)
    bqkv = jnp.concatenate([bq, bk, bv], axis=1)                        # (1, 3D)
    w_od = jnp.stack([wo, wf]).astype(mxu_dtype)                        # (2, D, D)
    # Conv taps packed so cat = [prev | cur | next] @ w_conv.
    w_conv = jnp.concatenate([convw[0], convw[1], convw[2]],
                             axis=0).astype(mxu_dtype)                  # (3D, D)
    bias = jnp.concatenate([bo, ln1g, ln1b, b2, convb, bf_, ln2g, ln2b],
                           axis=0)                                      # (8, D)
    return (wqkv, bqkv, w_od, w_conv,
            w1.astype(mxu_dtype), b1, w2.astype(mxu_dtype), bias)


def encoder_layer(x, mask, params, *, block_b=None, return_attn=True,
                  mxu_dtype=jnp.bfloat16):
    B, S, D = x.shape
    assert D == D_MODEL

    if block_b is None:
        # Row-count-driven tiling (not "half the batch"): keep <=1024 token
        # rows per grid step; at small shapes collapse to a single step.
        if B * S <= 1024:
            block_b = B
        else:
            block_b = max(d for d in range(1, B + 1)
                          if B % d == 0 and d * S <= 1024)
    assert B % block_b == 0, "block_b must divide the batch size"
    nb = B // block_b
    N = block_b * S

    packed = _pack_params(params, mxu_dtype)
    x_flat = x.reshape(B * S, D).astype(mxu_dtype)   # halves the activation DMA

    def full_spec(shape):
        n = len(shape)
        return pl.BlockSpec(shape, lambda i, _n=n: (0,) * _n)

    in_specs = [
        pl.BlockSpec((block_b, S, S), lambda i: (i, 0, 0)),   # attention mask tile
        pl.BlockSpec((N, D), lambda i: (i, 0)),               # flattened token rows
    ] + [full_spec(p.shape) for p in packed]

    out_specs = [pl.BlockSpec((N, D), lambda i: (i, 0))]
    out_shape = [jax.ShapeDtypeStruct((B * S, D), jnp.float32)]
    if return_attn:
        out_specs.append(
            pl.BlockSpec((block_b, S, N_HEAD * S), lambda i: (i, 0, 0)))
        out_shape.append(
            jax.ShapeDtypeStruct((B, S, N_HEAD * S), jnp.float32))

    outs = pl.pallas_call(
        encoder_layer_kernel,
        out_shape=out_shape,
        grid_spec=pltpu.PrefetchScalarGridSpec(
            num_scalar_prefetch=0,
            grid=(nb,),
            in_specs=in_specs,
            out_specs=out_specs,
        ),
        compiler_params=pltpu.CompilerParams(
            dimension_semantics=("parallel",)),
    )(mask, x_flat, *packed)

    if return_attn:
        out_flat, attn_flat = outs
        attn = attn_flat.reshape(B, S, N_HEAD, S).transpose(0, 2, 1, 3)
        return out_flat.reshape(B, S, D), attn
    (out_flat,) = outs
    return out_flat.reshape(B, S, D), None


def init_params(key):
    ks = jax.random.split(key, 8)

    def lin(k, fan_in, fan_out):
        bound = 1.0 / math.sqrt(fan_in)
        kw, kb = jax.random.split(k)
        w = jax.random.uniform(kw, (fan_out, fan_in), jnp.float32, -bound, bound)
        b = jax.random.uniform(kb, (fan_out,), jnp.float32, -bound, bound)
        return w.T, b.reshape(1, fan_out)  # transposed so y = x @ w_t + b

    wq, bq = lin(ks[0], D_MODEL, D_MODEL)
    wk, bk = lin(ks[1], D_MODEL, D_MODEL)
    wv, bv = lin(ks[2], D_MODEL, D_MODEL)
    wo, bo = lin(ks[3], D_MODEL, D_MODEL)
    ln1g = jnp.ones((1, D_MODEL), jnp.float32)
    ln1b = jnp.zeros((1, D_MODEL), jnp.float32)
    w1, b1 = lin(ks[4], D_MODEL, D_FF)
    w2, b2 = lin(ks[5], D_FF, D_MODEL)
    kc, kcb = jax.random.split(ks[6])
    cbound = 1.0 / math.sqrt(D_MODEL * 3)
    conv_w = jax.random.uniform(kc, (D_MODEL, D_MODEL, 3), jnp.float32, -cbound, cbound)
    convb = jax.random.uniform(kcb, (D_MODEL,), jnp.float32, -cbound, cbound).reshape(1, D_MODEL)
    convw = jnp.stack([conv_w[:, :, t].T for t in range(3)])  # (3, D_in, D_out)
    wf, bf_ = lin(ks[7], D_MODEL, D_MODEL)
    ln2g = jnp.ones((1, D_MODEL), jnp.float32)
    ln2b = jnp.zeros((1, D_MODEL), jnp.float32)
    return (wq, bq, wk, bk, wv, bv, wo, bo, ln1g, ln1b,
            w1, b1, w2, b2, convw, convb, wf, bf_, ln2g, ln2b)


def reference(x, mask, params, mxu_dtype=jnp.float32):
    """Pure-JAX reference; mxu_dtype mirrors the kernel's matmul operand cast."""
    (wq, bq, wk, bk, wv, bv, wo, bo, ln1g, ln1b,
     w1, b1, w2, b2, convw, convb, wf, bf_, ln2g, ln2b) = params
    B, S, D = x.shape
    f32 = jnp.float32

    def mm(a, b):
        return jnp.dot(a.astype(mxu_dtype), b.astype(mxu_dtype),
                       preferred_element_type=f32)

    def bmm(spec, a, b):
        return jnp.einsum(spec, a.astype(mxu_dtype), b.astype(mxu_dtype),
                          preferred_element_type=f32)

    qp = mm(x, wq) + bq
    kp = mm(x, wk) + bk
    vp = mm(x, wv) + bv

    def split(t):
        return t.reshape(B, S, N_HEAD, D_K).transpose(0, 2, 1, 3)

    Q, K, V = split(qp), split(kp), split(vp)
    scores = bmm('bhqd,bhkd->bhqk', Q, K) / math.sqrt(D_K)
    scores = jnp.where(mask[:, None, :, :] > 0, -1e9, scores)
    attn = jax.nn.softmax(scores, axis=-1)
    ctx = bmm('bhqk,bhkd->bhqd', attn, V).transpose(0, 2, 1, 3).reshape(B, S, D)
    mha = mm(ctx, wo) + bo
    attn_out = _layer_norm(mha + qp, ln1g, ln1b)
    h1 = jnp.maximum(mm(attn_out, w1) + b1, 0.0)
    ffn = mm(h1, w2) + b2
    padded = jnp.pad(ffn, ((0, 0), (1, 1), (0, 0)))
    conv = (mm(padded[:, 0:S], convw[0]) + mm(padded[:, 1:S + 1], convw[1])
            + mm(padded[:, 2:S + 2], convw[2]) + convb)
    conv = jnp.maximum(conv, 0.0)
    feat = mm(conv, wf) + bf_
    out = _layer_norm(feat + attn_out, ln2g, ln2b)
    return out, attn


if __name__ == "__main__":
    B, S = 4, 8
    key = jax.random.PRNGKey(0)
    kx, kp = jax.random.split(key)
    x = jax.random.normal(kx, (B, S, D_MODEL), jnp.float32)

    # Deterministic boolean attention mask (1.0 == masked key position).
    key_valid = jnp.array([S, S - 2, S - 1, S])
    mask = (jnp.arange(S)[None, None, :] >= key_valid[:, None, None]).astype(jnp.float32)
    mask = jnp.broadcast_to(mask, (B, S, S))

    params = init_params(kp)

    # Default (bf16 MXU operands) run.
    out, attn = encoder_layer(x, mask, params)
    jax.block_until_ready((out, attn))

    # Compare against a reference with identically-rounded matmul operands so
    # the structural math is checked tightly (bf16-vs-f32 drift is an intended
    # precision trade of the kernel, not a structural error).
    ref_out, ref_attn = reference(x, mask, params, mxu_dtype=jnp.bfloat16)
    np.testing.assert_allclose(np.asarray(out), np.asarray(ref_out),
                               rtol=1e-2, atol=1e-2)
    np.testing.assert_allclose(np.asarray(attn), np.asarray(ref_attn),
                               rtol=1e-2, atol=1e-2)

    # Optional-attention path (drops the quadratic HBM writeback stream).
    out_only, attn_none = encoder_layer(x, mask, params, return_attn=False)
    jax.block_until_ready(out_only)
    assert attn_none is None
    np.testing.assert_allclose(np.asarray(out_only), np.asarray(out),
                               rtol=1e-5, atol=1e-5)

    print("KERNEL_OK")
</pallas_src>

<mosaic_0001>
module attributes {stable_mosaic.version = 11 : i64} {
  func.func @encoder_layer_kernel(%arg0: i32, %arg1: memref<4x8x8xf32, #tpu.memory_space<vmem>>, %arg2: memref<32x32xbf16, #tpu.memory_space<vmem>>, %arg3: memref<32x96xbf16, #tpu.memory_space<vmem>>, %arg4: memref<1x96xf32, #tpu.memory_space<vmem>>, %arg5: memref<2x32x32xbf16, #tpu.memory_space<vmem>>, %arg6: memref<96x32xbf16, #tpu.memory_space<vmem>>, %arg7: memref<32x64xbf16, #tpu.memory_space<vmem>>, %arg8: memref<1x64xf32, #tpu.memory_space<vmem>>, %arg9: memref<64x32xbf16, #tpu.memory_space<vmem>>, %arg10: memref<8x32xf32, #tpu.memory_space<vmem>>, %arg11: memref<32x32xf32, #tpu.memory_space<vmem>>, %arg12: memref<4x8x32xf32, #tpu.memory_space<vmem>>) attributes {dimension_semantics = [#tpu.dimension_semantics<parallel>], iteration_bounds = array<i64: 1>, scalar_prefetch = 0 : i64, scratch_operands = 0 : i64, tpu.core_type = #tpu.core_type<tc>, window_params = [{transform_indices = @transform_0, window_bounds = array<i64: 4, 8, 8>}, {transform_indices = @transform_1, window_bounds = array<i64: 32, 32>}, {pipeline_mode = #tpu.pipeline_mode<synchronous>, transform_indices = @transform_2, window_bounds = array<i64: 32, 96>}, {pipeline_mode = #tpu.pipeline_mode<synchronous>, transform_indices = @transform_3, window_bounds = array<i64: 1, 96>}, {pipeline_mode = #tpu.pipeline_mode<synchronous>, transform_indices = @transform_4, window_bounds = array<i64: 2, 32, 32>}, {pipeline_mode = #tpu.pipeline_mode<synchronous>, transform_indices = @transform_5, window_bounds = array<i64: 96, 32>}, {pipeline_mode = #tpu.pipeline_mode<synchronous>, transform_indices = @transform_6, window_bounds = array<i64: 32, 64>}, {pipeline_mode = #tpu.pipeline_mode<synchronous>, transform_indices = @transform_7, window_bounds = array<i64: 1, 64>}, {pipeline_mode = #tpu.pipeline_mode<synchronous>, transform_indices = @transform_8, window_bounds = array<i64: 64, 32>}, {pipeline_mode = #tpu.pipeline_mode<synchronous>, transform_indices = @transform_9, window_bounds = array<i64: 8, 32>}, {transform_indices = @transform_10, window_bounds = array<i64: 32, 32>}, {transform_indices = @transform_11, window_bounds = array<i64: 4, 8, 32>}]} {
    %c0 = arith.constant 0 : index
    %c0_0 = arith.constant 0 : index
    %0 = vector.load %arg2[%c0, %c0_0] : memref<32x32xbf16, #tpu.memory_space<vmem>>, vector<32x32xbf16>
    %c0_1 = arith.constant 0 : index
    %c0_2 = arith.constant 0 : index
    %1 = vector.load %arg10[%c0_1, %c0_2] : memref<8x32xf32, #tpu.memory_space<vmem>>, vector<8x32xf32>
    %2 = vector.extract_strided_slice %1 {offsets = [0, 0], sizes = [1, 32], strides = [1, 1]} : vector<8x32xf32> to vector<1x32xf32>
    %3 = vector.extract_strided_slice %1 {offsets = [1, 0], sizes = [1, 32], strides = [1, 1]} : vector<8x32xf32> to vector<1x32xf32>
    %4 = vector.extract_strided_slice %1 {offsets = [2, 0], sizes = [1, 32], strides = [1, 1]} : vector<8x32xf32> to vector<1x32xf32>
    %5 = vector.extract_strided_slice %1 {offsets = [3, 0], sizes = [1, 32], strides = [1, 1]} : vector<8x32xf32> to vector<1x32xf32>
    %6 = vector.extract_strided_slice %1 {offsets = [4, 0], sizes = [1, 32], strides = [1, 1]} : vector<8x32xf32> to vector<1x32xf32>
    %7 = vector.extract_strided_slice %1 {offsets = [5, 0], sizes = [1, 32], strides = [1, 1]} : vector<8x32xf32> to vector<1x32xf32>
    %8 = vector.extract_strided_slice %1 {offsets = [6, 0], sizes = [1, 32], strides = [1, 1]} : vector<8x32xf32> to vector<1x32xf32>
    %9 = vector.extract_strided_slice %1 {offsets = [7, 0], sizes = [1, 32], strides = [1, 1]} : vector<8x32xf32> to vector<1x32xf32>
    %c0_3 = arith.constant 0 : index
    %c0_4 = arith.constant 0 : index
    %10 = vector.load %arg3[%c0_3, %c0_4] : memref<32x96xbf16, #tpu.memory_space<vmem>>, vector<32x96xbf16>
    %cst = arith.constant dense<0.000000e+00> : vector<32x96xf32>
    %11 = tpu.matmul %0, %10, %cst {dimension_numbers = #tpu.dot_dimension_numbers<[1], [0], [0], [1], [0, 0, 1, 1], [], []>} : vector<32x32xbf16>, vector<32x96xbf16>, vector<32x96xf32> -> vector<32x96xf32>
    %c0_5 = arith.constant 0 : index
    %c0_6 = arith.constant 0 : index
    %12 = vector.load %arg4[%c0_5, %c0_6] : memref<1x96xf32, #tpu.memory_space<vmem>>, vector<1x96xf32>
    %13 = vector.broadcast %12 : vector<1x96xf32> to vector<32x96xf32>
    %14 = arith.addf %11, %13 : vector<32x96xf32>
    %15 = vector.extract_strided_slice %14 {offsets = [0, 0], sizes = [32, 32], strides = [1, 1]} : vector<32x96xf32> to vector<32x32xf32>
    %16 = vector.extract_strided_slice %14 {offsets = [0, 32], sizes = [32, 32], strides = [1, 1]} : vector<32x96xf32> to vector<32x32xf32>
    %17 = vector.extract_strided_slice %14 {offsets = [0, 64], sizes = [32, 32], strides = [1, 1]} : vector<32x96xf32> to vector<32x32xf32>
    %18 = arith.truncf %15 : vector<32x32xf32> to vector<32x32xbf16>
    %19 = vector.shape_cast %18 : vector<32x32xbf16> to vector<4x8x32xbf16>
    %20 = vector.extract_strided_slice %19 {offsets = [0, 0, 0], sizes = [4, 8, 8], strides = [1, 1, 1]} : vector<4x8x32xbf16> to vector<4x8x8xbf16>
    %21 = vector.extract_strided_slice %19 {offsets = [0, 0, 8], sizes = [4, 8, 8], strides = [1, 1, 1]} : vector<4x8x32xbf16> to vector<4x8x8xbf16>
    %22 = vector.extract_strided_slice %19 {offsets = [0, 0, 16], sizes = [4, 8, 8], strides = [1, 1, 1]} : vector<4x8x32xbf16> to vector<4x8x8xbf16>
    %23 = vector.extract_strided_slice %19 {offsets = [0, 0, 24], sizes = [4, 8, 8], strides = [1, 1, 1]} : vector<4x8x32xbf16> to vector<4x8x8xbf16>
    %24 = tpu.concatenate %20, %21, %22, %23 in 0 : vector<4x8x8xbf16>, vector<4x8x8xbf16>, vector<4x8x8xbf16>, vector<4x8x8xbf16> -> vector<16x8x8xbf16>
    %25 = arith.truncf %16 : vector<32x32xf32> to vector<32x32xbf16>
    %26 = vector.shape_cast %25 : vector<32x32xbf16> to vector<4x8x32xbf16>
    %27 = vector.extract_strided_slice %26 {offsets = [0, 0, 0], sizes = [4, 8, 8], strides = [1, 1, 1]} : vector<4x8x32xbf16> to vector<4x8x8xbf16>
    %28 = vector.extract_strided_slice %26 {offsets = [0, 0, 8], sizes = [4, 8, 8], strides = [1, 1, 1]} : vector<4x8x32xbf16> to vector<4x8x8xbf16>
    %29 = vector.extract_strided_slice %26 {offsets = [0, 0, 16], sizes = [4, 8, 8], strides = [1, 1, 1]} : vector<4x8x32xbf16> to vector<4x8x8xbf16>
    %30 = vector.extract_strided_slice %26 {offsets = [0, 0, 24], sizes = [4, 8, 8], strides = [1, 1, 1]} : vector<4x8x32xbf16> to vector<4x8x8xbf16>
    %31 = tpu.concatenate %27, %28, %29, %30 in 0 : vector<4x8x8xbf16>, vector<4x8x8xbf16>, vector<4x8x8xbf16>, vector<4x8x8xbf16> -> vector<16x8x8xbf16>
    %32 = arith.truncf %17 : vector<32x32xf32> to vector<32x32xbf16>
    %33 = vector.shape_cast %32 : vector<32x32xbf16> to vector<4x8x32xbf16>
    %34 = vector.extract_strided_slice %33 {offsets = [0, 0, 0], sizes = [4, 8, 8], strides = [1, 1, 1]} : vector<4x8x32xbf16> to vector<4x8x8xbf16>
    %35 = vector.extract_strided_slice %33 {offsets = [0, 0, 8], sizes = [4, 8, 8], strides = [1, 1, 1]} : vector<4x8x32xbf16> to vector<4x8x8xbf16>
    %36 = vector.extract_strided_slice %33 {offsets = [0, 0, 16], sizes = [4, 8, 8], strides = [1, 1, 1]} : vector<4x8x32xbf16> to vector<4x8x8xbf16>
    %37 = vector.extract_strided_slice %33 {offsets = [0, 0, 24], sizes = [4, 8, 8], strides = [1, 1, 1]} : vector<4x8x32xbf16> to vector<4x8x8xbf16>
    %38 = tpu.concatenate %34, %35, %36, %37 in 0 : vector<4x8x8xbf16>, vector<4x8x8xbf16>, vector<4x8x8xbf16>, vector<4x8x8xbf16> -> vector<16x8x8xbf16>
    "tpu.trace_start"() <{level = 10 : i32, message = "bqd,bkd->bqk"}> : () -> ()
    %cst_7 = arith.constant dense<0.000000e+00> : vector<16x8x8xf32>
    %39 = tpu.matmul %24, %31, %cst_7 {dimension_numbers = #tpu.dot_dimension_numbers<[2], [2], [1], [1], [0, 0, 0, 1, 1, 1], [0], [0]>} : vector<16x8x8xbf16>, vector<16x8x8xbf16>, vector<16x8x8xf32> -> vector<16x8x8xf32>
    "tpu.trace_stop"() : () -> ()
    %cst_8 = arith.constant 0.353553385 : f32
    %40 = vector.broadcast %cst_8 : f32 to vector<16x8x8xf32>
    %41 = arith.mulf %39, %40 : vector<16x8x8xf32>
    %42 = vector.shape_cast %41 : vector<16x8x8xf32> to vector<4x4x8x8xf32>
    %c0_9 = arith.constant 0 : index
    %c0_10 = arith.constant 0 : index
    %c0_11 = arith.constant 0 : index
    %43 = vector.load %arg1[%c0_9, %c0_10, %c0_11] : memref<4x8x8xf32, #tpu.memory_space<vmem>>, vector<4x8x8xf32>
    %cst_12 = arith.constant 0.000000e+00 : f32
    %44 = vector.broadcast %cst_12 : f32 to vector<4x8x8xf32>
    %45 = arith.cmpf ogt, %43, %44 : vector<4x8x8xf32>
    %46 = vector.shape_cast %45 : vector<4x8x8xi1> to vector<1x4x8x8xi1>
    %cst_13 = arith.constant -1.000000e+09 : f32
    %47 = vector.shape_cast %46 : vector<1x4x8x8xi1> to vector<1x4x8x8xi1>
    %48 = vector.broadcast %47 : vector<1x4x8x8xi1> to vector<4x4x8x8xi1>
    %49 = vector.broadcast %cst_13 : f32 to vector<4x4x8x8xf32>
    %50 = arith.select %48, %49, %42 : vector<4x4x8x8xi1>, vector<4x4x8x8xf32>
    %cst_14 = arith.constant dense<0xFF800000> : vector<4x4x8xf32>
    %51 = vector.multi_reduction <maximumf>, %50, %cst_14 [3] : vector<4x4x8x8xf32> to vector<4x4x8xf32>
    %52 = vector.shape_cast %51 : vector<4x4x8xf32> to vector<4x4x8x1xf32>
    %53 = vector.broadcast %52 : vector<4x4x8x1xf32> to vector<4x4x8x8xf32>
    %54 = arith.subf %50, %53 : vector<4x4x8x8xf32>
    %55 = math.exp %54 : vector<4x4x8x8xf32>
    %cst_15 = arith.constant dense<0.000000e+00> : vector<4x4x8xf32>
    %56 = vector.multi_reduction <add>, %55, %cst_15 [3] : vector<4x4x8x8xf32> to vector<4x4x8xf32>
    %57 = vector.shape_cast %56 : vector<4x4x8xf32> to vector<4x4x8x1xf32>
    %58 = tpu.reciprocal %57 {approx = true} : vector<4x4x8x1xf32> -> vector<4x4x8x1xf32>
    %59 = vector.broadcast %58 : vector<4x4x8x1xf32> to vector<4x4x8x8xf32>
    %60 = arith.mulf %55, %59 : vector<4x4x8x8xf32>
    %61 = vector.shape_cast %60 : vector<4x4x8x8xf32> to vector<16x8x8xf32>
    %62 = arith.truncf %61 : vector<16x8x8xf32> to vector<16x8x8xbf16>
    "tpu.trace_start"() <{level = 10 : i32, message = "bqk,bkd->bqd"}> : () -> ()
    %cst_16 = arith.constant dense<0.000000e+00> : vector<16x8x8xf32>
    %63 = tpu.matmul %62, %38, %cst_16 {dimension_numbers = #tpu.dot_dimension_numbers<[2], [1], [1], [2], [0, 0, 0, 1, 1, 2], [0], [0]>} : vector<16x8x8xbf16>, vector<16x8x8xbf16>, vector<16x8x8xf32> -> vector<16x8x8xf32>
    "tpu.trace_stop"() : () -> ()
    %64 = vector.extract_strided_slice %63 {offsets = [0, 0, 0], sizes = [4, 8, 8], strides = [1, 1, 1]} : vector<16x8x8xf32> to vector<4x8x8xf32>
    %65 = vector.extract_strided_slice %63 {offsets = [4, 0, 0], sizes = [4, 8, 8], strides = [1, 1, 1]} : vector<16x8x8xf32> to vector<4x8x8xf32>
    %66 = vector.extract_strided_slice %63 {offsets = [8, 0, 0], sizes = [4, 8, 8], strides = [1, 1, 1]} : vector<16x8x8xf32> to vector<4x8x8xf32>
    %67 = vector.extract_strided_slice %63 {offsets = [12, 0, 0], sizes = [4, 8, 8], strides = [1, 1, 1]} : vector<16x8x8xf32> to vector<4x8x8xf32>
    %68 = tpu.concatenate %64, %65, %66, %67 in 2 : vector<4x8x8xf32>, vector<4x8x8xf32>, vector<4x8x8xf32>, vector<4x8x8xf32> -> vector<4x8x32xf32>
    %69 = vector.shape_cast %68 : vector<4x8x32xf32> to vector<32x32xf32>
    %70 = vector.extract_strided_slice %61 {offsets = [0, 0, 0], sizes = [4, 8, 8], strides = [1, 1, 1]} : vector<16x8x8xf32> to vector<4x8x8xf32>
    %71 = vector.extract_strided_slice %61 {offsets = [4, 0, 0], sizes = [4, 8, 8], strides = [1, 1, 1]} : vector<16x8x8xf32> to vector<4x8x8xf32>
    %72 = vector.extract_strided_slice %61 {offsets = [8, 0, 0], sizes = [4, 8, 8], strides = [1, 1, 1]} : vector<16x8x8xf32> to vector<4x8x8xf32>
    %73 = vector.extract_strided_slice %61 {offsets = [12, 0, 0], sizes = [4, 8, 8], strides = [1, 1, 1]} : vector<16x8x8xf32> to vector<4x8x8xf32>
    %74 = tpu.concatenate %70, %71, %72, %73 in 2 : vector<4x8x8xf32>, vector<4x8x8xf32>, vector<4x8x8xf32>, vector<4x8x8xf32> -> vector<4x8x32xf32>
    %c0_17 = arith.constant 0 : index
    %c0_18 = arith.constant 0 : index
    %c0_19 = arith.constant 0 : index
    %75 = vector.load %arg12[%c0_17, %c0_18, %c0_19] : memref<4x8x32xf32, #tpu.memory_space<vmem>>, vector<4x8x32xf32>
    tpu.vector_store %arg12[%c0_17, %c0_18, %c0_19], %74 {strides = array<i32>} : memref<4x8x32xf32, #tpu.memory_space<vmem>>, vector<4x8x32xf32>,
    %76 = arith.truncf %69 : vector<32x32xf32> to vector<32x32xbf16>
    %c0_20 = arith.constant 0 : index
    %c0_21 = arith.constant 0 : index
    %c0_22 = arith.constant 0 : index
    %77 = vector.load %arg5[%c0_20, %c0_21, %c0_22] : memref<2x32x32xbf16, #tpu.memory_space<vmem>>, vector<1x32x32xbf16>
    %78 = vector.shape_cast %77 : vector<1x32x32xbf16> to vector<32x32xbf16>
    %cst_23 = arith.constant dense<0.000000e+00> : vector<32x32xf32>
    %79 = tpu.matmul %76, %78, %cst_23 {dimension_numbers = #tpu.dot_dimension_numbers<[1], [0], [0], [1], [0, 0, 1, 1], [], []>} : vector<32x32xbf16>, vector<32x32xbf16>, vector<32x32xf32> -> vector<32x32xf32>
    %80 = vector.broadcast %2 : vector<1x32xf32> to vector<32x32xf32>
    %81 = arith.addf %79, %80 : vector<32x32xf32>
    %82 = arith.addf %81, %15 : vector<32x32xf32>
    %cst_24 = arith.constant dense<0.000000e+00> : vector<32xf32>
    %83 = vector.multi_reduction <add>, %82, %cst_24 [1] : vector<32x32xf32> to vector<32xf32>
    %84 = vector.shape_cast %83 : vector<32xf32> to vector<32x1xf32>
    %cst_25 = arith.constant 3.200000e+01 : f32
    %85 = vector.broadcast %cst_25 : f32 to vector<32x1xf32>
    %86 = arith.divf %84, %85 : vector<32x1xf32>
    %87 = vector.broadcast %86 : vector<32x1xf32> to vector<32x32xf32>
    %88 = arith.subf %82, %87 : vector<32x32xf32>
    %89 = arith.mulf %88, %88 : vector<32x32xf32>
    %cst_26 = arith.constant dense<0.000000e+00> : vector<32xf32>
    %90 = vector.multi_reduction <add>, %89, %cst_26 [1] : vector<32x32xf32> to vector<32xf32>
    %91 = vector.shape_cast %90 : vector<32xf32> to vector<32x1xf32>
    %cst_27 = arith.constant 3.200000e+01 : f32
    %92 = vector.broadcast %cst_27 : f32 to vector<32x1xf32>
    %93 = arith.divf %91, %92 : vector<32x1xf32>
    %94 = vector.broadcast %86 : vector<32x1xf32> to vector<32x32xf32>
    %95 = arith.subf %82, %94 : vector<32x32xf32>
    %cst_28 = arith.constant 9.99999974E-6 : f32
    %96 = vector.broadcast %cst_28 : f32 to vector<32x1xf32>
    %97 = arith.addf %93, %96 : vector<32x1xf32>
    %98 = math.rsqrt %97 : vector<32x1xf32>
    %99 = vector.broadcast %98 : vector<32x1xf32> to vector<32x32xf32>
    %100 = arith.mulf %95, %99 : vector<32x32xf32>
    %101 = vector.broadcast %3 : vector<1x32xf32> to vector<32x32xf32>
    %102 = arith.mulf %100, %101 : vector<32x32xf32>
    %103 = vector.broadcast %4 : vector<1x32xf32> to vector<32x32xf32>
    %104 = arith.addf %102, %103 : vector<32x32xf32>
    %105 = arith.truncf %104 : vector<32x32xf32> to vector<32x32xbf16>
    %c0_29 = arith.constant 0 : index
    %c0_30 = arith.constant 0 : index
    %106 = vector.load %arg7[%c0_29, %c0_30] : memref<32x64xbf16, #tpu.memory_space<vmem>>, vector<32x64xbf16>
    %cst_31 = arith.constant dense<0.000000e+00> : vector<32x64xf32>
    %107 = tpu.matmul %105, %106, %cst_31 {dimension_numbers = #tpu.dot_dimension_numbers<[1], [0], [0], [1], [0, 0, 1, 1], [], []>} : vector<32x32xbf16>, vector<32x64xbf16>, vector<32x64xf32> -> vector<32x64xf32>
    %c0_32 = arith.constant 0 : index
    %c0_33 = arith.constant 0 : index
    %108 = vector.load %arg8[%c0_32, %c0_33] : memref<1x64xf32, #tpu.memory_space<vmem>>, vector<1x64xf32>
    %109 = vector.broadcast %108 : vector<1x64xf32> to vector<32x64xf32>
    %110 = arith.addf %107, %109 : vector<32x64xf32>
    %cst_34 = arith.constant 0.000000e+00 : f32
    %111 = vector.broadcast %cst_34 : f32 to vector<32x64xf32>
    %112 = arith.maximumf %110, %111 : vector<32x64xf32>
    %113 = arith.truncf %112 : vector<32x64xf32> to vector<32x64xbf16>
    %c0_35 = arith.constant 0 : index
    %c0_36 = arith.constant 0 : index
    %114 = vector.load %arg9[%c0_35, %c0_36] : memref<64x32xbf16, #tpu.memory_space<vmem>>, vector<64x32xbf16>
    %cst_37 = arith.constant dense<0.000000e+00> : vector<32x32xf32>
    %115 = tpu.matmul %113, %114, %cst_37 {dimension_numbers = #tpu.dot_dimension_numbers<[1], [0], [0], [1], [0, 0, 1, 1], [], []>} : vector<32x64xbf16>, vector<64x32xbf16>, vector<32x32xf32> -> vector<32x32xf32>
    %116 = vector.broadcast %5 : vector<1x32xf32> to vector<32x32xf32>
    %117 = arith.addf %115, %116 : vector<32x32xf32>
    %118 = vector.shape_cast %117 : vector<32x32xf32> to vector<4x8x32xf32>
    %cst_38 = arith.constant 0.000000e+00 : f32
    %119 = vector.broadcast %cst_38 : f32 to vector<4x1x32xf32>
    %120 = vector.extract_strided_slice %118 {offsets = [0, 0, 0], sizes = [4, 7, 32], strides = [1, 1, 1]} : vector<4x8x32xf32> to vector<4x7x32xf32>
    %121 = tpu.concatenate %119, %120 in 1 : vector<4x1x32xf32>, vector<4x7x32xf32> -> vector<4x8x32xf32>
    %122 = vector.extract_strided_slice %118 {offsets = [0, 1, 0], sizes = [4, 7, 32], strides = [1, 1, 1]} : vector<4x8x32xf32> to vector<4x7x32xf32>
    %123 = tpu.concatenate %122, %119 in 1 : vector<4x7x32xf32>, vector<4x1x32xf32> -> vector<4x8x32xf32>
    %124 = tpu.concatenate %121, %118, %123 in 2 : vector<4x8x32xf32>, vector<4x8x32xf32>, vector<4x8x32xf32> -> vector<4x8x96xf32>
    %125 = vector.shape_cast %124 : vector<4x8x96xf32> to vector<32x96xf32>
    %126 = arith.truncf %125 : vector<32x96xf32> to vector<32x96xbf16>
    %c0_39 = arith.constant 0 : index
    %c0_40 = arith.constant 0 : index
    %127 = vector.load %arg6[%c0_39, %c0_40] : memref<96x32xbf16, #tpu.memory_space<vmem>>, vector<96x32xbf16>
    %cst_41 = arith.constant dense<0.000000e+00> : vector<32x32xf32>
    %128 = tpu.matmul %126, %127, %cst_41 {dimension_numbers = #tpu.dot_dimension_numbers<[1], [0], [0], [1], [0, 0, 1, 1], [], []>} : vector<32x96xbf16>, vector<96x32xbf16>, vector<32x32xf32> -> vector<32x32xf32>
    %129 = vector.broadcast %6 : vector<1x32xf32> to vector<32x32xf32>
    %130 = arith.addf %128, %129 : vector<32x32xf32>
    %cst_42 = arith.constant 0.000000e+00 : f32
    %131 = vector.broadcast %cst_42 : f32 to vector<32x32xf32>
    %132 = arith.maximumf %130, %131 : vector<32x32xf32>
    %133 = arith.truncf %132 : vector<32x32xf32> to vector<32x32xbf16>
    %c1 = arith.constant 1 : index
    %c0_43 = arith.constant 0 : index
    %c0_44 = arith.constant 0 : index
    %134 = vector.load %arg5[%c1, %c0_43, %c0_44] : memref<2x32x32xbf16, #tpu.memory_space<vmem>>, vector<1x32x32xbf16>
    %135 = vector.shape_cast %134 : vector<1x32x32xbf16> to vector<32x32xbf16>
    %cst_45 = arith.constant dense<0.000000e+00> : vector<32x32xf32>
    %136 = tpu.matmul %133, %135, %cst_45 {dimension_numbers = #tpu.dot_dimension_numbers<[1], [0], [0], [1], [0, 0, 1, 1], [], []>} : vector<32x32xbf16>, vector<32x32xbf16>, vector<32x32xf32> -> vector<32x32xf32>
    %137 = vector.broadcast %7 : vector<1x32xf32> to vector<32x32xf32>
    %138 = arith.addf %136, %137 : vector<32x32xf32>
    %139 = arith.addf %138, %104 : vector<32x32xf32>
    %cst_46 = arith.constant dense<0.000000e+00> : vector<32xf32>
    %140 = vector.multi_reduction <add>, %139, %cst_46 [1] : vector<32x32xf32> to vector<32xf32>
    %141 = vector.shape_cast %140 : vector<32xf32> to vector<32x1xf32>
    %cst_47 = arith.constant 3.200000e+01 : f32
    %142 = vector.broadcast %cst_47 : f32 to vector<32x1xf32>
    %143 = arith.divf %141, %142 : vector<32x1xf32>
    %144 = vector.broadcast %143 : vector<32x1xf32> to vector<32x32xf32>
    %145 = arith.subf %139, %144 : vector<32x32xf32>
    %146 = arith.mulf %145, %145 : vector<32x32xf32>
    %cst_48 = arith.constant dense<0.000000e+00> : vector<32xf32>
    %147 = vector.multi_reduction <add>, %146, %cst_48 [1] : vector<32x32xf32> to vector<32xf32>
    %148 = vector.shape_cast %147 : vector<32xf32> to vector<32x1xf32>
    %cst_49 = arith.constant 3.200000e+01 : f32
    %149 = vector.broadcast %cst_49 : f32 to vector<32x1xf32>
    %150 = arith.divf %148, %149 : vector<32x1xf32>
    %151 = vector.broadcast %143 : vector<32x1xf32> to vector<32x32xf32>
    %152 = arith.subf %139, %151 : vector<32x32xf32>
    %cst_50 = arith.constant 9.99999974E-6 : f32
    %153 = vector.broadcast %cst_50 : f32 to vector<32x1xf32>
    %154 = arith.addf %150, %153 : vector<32x1xf32>
    %155 = math.rsqrt %154 : vector<32x1xf32>
    %156 = vector.broadcast %155 : vector<32x1xf32> to vector<32x32xf32>
    %157 = arith.mulf %152, %156 : vector<32x32xf32>
    %158 = vector.broadcast %8 : vector<1x32xf32> to vector<32x32xf32>
    %159 = arith.mulf %157, %158 : vector<32x32xf32>
    %160 = vector.broadcast %9 : vector<1x32xf32> to vector<32x32xf32>
    %161 = arith.addf %159, %160 : vector<32x32xf32>
    %c0_51 = arith.constant 0 : index
    %c0_52 = arith.constant 0 : index
    %162 = vector.load %arg11[%c0_51, %c0_52] : memref<32x32xf32, #tpu.memory_space<vmem>>, vector<32x32xf32>
    tpu.vector_store %arg11[%c0_51, %c0_52], %161 {strides = array<i32>} : memref<32x32xf32, #tpu.memory_space<vmem>>, vector<32x32xf32>,
    return
  }
  func.func @transform_0(%arg0: i32) -> (i32, i32, i32) {
    %c0_i32 = arith.constant 0 : i32
    %c0_i32_0 = arith.constant 0 : i32
    %c0_i32_1 = arith.constant 0 : i32
    return %arg0, %c0_i32, %c0_i32_0 : i32, i32, i32
  }
  func.func @transform_1(%arg0: i32) -> (i32, i32) {
    %c0_i32 = arith.constant 0 : i32
    %c0_i32_0 = arith.constant 0 : i32
    return %arg0, %c0_i32 : i32, i32
  }
  func.func @transform_2(%arg0: i32) -> (i32, i32) {
    %c0_i32 = arith.constant 0 : i32
    %c0_i32_0 = arith.constant 0 : i32
    %c0_i32_1 = arith.constant 0 : i32
    return %c0_i32, %c0_i32_0 : i32, i32
  }
  func.func @transform_3(%arg0: i32) -> (i32, i32) {
    %c0_i32 = arith.constant 0 : i32
    %c0_i32_0 = arith.constant 0 : i32
    %c0_i32_1 = arith.constant 0 : i32
    return %c0_i32, %c0_i32_0 : i32, i32
  }
  func.func @transform_4(%arg0: i32) -> (i32, i32, i32) {
    %c0_i32 = arith.constant 0 : i32
    %c0_i32_0 = arith.constant 0 : i32
    %c0_i32_1 = arith.constant 0 : i32
    %c0_i32_2 = arith.constant 0 : i32
    return %c0_i32, %c0_i32_0, %c0_i32_1 : i32, i32, i32
  }
  func.func @transform_5(%arg0: i32) -> (i32, i32) {
    %c0_i32 = arith.constant 0 : i32
    %c0_i32_0 = arith.constant 0 : i32
    %c0_i32_1 = arith.constant 0 : i32
    return %c0_i32, %c0_i32_0 : i32, i32
  }
  func.func @transform_6(%arg0: i32) -> (i32, i32) {
    %c0_i32 = arith.constant 0 : i32
    %c0_i32_0 = arith.constant 0 : i32
    %c0_i32_1 = arith.constant 0 : i32
    return %c0_i32, %c0_i32_0 : i32, i32
  }
  func.func @transform_7(%arg0: i32) -> (i32, i32) {
    %c0_i32 = arith.constant 0 : i32
    %c0_i32_0 = arith.constant 0 : i32
    %c0_i32_1 = arith.constant 0 : i32
    return %c0_i32, %c0_i32_0 : i32, i32
  }
  func.func @transform_8(%arg0: i32) -> (i32, i32) {
    %c0_i32 = arith.constant 0 : i32
    %c0_i32_0 = arith.constant 0 : i32
    %c0_i32_1 = arith.constant 0 : i32
    return %c0_i32, %c0_i32_0 : i32, i32
  }
  func.func @transform_9(%arg0: i32) -> (i32, i32) {
    %c0_i32 = arith.constant 0 : i32
    %c0_i32_0 = arith.constant 0 : i32
    %c0_i32_1 = arith.constant 0 : i32
    return %c0_i32, %c0_i32_0 : i32, i32
  }
  func.func @transform_10(%arg0: i32) -> (i32, i32) {
    %c0_i32 = arith.constant 0 : i32
    %c0_i32_0 = arith.constant 0 : i32
    return %arg0, %c0_i32 : i32, i32
  }
  func.func @transform_11(%arg0: i32) -> (i32, i32, i32) {
    %c0_i32 = arith.constant 0 : i32
    %c0_i32_0 = arith.constant 0 : i32
    %c0_i32_1 = arith.constant 0 : i32
    return %arg0, %c0_i32, %c0_i32_0 : i32, i32, i32
  }
}

</mosaic_0001>

<llo_original>
// kernel: tpu_custom_call.1
$region0: #{tpu_custom_call.1}
  #allocation0 [shape = 'u32[]', space=smem, size = 0x4, offset = 0x4, fixed_abs, tag = 'smem constant byte address 0x4 - core index']
  #allocation1 [shape = 'u32[144,128]{1,0:T(1,128)}', space=vmem, size = 0x12000, scoped, tag = 'internal scratch']
  %s0 = inlined_call_operand.vmem [shape: f32[4,8,8], index: 0, kind: input, shape index: {}]
  %s1 = inlined_call_operand.vmem [shape: bf16[32,32], index: 1, kind: input, shape index: {}]
  %s2 = inlined_call_operand.vmem [shape: bf16[32,96], index: 2, kind: input, shape index: {}]
  %s3 = inlined_call_operand.vmem [shape: f32[1,96], index: 3, kind: input, shape index: {}]
  %s4 = inlined_call_operand.vmem [shape: bf16[2,32,32], index: 4, kind: input, shape index: {}]
  %s5 = inlined_call_operand.vmem [shape: bf16[96,32], index: 5, kind: input, shape index: {}]
  %s6 = inlined_call_operand.vmem [shape: bf16[32,64], index: 6, kind: input, shape index: {}]
  %s7 = inlined_call_operand.vmem [shape: f32[1,64], index: 7, kind: input, shape index: {}]
  %s8 = inlined_call_operand.vmem [shape: bf16[64,32], index: 8, kind: input, shape index: {}]
  %s9 = inlined_call_operand.vmem [shape: f32[8,32], index: 9, kind: input, shape index: {}]
  %s10 = inlined_call_operand.hbm [shape: f32[32,32], index: 10, kind: output, shape index: {0}]
  %s11 = inlined_call_operand.hbm [shape: f32[4,8,32], index: 11, kind: output, shape index: {1}]
  %12 = xla_tuple %s10, %s11
  %s13 = sld [smem:[#allocation0]]
  $region58: #{tpu_custom_call.1} parent=0
    _
  %s15 = ssub.s32 1, %s13
  %s16 = scalar_select 0, %s15, %s13
  $region1: #{tpu_custom_call.1} parent=0
    #allocation2 [shape = 'u8[16384]{0}', space=vmem, size = 0x4000, scoped, tag = 'output window, operand 0, single buffered']
    #allocation3 [shape = 's32[1]{0}', space=sflag, size = 0x4, scoped, tag = 'scoped memory for tpu_custom_call.1']
    #allocation4 [shape = 'u8[16384]{0}', space=vmem, size = 0x4000, scoped, tag = 'output window, operand 1, single buffered']
    #allocation5 [shape = 's32[1]{0}', space=sflag, size = 0x4, scoped, tag = 'scoped memory for tpu_custom_call.1']
    %17 = vsyncpa [#allocation3], 0
    %18 = vsyncpa [#allocation5], 0
    // Predicated region
    $region2: #{tpu_custom_call.1} parent=1 // pred_check
      _
    $region3: #{tpu_custom_call.1} parent=1 // pred_check_branch
      %20 = sbr.rel (0) target = $region5
    $region4: #{tpu_custom_call.1} parent=1 // pred_region
      _
    $region5: #{tpu_custom_call.1} parent=1 // pred_fallthru
      _
    // Predicated region
    $region6: #{tpu_custom_call.1} parent=1 // pred_check
      _
    $region7: #{tpu_custom_call.1} parent=1 // pred_check_branch
      %22 = sbr.rel (0) target = $region9
    $region8: #{tpu_custom_call.1} parent=1 // pred_region
      _
    $region9: #{tpu_custom_call.1} parent=1 // pred_fallthru
      _
    // Predicated region
    $region10: #{tpu_custom_call.1} parent=1 // pred_check
      _
    $region11: #{tpu_custom_call.1} parent=1 // pred_check_branch
      %24 = sbr.rel (0) target = $region13
    $region12: #{tpu_custom_call.1} parent=1 // pred_region
      _
    $region13: #{tpu_custom_call.1} parent=1 // pred_fallthru
      _
    // Predicated region
    $region14: #{tpu_custom_call.1} parent=1 // pred_check
      _
    $region15: #{tpu_custom_call.1} parent=1 // pred_check_branch
      %26 = sbr.rel (0) target = $region17
    $region16: #{tpu_custom_call.1} parent=1 // pred_region
      _
    $region17: #{tpu_custom_call.1} parent=1 // pred_fallthru
      _
    // Predicated region
    $region18: #{tpu_custom_call.1} parent=1 // pred_check
      _
    $region19: #{tpu_custom_call.1} parent=1 // pred_check_branch
      %28 = sbr.rel (0) target = $region21
    $region20: #{tpu_custom_call.1} parent=1 // pred_region
      _
    $region21: #{tpu_custom_call.1} parent=1 // pred_fallthru
      _
    // Predicated region
    $region22: #{tpu_custom_call.1} parent=1 // pred_check
      _
    $region23: #{tpu_custom_call.1} parent=1 // pred_check_branch
      %30 = sbr.rel (0) target = $region25
    $region24: #{tpu_custom_call.1} parent=1 // pred_region
      _
    $region25: #{tpu_custom_call.1} parent=1 // pred_fallthru
      _
    // Predicated region
    $region26: #{tpu_custom_call.1} parent=1 // pred_check
      _
    $region27: #{tpu_custom_call.1} parent=1 // pred_check_branch
      %32 = sbr.rel (0) target = $region29
    $region28: #{tpu_custom_call.1} parent=1 // pred_region
      _
    $region29: #{tpu_custom_call.1} parent=1 // pred_fallthru
      _
    // Predicated region
    $region30: #{tpu_custom_call.1} parent=1 // pred_check
      _
    $region31: #{tpu_custom_call.1} parent=1 // pred_check_branch
      %34 = sbr.rel (0) target = $region33
    $region32: #{tpu_custom_call.1} parent=1 // pred_region
      _
    $region33: #{tpu_custom_call.1} parent=1 // pred_fallthru
      _
    // Predicated region
    $region34: #{tpu_custom_call.1} parent=1 // pred_check
      _
    $region35: #{tpu_custom_call.1} parent=1 // pred_check_branch
      %36 = sbr.rel (0) target = $region37
    $region36: #{tpu_custom_call.1} parent=1 // pred_region
      _
    $region37: #{tpu_custom_call.1} parent=1 // pred_fallthru
      _
    // Predicated region
    $region38: #{tpu_custom_call.1} parent=1 // pred_check
      _
    $region39: #{tpu_custom_call.1} parent=1 // pred_check_branch
      %38 = sbr.rel (0) target = $region41
    $region40: #{tpu_custom_call.1} parent=1 // pred_region
      _
    $region41: #{tpu_custom_call.1} parent=1 // pred_fallthru
      _
    %v40 = vld [vmem:[%s1] sm:$0xf]
    %v41 = vld [vmem:[%s1 + $0x4] sm:$0xf]
    %v42 = vld [vmem:[%s1 + $0x8] sm:$0xf]
    %v43 = vld [vmem:[%s1 + $0xc] sm:$0xf]
    %v44 = vld [vmem:[%s9] sm:$0xff]
    %v45 = vld [vmem:[%s2] sm:$0xf]
    %v46 = vld [vmem:[%s2 + $0x4] sm:$0xf]
    %v47 = vld [vmem:[%s2 + $0x8] sm:$0xf]
    %v48 = vld [vmem:[%s2 + $0xc] sm:$0xf]
    %v49 = vld [vmem:[%s3] sm:$0x1]
    %v51 = vlaneseq
    %v52 = vshrl.u32 %v51, 7
    %v53 = vsub.s32 0, %v52
    %v54 = vrot.slane %v49, %v53
    %v60 = vunpack.c.l.b16 %v40
    %v61 = vunpack.c.l.b16 %v41
    %v62 = vunpack.c.l.b16 %v42
    %v63 = vunpack.c.l.b16 %v43
    %v64 = vpack.c.b16 %v61, %v60
    %v65 = vpack.c.b16 %v63, %v62
    %v70 = vunpack.c.l.b16 %v45
    %v71 = vunpack.c.l.b16 %v46
    %v72 = vunpack.c.l.b16 %v47
    %v73 = vunpack.c.l.b16 %v48
    %v74 = vpack.c.b16 %v71, %v70
    %v75 = vpack.c.b16 %v73, %v72
    %vm78 = vcmask 261120
    %v80 = vsel %vm78, %v64, 0
    %v83 = vsel %vm78, %v65, 0
    %85 = vmatprep.subr.bf16.mxu0 0
    %86 = vmatpush1.bf16.msra.mxu0 %v74
    %87 = vmatprep.subr.bf16.mxu0 0
    %88 = vmatpush1.bf16.msra.mxu0 %v75
    %89 = vmatprep.subr.bf16.mxu0 0
    %90 = vmatpush1.bf16.msra.mxu0 0
    %91 = vmatprep.subr.bf16.mxu0 0
    %92 = vmatpush1.bf16.msra.mxu0 0
    %93 = vmatprep.subr.bf16.mxu0 0
    %94 = vmatpush1.bf16.msra.mxu0 0
    %95 = vmatprep.subr.bf16.mxu0 0
    %96 = vmatpush1.bf16.msra.mxu0 0
    %97 = vmatprep.subr.bf16.mxu0 0
    %98 = vmatpush1.bf16.msra.mxu0 0
    %99 = vmatprep.subr.bf16.mxu0 0
    %100 = vmatpush1.bf16.msra.mxu0 0
    %101 = vmatprep.subr.bf16.mxu0 0
    %102 = vmatpush1.bf16.msra.mxu0 0
    %103 = vmatprep.subr.bf16.mxu0 0
    %104 = vmatpush1.bf16.msra.mxu0 0
    %105 = vmatprep.subr.bf16.mxu0 0
    %106 = vmatpush1.bf16.msra.mxu0 0
    %107 = vmatprep.subr.bf16.mxu0 0
    %108 = vmatpush1.bf16.msra.mxu0 0
    %109 = vmatprep.subr.bf16.mxu0 0
    %110 = vmatpush1.bf16.msra.mxu0 0
    %111 = vmatprep.subr.bf16.mxu0 0
    %112 = vmatpush1.bf16.msra.mxu0 0
    %113 = vmatprep.subr.bf16.mxu0 0
    %114 = vmatpush1.bf16.msra.mxu0 0
    %115 = vmatprep.subr.bf16.mxu0 0
    %116 = vmatpush1.bf16.msra.mxu0 0
    %117 = vmatprep.mubr.bf16.mxu0 0
    %118 = vmatmul.mubr.bf16.gmra.mrb[0].mxu0 %v80
    %v119 = vpop.f32.mrb[0].mxu0
    %v120 = vadd.f32 %v54, %v119
    %v121 = vpop.f32.mrb[0].mxu0
    %v122 = vpop.f32.mrb[0].mxu0
    %v123 = vadd.f32 %v54, %v122
    %v124 = vpop.f32.mrb[0].mxu0
    %125 = vmatprep.mubr.bf16.mxu0 0
    %126 = vmatmul.mubr.bf16.gmra.mrb[0].mxu0 %v83
    %v127 = vpop.f32.mrb[0].mxu0
    %v128 = vadd.f32 %v54, %v127
    %v129 = vpop.f32.mrb[0].mxu0
    %v130 = vpop.f32.mrb[0].mxu0
    %v131 = vadd.f32 %v54, %v130
    %v132 = vpop.f32.mrb[0].mxu0
    %133 = vdwg.mxu0
    %v134 = vpack.c.bf16 %v123, %v120
    %v135 = vpack.c.bf16 %v131, %v128
    %v138 = vunpack.c.l.b16 %v134
    %v139 = vunpack.c.h.b16 %v134
    %v140 = vunpack.c.l.b16 %v135
    %v141 = vunpack.c.h.b16 %v135
    %v142 = vpack.c.b16 %v138, %v138
    %v143 = vpack.c.b16 %v139, %v139
    %v144 = vpack.c.b16 %v140, %v140
    %v145 = vpack.c.b16 %v141, %v141
    %146 = vrot.lane.b32.xlu0 %v142, 120
    %v147 = vpop.permute.xlu0 %146
    %148 = vrot.lane.b32.xlu0 %v143, 120
    %v149 = vpop.permute.xlu0 %148
    %150 = vrot.lane.b32.xlu0 %v144, 120
    %v151 = vpop.permute.xlu0 %150
    %152 = vrot.lane.b32.xlu0 %v145, 120
    %v153 = vpop.permute.xlu0 %152
    %154 = vrot.lane.b32.xlu0 %v142, 112
    %v155 = vpop.permute.xlu0 %154
    %156 = vrot.lane.b32.xlu0 %v143, 112
    %v157 = vpop.permute.xlu0 %156
    %158 = vrot.lane.b32.xlu0 %v144, 112
    %v159 = vpop.permute.xlu0 %158
    %160 = vrot.lane.b32.xlu0 %v145, 112
    %v161 = vpop.permute.xlu0 %160
    %162 = vrot.lane.b32.xlu0 %v142, 104
    %v163 = vpop.permute.xlu0 %162
    %164 = vrot.lane.b32.xlu0 %v143, 104
    %v165 = vpop.permute.xlu0 %164
    %166 = vrot.lane.b32.xlu0 %v144, 104
    %v167 = vpop.permute.xlu0 %166
    %168 = vrot.lane.b32.xlu0 %v145, 104
    %v169 = vpop.permute.xlu0 %168
    %170 = vrot.lane.b32.xlu0 %v142, 96
    %v171 = vpop.permute.xlu0 %170
    %vm172 = vcmask 64512
    %v174 = vsel %vm172, %v142, 0
    %v177 = vsel %vm172, %v171, 0
    %179 = vmatprep.subr.bf16.mxu0 0
    %180 = vmatpush1.bf16.xpose.msra.mxu0 %v177
    %181 = vmatprep.subr.bf16.mxu0 0
    %182 = vmatpush1.bf16.xpose.msra.mxu0 0
    %183 = vmatprep.subr.bf16.mxu0 0
    %184 = vmatpush1.bf16.xpose.msra.mxu0 0
    %185 = vmatprep.subr.bf16.mxu0 0
    %186 = vmatpush1.bf16.xpose.msra.mxu0 0
    %187 = vmatprep.subr.bf16.mxu0 0
    %188 = vmatpush1.bf16.xpose.msra.mxu0 0
    %189 = vmatprep.subr.bf16.mxu0 0
    %190 = vmatpush1.bf16.xpose.msra.mxu0 0
    %191 = vmatprep.subr.bf16.mxu0 0
    %192 = vmatpush1.bf16.xpose.msra.mxu0 0
    %193 = vmatprep.subr.bf16.mxu0 0
    %194 = vmatpush1.bf16.xpose.msra.mxu0 0
    %195 = vmatprep.subr.bf16.mxu0 0
    %196 = vmatpush1.bf16.xpose.msra.mxu0 0
    %197 = vmatprep.subr.bf16.mxu0 0
    %198 = vmatpush1.bf16.xpose.msra.mxu0 0
    %199 = vmatprep.subr.bf16.mxu0 0
    %200 = vmatpush1.bf16.xpose.msra.mxu0 0
    %201 = vmatprep.subr.bf16.mxu0 0
    %202 = vmatpush1.bf16.xpose.msra.mxu0 0
    %203 = vmatprep.subr.bf16.mxu0 0
    %204 = vmatpush1.bf16.xpose.msra.mxu0 0
    %205 = vmatprep.subr.bf16.mxu0 0
    %206 = vmatpush1.bf16.xpose.msra.mxu0 0
    %207 = vmatprep.subr.bf16.mxu0 0
    %208 = vmatpush1.bf16.xpose.msra.mxu0 0
    %209 = vmatprep.subr.bf16.mxu0 0
    %210 = vmatpush1.bf16.xpose.msra.mxu0 0
    %211 = vmatprep.mubr.bf16.mxu0 0
    %212 = vmatmul.mubr.bf16.gmra.mrb[0].mxu0 %v174
    %v213 = vpop.f32.mrb[0].mxu0
    %v214 = vadd.f32 0.0, %v213
    %v215 = vpop.f32.mrb[0].mxu0
    %v216 = vpop.f32.mrb[0].mxu0
    %v217 = vpop.f32.mrb[0].mxu0
    %218 = vdwg.mxu0
    %219 = vrot.lane.b32.xlu0 %v143, 96
    %v220 = vpop.permute.xlu0 %219
    %v222 = vsel %vm172, %v143, 0
    %v225 = vsel %vm172, %v220, 0
    %227 = vmatprep.subr.bf16.mxu0 0
    %228 = vmatpush1.bf16.xpose.msra.mxu0 %v225
    %229 = vmatprep.subr.bf16.mxu0 0
    %230 = vmatpush1.bf16.xpose.msra.mxu0 0
    %231 = vmatprep.subr.bf16.mxu0 0
    %232 = vmatpush1.bf16.xpose.msra.mxu0 0
    %233 = vmatprep.subr.bf16.mxu0 0
    %234 = vmatpush1.bf16.xpose.msra.mxu0 0
    %235 = vmatprep.subr.bf16.mxu0 0
    %236 = vmatpush1.bf16.xpose.msra.mxu0 0
    %237 = vmatprep.subr.bf16.mxu0 0
    %238 = vmatpush1.bf16.xpose.msra.mxu0 0
    %239 = vmatprep.subr.bf16.mxu0 0
    %240 = vmatpush1.bf16.xpose.msra.mxu0 0
    %241 = vmatprep.subr.bf16.mxu0 0
    %242 = vmatpush1.bf16.xpose.msra.mxu0 0
    %243 = vmatprep.subr.bf16.mxu0 0
    %244 = vmatpush1.bf16.xpose.msra.mxu0 0
    %245 = vmatprep.subr.bf16.mxu0 0
    %246 = vmatpush1.bf16.xpose.msra.mxu0 0
    %247 = vmatprep.subr.bf16.mxu0 0
    %248 = vmatpush1.bf16.xpose.msra.mxu0 0
    %249 = vmatprep.subr.bf16.mxu0 0
    %250 = vmatpush1.bf16.xpose.msra.mxu0 0
    %251 = vmatprep.subr.bf16.mxu0 0
    %252 = vmatpush1.bf16.xpose.msra.mxu0 0
    %253 = vmatprep.subr.bf16.mxu0 0
    %254 = vmatpush1.bf16.xpose.msra.mxu0 0
    %255 = vmatprep.subr.bf16.mxu0 0
    %256 = vmatpush1.bf16.xpose.msra.mxu0 0
    %257 = vmatprep.subr.bf16.mxu0 0
    %258 = vmatpush1.bf16.xpose.msra.mxu0 0
    %259 = vmatprep.mubr.bf16.mxu0 0
    %260 = vmatmul.mubr.bf16.gmra.mrb[0].mxu0 %v222
    %v261 = vpop.f32.mrb[0].mxu0
    %v262 = vadd.f32 0.0, %v261
    %v263 = vpop.f32.mrb[0].mxu0
    %v264 = vpop.f32.mrb[0].mxu0
    %v265 = vpop.f32.mrb[0].mxu0
    %266 = vdwg.mxu0
    %267 = vrot.lane.b32.xlu0 %v144, 96
    %v268 = vpop.permute.xlu0 %267
    %v270 = vsel %vm172, %v144, 0
    %v273 = vsel %vm172, %v268, 0
    %275 = vmatprep.subr.bf16.mxu0 0
    %276 = vmatpush1.bf16.xpose.msra.mxu0 %v273
    %277 = vmatprep.subr.bf16.mxu0 0
    %278 = vmatpush1.bf16.xpose.msra.mxu0 0
    %279 = vmatprep.subr.bf16.mxu0 0
    %280 = vmatpush1.bf16.xpose.msra.mxu0 0
    %281 = vmatprep.subr.bf16.mxu0 0
    %282 = vmatpush1.bf16.xpose.msra.mxu0 0
    %283 = vmatprep.subr.bf16.mxu0 0
    %284 = vmatpush1.bf16.xpose.msra.mxu0 0
    %285 = vmatprep.subr.bf16.mxu0 0
    %286 = vmatpush1.bf16.xpose.msra.mxu0 0
    %287 = vmatprep.subr.bf16.mxu0 0
    %288 = vmatpush1.bf16.xpose.msra.mxu0 0
    %289 = vmatprep.subr.bf16.mxu0 0
    %290 = vmatpush1.bf16.xpose.msra.mxu0 0
    %291 = vmatprep.subr.bf16.mxu0 0
    %292 = vmatpush1.bf16.xpose.msra.mxu0 0
    %293 = vmatprep.subr.bf16.mxu0 0
    %294 = vmatpush1.bf16.xpose.msra.mxu0 0
    %295 = vmatprep.subr.bf16.mxu0 0
    %296 = vmatpush1.bf16.xpose.msra.mxu0 0
    %297 = vmatprep.subr.bf16.mxu0 0
    %298 = vmatpush1.bf16.xpose.msra.mxu0 0
    %299 = vmatprep.subr.bf16.mxu0 0
    %300 = vmatpush1.bf16.xpose.msra.mxu0 0
    %301 = vmatprep.subr.bf16.mxu0 0
    %302 = vmatpush1.bf16.xpose.msra.mxu0 0
    %303 = vmatprep.subr.bf16.mxu0 0
    %304 = vmatpush1.bf16.xpose.msra.mxu0 0
    %305 = vmatprep.subr.bf16.mxu0 0
    %306 = vmatpush1.bf16.xpose.msra.mxu0 0
    %307 = vmatprep.mubr.bf16.mxu0 0
    %308 = vmatmul.mubr.bf16.gmra.mrb[0].mxu0 %v270
    %v309 = vpop.f32.mrb[0].mxu0
    %v310 = vadd.f32 0.0, %v309
    %v311 = vpop.f32.mrb[0].mxu0
    %v312 = vpop.f32.mrb[0].mxu0
    %v313 = vpop.f32.mrb[0].mxu0
    %314 = vdwg.mxu0
    %315 = vrot.lane.b32.xlu0 %v145, 96
    %v316 = vpop.permute.xlu0 %315
    %v318 = vsel %vm172, %v145, 0
    %v321 = vsel %vm172, %v316, 0
    %323 = vmatprep.subr.bf16.mxu0 0
    %324 = vmatpush1.bf16.xpose.msra.mxu0 %v321
    %325 = vmatprep.subr.bf16.mxu0 0
    %326 = vmatpush1.bf16.xpose.msra.mxu0 0
    %327 = vmatprep.subr.bf16.mxu0 0
    %328 = vmatpush1.bf16.xpose.msra.mxu0 0
    %329 = vmatprep.subr.bf16.mxu0 0
    %330 = vmatpush1.bf16.xpose.msra.mxu0 0
    %331 = vmatprep.subr.bf16.mxu0 0
    %332 = vmatpush1.bf16.xpose.msra.mxu0 0
    %333 = vmatprep.subr.bf16.mxu0 0
    %334 = vmatpush1.bf16.xpose.msra.mxu0 0
    %335 = vmatprep.subr.bf16.mxu0 0
    %336 = vmatpush1.bf16.xpose.msra.mxu0 0
    %337 = vmatprep.subr.bf16.mxu0 0
    %338 = vmatpush1.bf16.xpose.msra.mxu0 0
    %339 = vmatprep.subr.bf16.mxu0 0
    %340 = vmatpush1.bf16.xpose.msra.mxu0 0
    %341 = vmatprep.subr.bf16.mxu0 0
    %342 = vmatpush1.bf16.xpose.msra.mxu0 0
    %343 = vmatprep.subr.bf16.mxu0 0
    %344 = vmatpush1.bf16.xpose.msra.mxu0 0
    %345 = vmatprep.subr.bf16.mxu0 0
    %346 = vmatpush1.bf16.xpose.msra.mxu0 0
    %347 = vmatprep.subr.bf16.mxu0 0
    %348 = vmatpush1.bf16.xpose.msra.mxu0 0
    %349 = vmatprep.subr.bf16.mxu0 0
    %350 = vmatpush1.bf16.xpose.msra.mxu0 0
    %351 = vmatprep.subr.bf16.mxu0 0
    %352 = vmatpush1.bf16.xpose.msra.mxu0 0
    %353 = vmatprep.subr.bf16.mxu0 0
    %354 = vmatpush1.bf16.xpose.msra.mxu0 0
    %355 = vmatprep.mubr.bf16.mxu0 0
    %356 = vmatmul.mubr.bf16.gmra.mrb[0].mxu0 %v318
    %v357 = vpop.f32.mrb[0].mxu0
    %v358 = vadd.f32 0.0, %v357
    %v359 = vpop.f32.mrb[0].mxu0
    %v360 = vpop.f32.mrb[0].mxu0
    %v361 = vpop.f32.mrb[0].mxu0
    %362 = vdwg.mxu0
    %v363 = vunpack.c.l.b16 %v147
    %v364 = vpack.c.b16 %v363, %v363
    %365 = vrot.lane.b32.xlu0 %v364, 96
    %v366 = vpop.permute.xlu0 %365
    %v368 = vsel %vm172, %v147, 0
    %v371 = vsel %vm172, %v366, 0
    %373 = vmatprep.subr.bf16.mxu0 0
    %374 = vmatpush1.bf16.xpose.msra.mxu0 %v371
    %375 = vmatprep.subr.bf16.mxu0 0
    %376 = vmatpush1.bf16.xpose.msra.mxu0 0
    %377 = vmatprep.subr.bf16.mxu0 0
    %378 = vmatpush1.bf16.xpose.msra.mxu0 0
    %379 = vmatprep.subr.bf16.mxu0 0
    %380 = vmatpush1.bf16.xpose.msra.mxu0 0
    %381 = vmatprep.subr.bf16.mxu0 0
    %382 = vmatpush1.bf16.xpose.msra.mxu0 0
    %383 = vmatprep.subr.bf16.mxu0 0
    %384 = vmatpush1.bf16.xpose.msra.mxu0 0
    %385 = vmatprep.subr.bf16.mxu0 0
    %386 = vmatpush1.bf16.xpose.msra.mxu0 0
    %387 = vmatprep.subr.bf16.mxu0 0
    %388 = vmatpush1.bf16.xpose.msra.mxu0 0
    %389 = vmatprep.subr.bf16.mxu0 0
    %390 = vmatpush1.bf16.xpose.msra.mxu0 0
    %391 = vmatprep.subr.bf16.mxu0 0
    %392 = vmatpush1.bf16.xpose.msra.mxu0 0
    %393 = vmatprep.subr.bf16.mxu0 0
    %394 = vmatpush1.bf16.xpose.msra.mxu0 0
    %395 = vmatprep.subr.bf16.mxu0 0
    %396 = vmatpush1.bf16.xpose.msra.mxu0 0
    %397 = vmatprep.subr.bf16.mxu0 0
    %398 = vmatpush1.bf16.xpose.msra.mxu0 0
    %399 = vmatprep.subr.bf16.mxu0 0
    %400 = vmatpush1.bf16.xpose.msra.mxu0 0
    %401 = vmatprep.subr.bf16.mxu0 0
    %402 = vmatpush1.bf16.xpose.msra.mxu0 0
    %403 = vmatprep.subr.bf16.mxu0 0
    %404 = vmatpush1.bf16.xpose.msra.mxu0 0
    %405 = vmatprep.mubr.bf16.mxu0 0
    %406 = vmatmul.mubr.bf16.gmra.mrb[0].mxu0 %v368
    %v407 = vpop.f32.mrb[0].mxu0
    %v408 = vadd.f32 0.0, %v407
    %v409 = vpop.f32.mrb[0].mxu0
    %v410 = vpop.f32.mrb[0].mxu0
    %v411 = vpop.f32.mrb[0].mxu0
    %412 = vdwg.mxu0
    %v413 = vunpack.c.l.b16 %v149
    %v414 = vpack.c.b16 %v413, %v413
    %415 = vrot.lane.b32.xlu0 %v414, 96
    %v416 = vpop.permute.xlu0 %415
    %v418 = vsel %vm172, %v149, 0
    %v421 = vsel %vm172, %v416, 0
    %423 = vmatprep.subr.bf16.mxu0 0
    %424 = vmatpush1.bf16.xpose.msra.mxu0 %v421
    %425 = vmatprep.subr.bf16.mxu0 0
    %426 = vmatpush1.bf16.xpose.msra.mxu0 0
    %427 = vmatprep.subr.bf16.mxu0 0
    %428 = vmatpush1.bf16.xpose.msra.mxu0 0
    %429 = vmatprep.subr.bf16.mxu0 0
    %430 = vmatpush1.bf16.xpose.msra.mxu0 0
    %431 = vmatprep.subr.bf16.mxu0 0
    %432 = vmatpush1.bf16.xpose.msra.mxu0 0
    %433 = vmatprep.subr.bf16.mxu0 0
    %434 = vmatpush1.bf16.xpose.msra.mxu0 0
    %435 = vmatprep.subr.bf16.mxu0 0
    %436 = vmatpush1.bf16.xpose.msra.mxu0 0
    %437 = vmatprep.subr.bf16.mxu0 0
    %438 = vmatpush1.bf16.xpose.msra.mxu0 0
    %439 = vmatprep.subr.bf16.mxu0 0
    %440 = vmatpush1.bf16.xpose.msra.mxu0 0
    %441 = vmatprep.subr.bf16.mxu0 0
    %442 = vmatpush1.bf16.xpose.msra.mxu0 0
    %443 = vmatprep.subr.bf16.mxu0 0
    %444 = vmatpush1.bf16.xpose.msra.mxu0 0
    %445 = vmatprep.subr.bf16.mxu0 0
    %446 = vmatpush1.bf16.xpose.msra.mxu0 0
    %447 = vmatprep.subr.bf16.mxu0 0
    %448 = vmatpush1.bf16.xpose.msra.mxu0 0
    %449 = vmatprep.subr.bf16.mxu0 0
    %450 = vmatpush1.bf16.xpose.msra.mxu0 0
    %451 = vmatprep.subr.bf16.mxu0 0
    %452 = vmatpush1.bf16.xpose.msra.mxu0 0
    %453 = vmatprep.subr.bf16.mxu0 0
    %454 = vmatpush1.bf16.xpose.msra.mxu0 0
    %455 = vmatprep.mubr.bf16.mxu0 0
    %456 = vmatmul.mubr.bf16.gmra.mrb[0].mxu0 %v418
    %v457 = vpop.f32.mrb[0].mxu0
    %v458 = vadd.f32 0.0, %v457
    %v459 = vpop.f32.mrb[0].mxu0
    %v460 = vpop.f32.mrb[0].mxu0
    %v461 = vpop.f32.mrb[0].mxu0
    %462 = vdwg.mxu0
    %v463 = vunpack.c.l.b16 %v151
    %v464 = vpack.c.b16 %v463, %v463
    %465 = vrot.lane.b32.xlu0 %v464, 96
    %v466 = vpop.permute.xlu0 %465
    %v468 = vsel %vm172, %v151, 0
    %v471 = vsel %vm172, %v466, 0
    %473 = vmatprep.subr.bf16.mxu0 0
    %474 = vmatpush1.bf16.xpose.msra.mxu0 %v471
    %475 = vmatprep.subr.bf16.mxu0 0
    %476 = vmatpush1.bf16.xpose.msra.mxu0 0
    %477 = vmatprep.subr.bf16.mxu0 0
    %478 = vmatpush1.bf16.xpose.msra.mxu0 0
    %479 = vmatprep.subr.bf16.mxu0 0
    %480 = vmatpush1.bf16.xpose.msra.mxu0 0
    %481 = vmatprep.subr.bf16.mxu0 0
    %482 = vmatpush1.bf16.xpose.msra.mxu0 0
    %483 = vmatprep.subr.bf16.mxu0 0
    %484 = vmatpush1.bf16.xpose.msra.mxu0 0
    %485 = vmatprep.subr.bf16.mxu0 0
    %486 = vmatpush1.bf16.xpose.msra.mxu0 0
    %487 = vmatprep.subr.bf16.mxu0 0
    %488 = vmatpush1.bf16.xpose.msra.mxu0 0
    %489 = vmatprep.subr.bf16.mxu0 0
    %490 = vmatpush1.bf16.xpose.msra.mxu0 0
    %491 = vmatprep.subr.bf16.mxu0 0
    %492 = vmatpush1.bf16.xpose.msra.mxu0 0
    %493 = vmatprep.subr.bf16.mxu0 0
    %494 = vmatpush1.bf16.xpose.msra.mxu0 0
    %495 = vmatprep.subr.bf16.mxu0 0
    %496 = vmatpush1.bf16.xpose.msra.mxu0 0
    %497 = vmatprep.subr.bf16.mxu0 0
    %498 = vmatpush1.bf16.xpose.msra.mxu0 0
    %499 = vmatprep.subr.bf16.mxu0 0
    %500 = vmatpush1.bf16.xpose.msra.mxu0 0
    %501 = vmatprep.subr.bf16.mxu0 0
    %502 = vmatpush1.bf16.xpose.msra.mxu0 0
    %503 = vmatprep.subr.bf16.mxu0 0
    %504 = vmatpush1.bf16.xpose.msra.mxu0 0
    %505 = vmatprep.mubr.bf16.mxu0 0
    %506 = vmatmul.mubr.bf16.gmra.mrb[0].mxu0 %v468
    %v507 = vpop.f32.mrb[0].mxu0
    %v508 = vadd.f32 0.0, %v507
    %v509 = vpop.f32.mrb[0].mxu0
    %v510 = vpop.f32.mrb[0].mxu0
    %v511 = vpop.f32.mrb[0].mxu0
    %512 = vdwg.mxu0
    %v513 = vunpack.c.l.b16 %v153
    %v514 = vpack.c.b16 %v513, %v513
    %515 = vrot.lane.b32.xlu0 %v514, 96
    %v516 = vpop.permute.xlu0 %515
    %v518 = vsel %vm172, %v153, 0
    %v521 = vsel %vm172, %v516, 0
    %523 = vmatprep.subr.bf16.mxu0 0
    %524 = vmatpush1.bf16.xpose.msra.mxu0 %v521
    %525 = vmatprep.subr.bf16.mxu0 0
    %526 = vmatpush1.bf16.xpose.msra.mxu0 0
    %527 = vmatprep.subr.bf16.mxu0 0
    %528 = vmatpush1.bf16.xpose.msra.mxu0 0
    %529 = vmatprep.subr.bf16.mxu0 0
    %530 = vmatpush1.bf16.xpose.msra.mxu0 0
    %531 = vmatprep.subr.bf16.mxu0 0
    %532 = vmatpush1.bf16.xpose.msra.mxu0 0
    %533 = vmatprep.subr.bf16.mxu0 0
    %534 = vmatpush1.bf16.xpose.msra.mxu0 0
    %535 = vmatprep.subr.bf16.mxu0 0
    %536 = vmatpush1.bf16.xpose.msra.mxu0 0
    %537 = vmatprep.subr.bf16.mxu0 0
    %538 = vmatpush1.bf16.xpose.msra.mxu0 0
    %539 = vmatprep.subr.bf16.mxu0 0
    %540 = vmatpush1.bf16.xpose.msra.mxu0 0
    %541 = vmatprep.subr.bf16.mxu0 0
    %542 = vmatpush1.bf16.xpose.msra.mxu0 0
    %543 = vmatprep.subr.bf16.mxu0 0
    %544 = vmatpush1.bf16.xpose.msra.mxu0 0
    %545 = vmatprep.subr.bf16.mxu0 0
    %546 = vmatpush1.bf16.xpose.msra.mxu0 0
    %547 = vmatprep.subr.bf16.mxu0 0
    %548 = vmatpush1.bf16.xpose.msra.mxu0 0
    %549 = vmatprep.subr.bf16.mxu0 0
    %550 = vmatpush1.bf16.xpose.msra.mxu0 0
    %551 = vmatprep.subr.bf16.mxu0 0
    %552 = vmatpush1.bf16.xpose.msra.mxu0 0
    %553 = vmatprep.subr.bf16.mxu0 0
    %554 = vmatpush1.bf16.xpose.msra.mxu0 0
    %555 = vmatprep.mubr.bf16.mxu0 0
    %556 = vmatmul.mubr.bf16.gmra.mrb[0].mxu0 %v518
    %v557 = vpop.f32.mrb[0].mxu0
    %v558 = vadd.f32 0.0, %v557
    %v559 = vpop.f32.mrb[0].mxu0
    %v560 = vpop.f32.mrb[0].mxu0
    %v561 = vpop.f32.mrb[0].mxu0
    %562 = vdwg.mxu0
    %v563 = vunpack.c.l.b16 %v155
    %v564 = vpack.c.b16 %v563, %v563
    %565 = vrot.lane.b32.xlu0 %v564, 96
    %v566 = vpop.permute.xlu0 %565
    %v568 = vsel %vm172, %v155, 0
    %v571 = vsel %vm172, %v566, 0
    %573 = vmatprep.subr.bf16.mxu0 0
    %574 = vmatpush1.bf16.xpose.msra.mxu0 %v571
    %575 = vmatprep.subr.bf16.mxu0 0
    %576 = vmatpush1.bf16.xpose.msra.mxu0 0
    %577 = vmatprep.subr.bf16.mxu0 0
    %578 = vmatpush1.bf16.xpose.msra.mxu0 0
    %579 = vmatprep.subr.bf16.mxu0 0
    %580 = vmatpush1.bf16.xpose.msra.mxu0 0
    %581 = vmatprep.subr.bf16.mxu0 0
    %582 = vmatpush1.bf16.xpose.msra.mxu0 0
    %583 = vmatprep.subr.bf16.mxu0 0
    %584 = vmatpush1.bf16.xpose.msra.mxu0 0
    %585 = vmatprep.subr.bf16.mxu0 0
    %586 = vmatpush1.bf16.xpose.msra.mxu0 0
    %587 = vmatprep.subr.bf16.mxu0 0
    %588 = vmatpush1.bf16.xpose.msra.mxu0 0
    %589 = vmatprep.subr.bf16.mxu0 0
    %590 = vmatpush1.bf16.xpose.msra.mxu0 0
    %591 = vmatprep.subr.bf16.mxu0 0
    %592 = vmatpush1.bf16.xpose.msra.mxu0 0
    %593 = vmatprep.subr.bf16.mxu0 0
    %594 = vmatpush1.bf16.xpose.msra.mxu0 0
    %595 = vmatprep.subr.bf16.mxu0 0
    %596 = vmatpush1.bf16.xpose.msra.mxu0 0
    %597 = vmatprep.subr.bf16.mxu0 0
    %598 = vmatpush1.bf16.xpose.msra.mxu0 0
    %599 = vmatprep.subr.bf16.mxu0 0
    %600 = vmatpush1.bf16.xpose.msra.mxu0 0
    %601 = vmatprep.subr.bf16.mxu0 0
    %602 = vmatpush1.bf16.xpose.msra.mxu0 0
    %603 = vmatprep.subr.bf16.mxu0 0
    %604 = vmatpush1.bf16.xpose.msra.mxu0 0
    %605 = vmatprep.mubr.bf16.mxu0 0
    %606 = vmatmul.mubr.bf16.gmra.mrb[0].mxu0 %v568
    %v607 = vpop.f32.mrb[0].mxu0
    %v608 = vadd.f32 0.0, %v607
    %v609 = vpop.f32.mrb[0].mxu0
    %v610 = vpop.f32.mrb[0].mxu0
    %v611 = vpop.f32.mrb[0].mxu0
    %612 = vdwg.mxu0
    %v613 = vunpack.c.l.b16 %v157
    %v614 = vpack.c.b16 %v613, %v613
    %615 = vrot.lane.b32.xlu0 %v614, 96
    %v616 = vpop.permute.xlu0 %615
    %v618 = vsel %vm172, %v157, 0
    %v621 = vsel %vm172, %v616, 0
    %623 = vmatprep.subr.bf16.mxu0 0
    %624 = vmatpush1.bf16.xpose.msra.mxu0 %v621
    %625 = vmatprep.subr.bf16.mxu0 0
    %626 = vmatpush1.bf16.xpose.msra.mxu0 0
    %627 = vmatprep.subr.bf16.mxu0 0
    %628 = vmatpush1.bf16.xpose.msra.mxu0 0
    %629 = vmatprep.subr.bf16.mxu0 0
    %630 = vmatpush1.bf16.xpose.msra.mxu0 0
    %631 = vmatprep.subr.bf16.mxu0 0
    %632 = vmatpush1.bf16.xpose.msra.mxu0 0
    %633 = vmatprep.subr.bf16.mxu0 0
    %634 = vmatpush1.bf16.xpose.msra.mxu0 0
    %635 = vmatprep.subr.bf16.mxu0 0
    %636 = vmatpush1.bf16.xpose.msra.mxu0 0
    %637 = vmatprep.subr.bf16.mxu0 0
    %638 = vmatpush1.bf16.xpose.msra.mxu0 0
    %639 = vmatprep.subr.bf16.mxu0 0
    %640 = vmatpush1.bf16.xpose.msra.mxu0 0
    %641 = vmatprep.subr.bf16.mxu0 0
    %642 = vmatpush1.bf16.xpose.msra.mxu0 0
    %643 = vmatprep.subr.bf16.mxu0 0
    %644 = vmatpush1.bf16.xpose.msra.mxu0 0
    %645 = vmatprep.subr.bf16.mxu0 0
    %646 = vmatpush1.bf16.xpose.msra.mxu0 0
    %647 = vmatprep.subr.bf16.mxu0 0
    %648 = vmatpush1.bf16.xpose.msra.mxu0 0
    %649 = vmatprep.subr.bf16.mxu0 0
    %650 = vmatpush1.bf16.xpose.msra.mxu0 0
    %651 = vmatprep.subr.bf16.mxu0 0
    %652 = vmatpush1.bf16.xpose.msra.mxu0 0
    %653 = vmatprep.subr.bf16.mxu0 0
    %654 = vmatpush1.bf16.xpose.msra.mxu0 0
    %655 = vmatprep.mubr.bf16.mxu0 0
    %656 = vmatmul.mubr.bf16.gmra.mrb[0].mxu0 %v618
    %v657 = vpop.f32.mrb[0].mxu0
    %v658 = vadd.f32 0.0, %v657
    %v659 = vpop.f32.mrb[0].mxu0
    %v660 = vpop.f32.mrb[0].mxu0
    %v661 = vpop.f32.mrb[0].mxu0
    %662 = vdwg.mxu0
    %v663 = vunpack.c.l.b16 %v159
    %v664 = vpack.c.b16 %v663, %v663
    %665 = vrot.lane.b32.xlu0 %v664, 96
    %v666 = vpop.permute.xlu0 %665
    %v668 = vsel %vm172, %v159, 0
    %v671 = vsel %vm172, %v666, 0
    %673 = vmatprep.subr.bf16.mxu0 0
    %674 = vmatpush1.bf16.xpose.msra.mxu0 %v671
    %675 = vmatprep.subr.bf16.mxu0 0
    %676 = vmatpush1.bf16.xpose.msra.mxu0 0
    %677 = vmatprep.subr.bf16.mxu0 0
    %678 = vmatpush1.bf16.xpose.msra.mxu0 0
    %679 = vmatprep.subr.bf16.mxu0 0
    %680 = vmatpush1.bf16.xpose.msra.mxu0 0
    %681 = vmatprep.subr.bf16.mxu0 0
    %682 = vmatpush1.bf16.xpose.msra.mxu0 0
    %683 = vmatprep.subr.bf16.mxu0 0
    %684 = vmatpush1.bf16.xpose.msra.mxu0 0
    %685 = vmatprep.subr.bf16.mxu0 0
    %686 = vmatpush1.bf16.xpose.msra.mxu0 0
    %687 = vmatprep.subr.bf16.mxu0 0
    %688 = vmatpush1.bf16.xpose.msra.mxu0 0
    %689 = vmatprep.subr.bf16.mxu0 0
    %690 = vmatpush1.bf16.xpose.msra.mxu0 0
    %691 = vmatprep.subr.bf16.mxu0 0
    %692 = vmatpush1.bf16.xpose.msra.mxu0 0
    %693 = vmatprep.subr.bf16.mxu0 0
    %694 = vmatpush1.bf16.xpose.msra.mxu0 0
    %695 = vmatprep.subr.bf16.mxu0 0
    %696 = vmatpush1.bf16.xpose.msra.mxu0 0
    %697 = vmatprep.subr.bf16.mxu0 0
    %698 = vmatpush1.bf16.xpose.msra.mxu0 0
    %699 = vmatprep.subr.bf16.mxu0 0
    %700 = vmatpush1.bf16.xpose.msra.mxu0 0
    %701 = vmatprep.subr.bf16.mxu0 0
    %702 = vmatpush1.bf16.xpose.msra.mxu0 0
    %703 = vmatprep.subr.bf16.mxu0 0
    %704 = vmatpush1.bf16.xpose.msra.mxu0 0
    %705 = vmatprep.mubr.bf16.mxu0 0
    %706 = vmatmul.mubr.bf16.gmra.mrb[0].mxu0 %v668
    %v707 = vpop.f32.mrb[0].mxu0
    %v708 = vadd.f32 0.0, %v707
    %v709 = vpop.f32.mrb[0].mxu0
    %v710 = vpop.f32.mrb[0].mxu0
    %v711 = vpop.f32.mrb[0].mxu0
    %712 = vdwg.mxu0
    %v713 = vunpack.c.l.b16 %v161
    %v714 = vpack.c.b16 %v713, %v713
    %715 = vrot.lane.b32.xlu0 %v714, 96
    %v716 = vpop.permute.xlu0 %715
    %v718 = vsel %vm172, %v161, 0
    %v721 = vsel %vm172, %v716, 0
    %723 = vmatprep.subr.bf16.mxu0 0
    %724 = vmatpush1.bf16.xpose.msra.mxu0 %v721
    %725 = vmatprep.subr.bf16.mxu0 0
    %726 = vmatpush1.bf16.xpose.msra.mxu0 0
    %727 = vmatprep.subr.bf16.mxu0 0
    %728 = vmatpush1.bf16.xpose.msra.mxu0 0
    %729 = vmatprep.subr.bf16.mxu0 0
    %730 = vmatpush1.bf16.xpose.msra.mxu0 0
    %731 = vmatprep.subr.bf16.mxu0 0
    %732 = vmatpush1.bf16.xpose.msra.mxu0 0
    %733 = vmatprep.subr.bf16.mxu0 0
    %734 = vmatpush1.bf16.xpose.msra.mxu0 0
    %735 = vmatprep.subr.bf16.mxu0 0
    %736 = vmatpush1.bf16.xpose.msra.mxu0 0
    %737 = vmatprep.subr.bf16.mxu0 0
    %738 = vmatpush1.bf16.xpose.msra.mxu0 0
    %739 = vmatprep.subr.bf16.mxu0 0
    %740 = vmatpush1.bf16.xpose.msra.mxu0 0
    %741 = vmatprep.subr.bf16.mxu0 0
    %742 = vmatpush1.bf16.xpose.msra.mxu0 0
    %743 = vmatprep.subr.bf16.mxu0 0
    %744 = vmatpush1.bf16.xpose.msra.mxu0 0
    %745 = vmatprep.subr.bf16.mxu0 0
    %746 = vmatpush1.bf16.xpose.msra.mxu0 0
    %747 = vmatprep.subr.bf16.mxu0 0
    %748 = vmatpush1.bf16.xpose.msra.mxu0 0
    %749 = vmatprep.subr.bf16.mxu0 0
    %750 = vmatpush1.bf16.xpose.msra.mxu0 0
    %751 = vmatprep.subr.bf16.mxu0 0
    %752 = vmatpush1.bf16.xpose.msra.mxu0 0
    %753 = vmatprep.subr.bf16.mxu0 0
    %754 = vmatpush1.bf16.xpose.msra.mxu0 0
    %755 = vmatprep.mubr.bf16.mxu0 0
    %756 = vmatmul.mubr.bf16.gmra.mrb[0].mxu0 %v718
    %v757 = vpop.f32.mrb[0].mxu0
    %v758 = vadd.f32 0.0, %v757
    %v759 = vpop.f32.mrb[0].mxu0
    %v760 = vpop.f32.mrb[0].mxu0
    %v761 = vpop.f32.mrb[0].mxu0
    %762 = vdwg.mxu0
    %v763 = vunpack.c.l.b16 %v163
    %v764 = vpack.c.b16 %v763, %v763
    %765 = vrot.lane.b32.xlu0 %v764, 96
    %v766 = vpop.permute.xlu0 %765
    %v768 = vsel %vm172, %v163, 0
    %v771 = vsel %vm172, %v766, 0
    %773 = vmatprep.subr.bf16.mxu0 0
    %774 = vmatpush1.bf16.xpose.msra.mxu0 %v771
    %775 = vmatprep.subr.bf16.mxu0 0
    %776 = vmatpush1.bf16.xpose.msra.mxu0 0
    %777 = vmatprep.subr.bf16.mxu0 0
    %778 = vmatpush1.bf16.xpose.msra.mxu0 0
    %779 = vmatprep.subr.bf16.mxu0 0
    %780 = vmatpush1.bf16.xpose.msra.mxu0 0
    %781 = vmatprep.subr.bf16.mxu0 0
    %782 = vmatpush1.bf16.xpose.msra.mxu0 0
    %783 = vmatprep.subr.bf16.mxu0 0
    %784 = vmatpush1.bf16.xpose.msra.mxu0 0
    %785 = vmatprep.subr.bf16.mxu0 0
    %786 = vmatpush1.bf16.xpose.msra.mxu0 0
    %787 = vmatprep.subr.bf16.mxu0 0
    %788 = vmatpush1.bf16.xpose.msra.mxu0 0
    %789 = vmatprep.subr.bf16.mxu0 0
    %790 = vmatpush1.bf16.xpose.msra.mxu0 0
    %791 = vmatprep.subr.bf16.mxu0 0
    %792 = vmatpush1.bf16.xpose.msra.mxu0 0
    %793 = vmatprep.subr.bf16.mxu0 0
    %794 = vmatpush1.bf16.xpose.msra.mxu0 0
    %795 = vmatprep.subr.bf16.mxu0 0
    %796 = vmatpush1.bf16.xpose.msra.mxu0 0
    %797 = vmatprep.subr.bf16.mxu0 0
    %798 = vmatpush1.bf16.xpose.msra.mxu0 0
    %799 = vmatprep.subr.bf16.mxu0 0
    %800 = vmatpush1.bf16.xpose.msra.mxu0 0
    %801 = vmatprep.subr.bf16.mxu0 0
    %802 = vmatpush1.bf16.xpose.msra.mxu0 0
    %803 = vmatprep.subr.bf16.mxu0 0
    %804 = vmatpush1.bf16.xpose.msra.mxu0 0
    %805 = vmatprep.mubr.bf16.mxu0 0
    %806 = vmatmul.mubr.bf16.gmra.mrb[0].mxu0 %v768
    %v807 = vpop.f32.mrb[0].mxu0
    %v808 = vadd.f32 0.0, %v807
    %v809 = vpop.f32.mrb[0].mxu0
    %v810 = vpop.f32.mrb[0].mxu0
    %v811 = vpop.f32.mrb[0].mxu0
    %812 = vdwg.mxu0
    %v813 = vunpack.c.l.b16 %v165
    %v814 = vpack.c.b16 %v813, %v813
    %815 = vrot.lane.b32.xlu0 %v814, 96
    %v816 = vpop.permute.xlu0 %815
    %v818 = vsel %vm172, %v165, 0
    %v821 = vsel %vm172, %v816, 0
    %823 = vmatprep.subr.bf16.mxu0 0
    %824 = vmatpush1.bf16.xpose.msra.mxu0 %v821
    %825 = vmatprep.subr.bf16.mxu0 0
    %826 = vmatpush1.bf16.xpose.msra.mxu0 0
    %827 = vmatprep.subr.bf16.mxu0 0
    %828 = vmatpush1.bf16.xpose.msra.mxu0 0
    %829 = vmatprep.subr.bf16.mxu0 0
    %830 = vmatpush1.bf16.xpose.msra.mxu0 0
    %831 = vmatprep.subr.bf16.mxu0 0
    %832 = vmatpush1.bf16.xpose.msra.mxu0 0
    %833 = vmatprep.subr.bf16.mxu0 0
    %834 = vmatpush1.bf16.xpose.msra.mxu0 0
    %835 = vmatprep.subr.bf16.mxu0 0
    %836 = vmatpush1.bf16.xpose.msra.mxu0 0
    %837 = vmatprep.subr.bf16.mxu0 0
    %838 = vmatpush1.bf16.xpose.msra.mxu0 0
    %839 = vmatprep.subr.bf16.mxu0 0
    %840 = vmatpush1.bf16.xpose.msra.mxu0 0
    %841 = vmatprep.subr.bf16.mxu0 0
    %842 = vmatpush1.bf16.xpose.msra.mxu0 0
    %843 = vmatprep.subr.bf16.mxu0 0
    %844 = vmatpush1.bf16.xpose.msra.mxu0 0
    %845 = vmatprep.subr.bf16.mxu0 0
    %846 = vmatpush1.bf16.xpose.msra.mxu0 0
    %847 = vmatprep.subr.bf16.mxu0 0
    %848 = vmatpush1.bf16.xpose.msra.mxu0 0
    %849 = vmatprep.subr.bf16.mxu0 0
    %850 = vmatpush1.bf16.xpose.msra.mxu0 0
    %851 = vmatprep.subr.bf16.mxu0 0
    %852 = vmatpush1.bf16.xpose.msra.mxu0 0
    %853 = vmatprep.subr.bf16.mxu0 0
    %854 = vmatpush1.bf16.xpose.msra.mxu0 0
    %855 = vmatprep.mubr.bf16.mxu0 0
    %856 = vmatmul.mubr.bf16.gmra.mrb[0].mxu0 %v818
    %v857 = vpop.f32.mrb[0].mxu0
    %v858 = vadd.f32 0.0, %v857
    %v859 = vpop.f32.mrb[0].mxu0
    %v860 = vpop.f32.mrb[0].mxu0
    %v861 = vpop.f32.mrb[0].mxu0
    %862 = vdwg.mxu0
    %v863 = vunpack.c.l.b16 %v167
    %v864 = vpack.c.b16 %v863, %v863
    %865 = vrot.lane.b32.xlu0 %v864, 96
    %v866 = vpop.permute.xlu0 %865
    %v868 = vsel %vm172, %v167, 0
    %v871 = vsel %vm172, %v866, 0
    %873 = vmatprep.subr.bf16.mxu0 0
    %874 = vmatpush1.bf16.xpose.msra.mxu0 %v871
    %875 = vmatprep.subr.bf16.mxu0 0
    %876 = vmatpush1.bf16.xpose.msra.mxu0 0
    %877 = vmatprep.subr.bf16.mxu0 0
    %878 = vmatpush1.bf16.xpose.msra.mxu0 0
    %879 = vmatprep.subr.bf16.mxu0 0
    %880 = vmatpush1.bf16.xpose.msra.mxu0 0
    %881 = vmatprep.subr.bf16.mxu0 0
    %882 = vmatpush1.bf16.xpose.msra.mxu0 0
    %883 = vmatprep.subr.bf16.mxu0 0
    %884 = vmatpush1.bf16.xpose.msra.mxu0 0
    %885 = vmatprep.subr.bf16.mxu0 0
    %886 = vmatpush1.bf16.xpose.msra.mxu0 0
    %887 = vmatprep.subr.bf16.mxu0 0
    %888 = vmatpush1.bf16.xpose.msra.mxu0 0
    %889 = vmatprep.subr.bf16.mxu0 0
    %890 = vmatpush1.bf16.xpose.msra.mxu0 0
    %891 = vmatprep.subr.bf16.mxu0 0
    %892 = vmatpush1.bf16.xpose.msra.mxu0 0
    %893 = vmatprep.subr.bf16.mxu0 0
    %894 = vmatpush1.bf16.xpose.msra.mxu0 0
    %895 = vmatprep.subr.bf16.mxu0 0
    %896 = vmatpush1.bf16.xpose.msra.mxu0 0
    %897 = vmatprep.subr.bf16.mxu0 0
    %898 = vmatpush1.bf16.xpose.msra.mxu0 0
    %899 = vmatprep.subr.bf16.mxu0 0
    %900 = vmatpush1.bf16.xpose.msra.mxu0 0
    %901 = vmatprep.subr.bf16.mxu0 0
    %902 = vmatpush1.bf16.xpose.msra.mxu0 0
    %903 = vmatprep.subr.bf16.mxu0 0
    %904 = vmatpush1.bf16.xpose.msra.mxu0 0
    %905 = vmatprep.mubr.bf16.mxu0 0
    %906 = vmatmul.mubr.bf16.gmra.mrb[0].mxu0 %v868
    %v907 = vpop.f32.mrb[0].mxu0
    %v908 = vadd.f32 0.0, %v907
    %v909 = vpop.f32.mrb[0].mxu0
    %v910 = vpop.f32.mrb[0].mxu0
    %v911 = vpop.f32.mrb[0].mxu0
    %912 = vdwg.mxu0
    %v913 = vunpack.c.l.b16 %v169
    %v914 = vpack.c.b16 %v913, %v913
    %915 = vrot.lane.b32.xlu0 %v914, 96
    %v916 = vpop.permute.xlu0 %915
    %v918 = vsel %vm172, %v169, 0
    %v921 = vsel %vm172, %v916, 0
    %923 = vmatprep.subr.bf16.mxu0 0
    %924 = vmatpush1.bf16.xpose.msra.mxu0 %v921
    %925 = vmatprep.subr.bf16.mxu0 0
    %926 = vmatpush1.bf16.xpose.msra.mxu0 0
    %927 = vmatprep.subr.bf16.mxu0 0
    %928 = vmatpush1.bf16.xpose.msra.mxu0 0
    %929 = vmatprep.subr.bf16.mxu0 0
    %930 = vmatpush1.bf16.xpose.msra.mxu0 0
    %931 = vmatprep.subr.bf16.mxu0 0
    %932 = vmatpush1.bf16.xpose.msra.mxu0 0
    %933 = vmatprep.subr.bf16.mxu0 0
    %934 = vmatpush1.bf16.xpose.msra.mxu0 0
    %935 = vmatprep.subr.bf16.mxu0 0
    %936 = vmatpush1.bf16.xpose.msra.mxu0 0
    %937 = vmatprep.subr.bf16.mxu0 0
    %938 = vmatpush1.bf16.xpose.msra.mxu0 0
    %939 = vmatprep.subr.bf16.mxu0 0
    %940 = vmatpush1.bf16.xpose.msra.mxu0 0
    %941 = vmatprep.subr.bf16.mxu0 0
    %942 = vmatpush1.bf16.xpose.msra.mxu0 0
    %943 = vmatprep.subr.bf16.mxu0 0
    %944 = vmatpush1.bf16.xpose.msra.mxu0 0
    %945 = vmatprep.subr.bf16.mxu0 0
    %946 = vmatpush1.bf16.xpose.msra.mxu0 0
    %947 = vmatprep.subr.bf16.mxu0 0
    %948 = vmatpush1.bf16.xpose.msra.mxu0 0
    %949 = vmatprep.subr.bf16.mxu0 0
    %950 = vmatpush1.bf16.xpose.msra.mxu0 0
    %951 = vmatprep.subr.bf16.mxu0 0
    %952 = vmatpush1.bf16.xpose.msra.mxu0 0
    %953 = vmatprep.subr.bf16.mxu0 0
    %954 = vmatpush1.bf16.xpose.msra.mxu0 0
    %955 = vmatprep.mubr.bf16.mxu0 0
    %956 = vmatmul.mubr.bf16.gmra.mrb[0].mxu0 %v918
    %v957 = vpop.f32.mrb[0].mxu0
    %v958 = vadd.f32 0.0, %v957
    %v959 = vpop.f32.mrb[0].mxu0
    %v960 = vpop.f32.mrb[0].mxu0
    %v961 = vpop.f32.mrb[0].mxu0
    %962 = vdwg.mxu0
    %v963 = vmul.f32 %v214, 0.35355338
    %v964 = vmul.f32 %v262, 0.35355338
    %v965 = vmul.f32 %v310, 0.35355338
    %v966 = vmul.f32 %v358, 0.35355338
    %v967 = vmul.f32 %v408, 0.35355338
    %v968 = vmul.f32 %v458, 0.35355338
    %v969 = vmul.f32 %v508, 0.35355338
    %v970 = vmul.f32 %v558, 0.35355338
    %v971 = vmul.f32 %v608, 0.35355338
    %v972 = vmul.f32 %v658, 0.35355338
    %v973 = vmul.f32 %v708, 0.35355338
    %v974 = vmul.f32 %v758, 0.35355338
    %v975 = vmul.f32 %v808, 0.35355338
    %v976 = vmul.f32 %v858, 0.35355338
    %v977 = vmul.f32 %v908, 0.35355338
    %v978 = vmul.f32 %v958, 0.35355338
    %v979 = vld [vmem:[%s0] sm:$0xff]
    %v980 = vld [vmem:[%s0 + $0x8] sm:$0xff]
    %v981 = vld [vmem:[%s0 + $0x10] sm:$0xff]
    %v982 = vld [vmem:[%s0 + $0x18] sm:$0xff]
    %vm983 = vcmp.gt.f32.partialorder %v979, 0.0
    %vm984 = vcmp.gt.f32.partialorder %v980, 0.0
    %vm985 = vcmp.gt.f32.partialorder %v981, 0.0
    %vm986 = vcmp.gt.f32.partialorder %v982, 0.0
    %v987 = vsel %vm983, 1, 0
    %v988 = vsel %vm984, 1, 0
    %v989 = vsel %vm985, 1, 0
    %v990 = vsel %vm986, 1, 0
    %vm991 = vcmp.eq.s32.totalorder %v987, 1
    %vm992 = vcmp.eq.s32.totalorder %v988, 1
    %vm993 = vcmp.eq.s32.totalorder %v989, 1
    %vm994 = vcmp.eq.s32.totalorder %v990, 1
    %v995 = vsel %vm991, -1e+09, %v963
    %v996 = vsel %vm992, -1e+09, %v964
    %v997 = vsel %vm993, -1e+09, %v965
    %v998 = vsel %vm994, -1e+09, %v966
    %v999 = vsel %vm991, -1e+09, %v967
    %v1000 = vsel %vm992, -1e+09, %v968
    %v1001 = vsel %vm993, -1e+09, %v969
    %v1002 = vsel %vm994, -1e+09, %v970
    %v1003 = vsel %vm991, -1e+09, %v971
    %v1004 = vsel %vm992, -1e+09, %v972
    %v1005 = vsel %vm993, -1e+09, %v973
    %v1006 = vsel %vm994, -1e+09, %v974
    %v1007 = vsel %vm991, -1e+09, %v975
    %v1008 = vsel %vm992, -1e+09, %v976
    %v1009 = vsel %vm993, -1e+09, %v977
    %v1010 = vsel %vm994, -1e+09, %v978
    %v1011 = vsel %vm172, %v995, -inf
    %1012 = vmax.xlane.f32.xlu0 %v1011
    %v1013 = vpop.xlane.xlu0 %1012
    %v1014 = vsel %vm172, %v996, -inf
    %1015 = vmax.xlane.f32.xlu0 %v1014
    %v1016 = vpop.xlane.xlu0 %1015
    %v1017 = vsel %vm172, %v997, -inf
    %1018 = vmax.xlane.f32.xlu0 %v1017
    %v1019 = vpop.xlane.xlu0 %1018
    %v1020 = vsel %vm172, %v998, -inf
    %1021 = vmax.xlane.f32.xlu0 %v1020
    %v1022 = vpop.xlane.xlu0 %1021
    %v1023 = vsel %vm172, %v999, -inf
    %1024 = vmax.xlane.f32.xlu0 %v1023
    %v1025 = vpop.xlane.xlu0 %1024
    %v1026 = vsel %vm172, %v1000, -inf
    %1027 = vmax.xlane.f32.xlu0 %v1026
    %v1028 = vpop.xlane.xlu0 %1027
    %v1029 = vsel %vm172, %v1001, -inf
    %1030 = vmax.xlane.f32.xlu0 %v1029
    %v1031 = vpop.xlane.xlu0 %1030
    %v1032 = vsel %vm172, %v1002, -inf
    %1033 = vmax.xlane.f32.xlu0 %v1032
    %v1034 = vpop.xlane.xlu0 %1033
    %v1035 = vsel %vm172, %v1003, -inf
    %1036 = vmax.xlane.f32.xlu0 %v1035
    %v1037 = vpop.xlane.xlu0 %1036
    %v1038 = vsel %vm172, %v1004, -inf
    %1039 = vmax.xlane.f32.xlu0 %v1038
    %v1040 = vpop.xlane.xlu0 %1039
    %v1041 = vsel %vm172, %v1005, -inf
    %1042 = vmax.xlane.f32.xlu0 %v1041
    %v1043 = vpop.xlane.xlu0 %1042
    %v1044 = vsel %vm172, %v1006, -inf
    %1045 = vmax.xlane.f32.xlu0 %v1044
    %v1046 = vpop.xlane.xlu0 %1045
    %v1047 = vsel %vm172, %v1007, -inf
    %1048 = vmax.xlane.f32.xlu0 %v1047
    %v1049 = vpop.xlane.xlu0 %1048
    %v1050 = vsel %vm172, %v1008, -inf
    %1051 = vmax.xlane.f32.xlu0 %v1050
    %v1052 = vpop.xlane.xlu0 %1051
    %v1053 = vsel %vm172, %v1009, -inf
    %1054 = vmax.xlane.f32.xlu0 %v1053
    %v1055 = vpop.xlane.xlu0 %1054
    %v1056 = vsel %vm172, %v1010, -inf
    %1057 = vmax.xlane.f32.xlu0 %v1056
    %v1058 = vpop.xlane.xlu0 %1057
    %v1059 = vsub.f32 %v995, %v1013
    %v1060 = vsub.f32 %v996, %v1016
    %v1061 = vsub.f32 %v997, %v1019
    %v1062 = vsub.f32 %v998, %v1022
    %v1063 = vsub.f32 %v999, %v1025
    %v1064 = vsub.f32 %v1000, %v1028
    %v1065 = vsub.f32 %v1001, %v1031
    %v1066 = vsub.f32 %v1002, %v1034
    %v1067 = vsub.f32 %v1003, %v1037
    %v1068 = vsub.f32 %v1004, %v1040
    %v1069 = vsub.f32 %v1005, %v1043
    %v1070 = vsub.f32 %v1006, %v1046
    %v1071 = vsub.f32 %v1007, %v1049
    %v1072 = vsub.f32 %v1008, %v1052
    %v1073 = vsub.f32 %v1009, %v1055
    %v1074 = vsub.f32 %v1010, %v1058
    %v1075 = vmul.f32 %v1059, 1.442695
    %v1076 = vpow.pop %v1075
    %v1077 = vmul.f32 %v1060, 1.442695
    %v1078 = vpow.pop %v1077
    %v1079 = vmul.f32 %v1061, 1.442695
    %v1080 = vpow.pop %v1079
    %v1081 = vmul.f32 %v1062, 1.442695
    %v1082 = vpow.pop %v1081
    %v1083 = vmul.f32 %v1063, 1.442695
    %v1084 = vpow.pop %v1083
    %v1085 = vmul.f32 %v1064, 1.442695
    %v1086 = vpow.pop %v1085
    %v1087 = vmul.f32 %v1065, 1.442695
    %v1088 = vpow.pop %v1087
    %v1089 = vmul.f32 %v1066, 1.442695
    %v1090 = vpow.pop %v1089
    %v1091 = vmul.f32 %v1067, 1.442695
    %v1092 = vpow.pop %v1091
    %v1093 = vmul.f32 %v1068, 1.442695
    %v1094 = vpow.pop %v1093
    %v1095 = vmul.f32 %v1069, 1.442695
    %v1096 = vpow.pop %v1095
    %v1097 = vmul.f32 %v1070, 1.442695
    %v1098 = vpow.pop %v1097
    %v1099 = vmul.f32 %v1071, 1.442695
    %v1100 = vpow.pop %v1099
    %v1101 = vmul.f32 %v1072, 1.442695
    %v1102 = vpow.pop %v1101
    %v1103 = vmul.f32 %v1073, 1.442695
    %v1104 = vpow.pop %v1103
    %v1105 = vmul.f32 %v1074, 1.442695
    %v1106 = vpow.pop %v1105
    %v1107 = vsel %vm172, %v1076, 0.0
    %1108 = vadd.xlane.f32.xlu0 %v1107
    %v1109 = vpop.xlane.xlu0 %1108
    %v1110 = vsel %vm172, %v1078, 0.0
    %1111 = vadd.xlane.f32.xlu0 %v1110
    %v1112 = vpop.xlane.xlu0 %1111
    %v1113 = vsel %vm172, %v1080, 0.0
    %1114 = vadd.xlane.f32.xlu0 %v1113
    %v1115 = vpop.xlane.xlu0 %1114
    %v1116 = vsel %vm172, %v1082, 0.0
    %1117 = vadd.xlane.f32.xlu0 %v1116
    %v1118 = vpop.xlane.xlu0 %1117
    %v1119 = vsel %vm172, %v1084, 0.0
    %1120 = vadd.xlane.f32.xlu0 %v1119
    %v1121 = vpop.xlane.xlu0 %1120
    %v1122 = vsel %vm172, %v1086, 0.0
    %1123 = vadd.xlane.f32.xlu0 %v1122
    %v1124 = vpop.xlane.xlu0 %1123
    %v1125 = vsel %vm172, %v1088, 0.0
    %1126 = vadd.xlane.f32.xlu0 %v1125
    %v1127 = vpop.xlane.xlu0 %1126
    %v1128 = vsel %vm172, %v1090, 0.0
    %1129 = vadd.xlane.f32.xlu0 %v1128
    %v1130 = vpop.xlane.xlu0 %1129
    %v1131 = vsel %vm172, %v1092, 0.0
    %1132 = vadd.xlane.f32.xlu0 %v1131
    %v1133 = vpop.xlane.xlu0 %1132
    %v1134 = vsel %vm172, %v1094, 0.0
    %1135 = vadd.xlane.f32.xlu0 %v1134
    %v1136 = vpop.xlane.xlu0 %1135
    %v1137 = vsel %vm172, %v1096, 0.0
    %1138 = vadd.xlane.f32.xlu0 %v1137
    %v1139 = vpop.xlane.xlu0 %1138
    %v1140 = vsel %vm172, %v1098, 0.0
    %1141 = vadd.xlane.f32.xlu0 %v1140
    %v1142 = vpop.xlane.xlu0 %1141
    %v1143 = vsel %vm172, %v1100, 0.0
    %1144 = vadd.xlane.f32.xlu0 %v1143
    %v1145 = vpop.xlane.xlu0 %1144
    %v1146 = vsel %vm172, %v1102, 0.0
    %1147 = vadd.xlane.f32.xlu0 %v1146
    %v1148 = vpop.xlane.xlu0 %1147
    %v1149 = vsel %vm172, %v1104, 0.0
    %1150 = vadd.xlane.f32.xlu0 %v1149
    %v1151 = vpop.xlane.xlu0 %1150
    %v1152 = vsel %vm172, %v1106, 0.0
    %1153 = vadd.xlane.f32.xlu0 %v1152
    %v1154 = vpop.xlane.xlu0 %1153
    %v1155 = vrcp.pop %v1109
    %v1156 = vrcp.pop %v1112
    %v1157 = vrcp.pop %v1115
    %v1158 = vrcp.pop %v1118
    %v1159 = vrcp.pop %v1121
    %v1160 = vrcp.pop %v1124
    %v1161 = vrcp.pop %v1127
    %v1162 = vrcp.pop %v1130
    %v1163 = vrcp.pop %v1133
    %v1164 = vrcp.pop %v1136
    %v1165 = vrcp.pop %v1139
    %v1166 = vrcp.pop %v1142
    %v1167 = vrcp.pop %v1145
    %v1168 = vrcp.pop %v1148
    %v1169 = vrcp.pop %v1151
    %v1170 = vrcp.pop %v1154
    %v1171 = vmul.f32 %v1076, %v1155
    %v1172 = vmul.f32 %v1078, %v1156
    %v1173 = vmul.f32 %v1080, %v1157
    %v1174 = vmul.f32 %v1082, %v1158
    %v1175 = vmul.f32 %v1084, %v1159
    %v1176 = vmul.f32 %v1086, %v1160
    %v1177 = vmul.f32 %v1088, %v1161
    %v1178 = vmul.f32 %v1090, %v1162
    %v1179 = vmul.f32 %v1092, %v1163
    %v1180 = vmul.f32 %v1094, %v1164
    %v1181 = vmul.f32 %v1096, %v1165
    %v1182 = vmul.f32 %v1098, %v1166
    %v1183 = vmul.f32 %v1100, %v1167
    %v1184 = vmul.f32 %v1102, %v1168
    %v1185 = vmul.f32 %v1104, %v1169
    %v1186 = vmul.f32 %v1106, %v1170
    %v1187 = vpack.c.bf16 %v1171, %v1171
    %v1188 = vpack.c.bf16 %v1172, %v1172
    %v1189 = vpack.c.bf16 %v1173, %v1173
    %v1190 = vpack.c.bf16 %v1174, %v1174
    %v1191 = vpack.c.bf16 %v1175, %v1175
    %v1192 = vpack.c.bf16 %v1176, %v1176
    %v1193 = vpack.c.bf16 %v1177, %v1177
    %v1194 = vpack.c.bf16 %v1178, %v1178
    %v1195 = vpack.c.bf16 %v1179, %v1179
    %v1196 = vpack.c.bf16 %v1180, %v1180
    %v1197 = vpack.c.bf16 %v1181, %v1181
    %v1198 = vpack.c.bf16 %v1182, %v1182
    %v1199 = vpack.c.bf16 %v1183, %v1183
    %v1200 = vpack.c.bf16 %v1184, %v1184
    %v1201 = vpack.c.bf16 %v1185, %v1185
    %v1202 = vpack.c.bf16 %v1186, %v1186
    %1203 = vrot.lane.b32.xlu0 %v142, 64
    %v1204 = vpop.permute.xlu0 %1203
    %v1206 = vsel %vm172, %v1187, 0
    %vm1208 = vcmask 1043456
    %v1210 = vsel %vm1208, %v1204, 0
    %1212 = vmatprep.subr.bf16.mxu0 0
    %1213 = vmatpush1.bf16.msra.mxu0 %v1210
    %1214 = vmatprep.subr.bf16.mxu0 0
    %1215 = vmatpush1.bf16.msra.mxu0 0
    %1216 = vmatprep.subr.bf16.mxu0 0
    %1217 = vmatpush1.bf16.msra.mxu0 0
    %1218 = vmatprep.subr.bf16.mxu0 0
    %1219 = vmatpush1.bf16.msra.mxu0 0
    %1220 = vmatprep.subr.bf16.mxu0 0
    %1221 = vmatpush1.bf16.msra.mxu0 0
    %1222 = vmatprep.subr.bf16.mxu0 0
    %1223 = vmatpush1.bf16.msra.mxu0 0
    %1224 = vmatprep.subr.bf16.mxu0 0
    %1225 = vmatpush1.bf16.msra.mxu0 0
    %1226 = vmatprep.subr.bf16.mxu0 0
    %1227 = vmatpush1.bf16.msra.mxu0 0
    %1228 = vmatprep.subr.bf16.mxu0 0
    %1229 = vmatpush1.bf16.msra.mxu0 0
    %1230 = vmatprep.subr.bf16.mxu0 0
    %1231 = vmatpush1.bf16.msra.mxu0 0
    %1232 = vmatprep.subr.bf16.mxu0 0
    %1233 = vmatpush1.bf16.msra.mxu0 0
    %1234 = vmatprep.subr.bf16.mxu0 0
    %1235 = vmatpush1.bf16.msra.mxu0 0
    %1236 = vmatprep.subr.bf16.mxu0 0
    %1237 = vmatpush1.bf16.msra.mxu0 0
    %1238 = vmatprep.subr.bf16.mxu0 0
    %1239 = vmatpush1.bf16.msra.mxu0 0
    %1240 = vmatprep.subr.bf16.mxu0 0
    %1241 = vmatpush1.bf16.msra.mxu0 0
    %1242 = vmatprep.subr.bf16.mxu0 0
    %1243 = vmatpush1.bf16.msra.mxu0 0
    %1244 = vmatprep.mubr.bf16.mxu0 0
    %1245 = vmatmul.mubr.bf16.gmra.mrb[0].mxu0 %v1206
    %v1246 = vpop.f32.mrb[0].mxu0
    %v1247 = vadd.f32 0.0, %v1246
    %v1248 = vpop.f32.mrb[0].mxu0
    %v1249 = vpop.f32.mrb[0].mxu0
    %v1250 = vpop.f32.mrb[0].mxu0
    %1251 = vdwg.mxu0
    %1252 = vrot.lane.b32.xlu0 %v143, 64
    %v1253 = vpop.permute.xlu0 %1252
    %v1255 = vsel %vm172, %v1188, 0
    %v1258 = vsel %vm1208, %v1253, 0
    %1260 = vmatprep.subr.bf16.mxu0 0
    %1261 = vmatpush1.bf16.msra.mxu0 %v1258
    %1262 = vmatprep.subr.bf16.mxu0 0
    %1263 = vmatpush1.bf16.msra.mxu0 0
    %1264 = vmatprep.subr.bf16.mxu0 0
    %1265 = vmatpush1.bf16.msra.mxu0 0
    %1266 = vmatprep.subr.bf16.mxu0 0
    %1267 = vmatpush1.bf16.msra.mxu0 0
    %1268 = vmatprep.subr.bf16.mxu0 0
    %1269 = vmatpush1.bf16.msra.mxu0 0
    %1270 = vmatprep.subr.bf16.mxu0 0
    %1271 = vmatpush1.bf16.msra.mxu0 0
    %1272 = vmatprep.subr.bf16.mxu0 0
    %1273 = vmatpush1.bf16.msra.mxu0 0
    %1274 = vmatprep.subr.bf16.mxu0 0
    %1275 = vmatpush1.bf16.msra.mxu0 0
    %1276 = vmatprep.subr.bf16.mxu0 0
    %1277 = vmatpush1.bf16.msra.mxu0 0
    %1278 = vmatprep.subr.bf16.mxu0 0
    %1279 = vmatpush1.bf16.msra.mxu0 0
    %1280 = vmatprep.subr.bf16.mxu0 0
    %1281 = vmatpush1.bf16.msra.mxu0 0
    %1282 = vmatprep.subr.bf16.mxu0 0
    %1283 = vmatpush1.bf16.msra.mxu0 0
    %1284 = vmatprep.subr.bf16.mxu0 0
    %1285 = vmatpush1.bf16.msra.mxu0 0
    %1286 = vmatprep.subr.bf16.mxu0 0
    %1287 = vmatpush1.bf16.msra.mxu0 0
    %1288 = vmatprep.subr.bf16.mxu0 0
    %1289 = vmatpush1.bf16.msra.mxu0 0
    %1290 = vmatprep.subr.bf16.mxu0 0
    %1291 = vmatpush1.bf16.msra.mxu0 0
    %1292 = vmatprep.mubr.bf16.mxu0 0
    %1293 = vmatmul.mubr.bf16.gmra.mrb[0].mxu0 %v1255
    %v1294 = vpop.f32.mrb[0].mxu0
    %v1295 = vadd.f32 0.0, %v1294
    %v1296 = vpop.f32.mrb[0].mxu0
    %v1297 = vpop.f32.mrb[0].mxu0
    %v1298 = vpop.f32.mrb[0].mxu0
    %1299 = vdwg.mxu0
    %1300 = vrot.lane.b32.xlu0 %v144, 64
    %v1301 = vpop.permute.xlu0 %1300
    %v1303 = vsel %vm172, %v1189, 0
    %v1306 = vsel %vm1208, %v1301, 0
    %1308 = vmatprep.subr.bf16.mxu0 0
    %1309 = vmatpush1.bf16.msra.mxu0 %v1306
    %1310 = vmatprep.subr.bf16.mxu0 0
    %1311 = vmatpush1.bf16.msra.mxu0 0
    %1312 = vmatprep.subr.bf16.mxu0 0
    %1313 = vmatpush1.bf16.msra.mxu0 0
    %1314 = vmatprep.subr.bf16.mxu0 0
    %1315 = vmatpush1.bf16.msra.mxu0 0
    %1316 = vmatprep.subr.bf16.mxu0 0
    %1317 = vmatpush1.bf16.msra.mxu0 0
    %1318 = vmatprep.subr.bf16.mxu0 0
    %1319 = vmatpush1.bf16.msra.mxu0 0
    %1320 = vmatprep.subr.bf16.mxu0 0
    %1321 = vmatpush1.bf16.msra.mxu0 0
    %1322 = vmatprep.subr.bf16.mxu0 0
    %1323 = vmatpush1.bf16.msra.mxu0 0
    %1324 = vmatprep.subr.bf16.mxu0 0
    %1325 = vmatpush1.bf16.msra.mxu0 0
    %1326 = vmatprep.subr.bf16.mxu0 0
    %1327 = vmatpush1.bf16.msra.mxu0 0
    %1328 = vmatprep.subr.bf16.mxu0 0
    %1329 = vmatpush1.bf16.msra.mxu0 0
    %1330 = vmatprep.subr.bf16.mxu0 0
    %1331 = vmatpush1.bf16.msra.mxu0 0
    %1332 = vmatprep.subr.bf16.mxu0 0
    %1333 = vmatpush1.bf16.msra.mxu0 0
    %1334 = vmatprep.subr.bf16.mxu0 0
    %1335 = vmatpush1.bf16.msra.mxu0 0
    %1336 = vmatprep.subr.bf16.mxu0 0
    %1337 = vmatpush1.bf16.msra.mxu0 0
    %1338 = vmatprep.subr.bf16.mxu0 0
    %1339 = vmatpush1.bf16.msra.mxu0 0
    %1340 = vmatprep.mubr.bf16.mxu0 0
    %1341 = vmatmul.mubr.bf16.gmra.mrb[0].mxu0 %v1303
    %v1342 = vpop.f32.mrb[0].mxu0
    %v1343 = vadd.f32 0.0, %v1342
    %v1344 = vpop.f32.mrb[0].mxu0
    %v1345 = vpop.f32.mrb[0].mxu0
    %v1346 = vpop.f32.mrb[0].mxu0
    %1347 = vdwg.mxu0
    %1348 = vrot.lane.b32.xlu0 %v145, 64
    %v1349 = vpop.permute.xlu0 %1348
    %v1351 = vsel %vm172, %v1190, 0
    %v1354 = vsel %vm1208, %v1349, 0
    %1356 = vmatprep.subr.bf16.mxu0 0
    %1357 = vmatpush1.bf16.msra.mxu0 %v1354
    %1358 = vmatprep.subr.bf16.mxu0 0
    %1359 = vmatpush1.bf16.msra.mxu0 0
    %1360 = vmatprep.subr.bf16.mxu0 0
    %1361 = vmatpush1.bf16.msra.mxu0 0
    %1362 = vmatprep.subr.bf16.mxu0 0
    %1363 = vmatpush1.bf16.msra.mxu0 0
    %1364 = vmatprep.subr.bf16.mxu0 0
    %1365 = vmatpush1.bf16.msra.mxu0 0
    %1366 = vmatprep.subr.bf16.mxu0 0
    %1367 = vmatpush1.bf16.msra.mxu0 0
    %1368 = vmatprep.subr.bf16.mxu0 0
    %1369 = vmatpush1.bf16.msra.mxu0 0
    %1370 = vmatprep.subr.bf16.mxu0 0
    %1371 = vmatpush1.bf16.msra.mxu0 0
    %1372 = vmatprep.subr.bf16.mxu0 0
    %1373 = vmatpush1.bf16.msra.mxu0 0
    %1374 = vmatprep.subr.bf16.mxu0 0
    %1375 = vmatpush1.bf16.msra.mxu0 0
    %1376 = vmatprep.subr.bf16.mxu0 0
    %1377 = vmatpush1.bf16.msra.mxu0 0
    %1378 = vmatprep.subr.bf16.mxu0 0
    %1379 = vmatpush1.bf16.msra.mxu0 0
    %1380 = vmatprep.subr.bf16.mxu0 0
    %1381 = vmatpush1.bf16.msra.mxu0 0
    %1382 = vmatprep.subr.bf16.mxu0 0
    %1383 = vmatpush1.bf16.msra.mxu0 0
    %1384 = vmatprep.subr.bf16.mxu0 0
    %1385 = vmatpush1.bf16.msra.mxu0 0
    %1386 = vmatprep.subr.bf16.mxu0 0
    %1387 = vmatpush1.bf16.msra.mxu0 0
    %1388 = vmatprep.mubr.bf16.mxu0 0
    %1389 = vmatmul.mubr.bf16.gmra.mrb[0].mxu0 %v1351
    %v1390 = vpop.f32.mrb[0].mxu0
    %v1391 = vadd.f32 0.0, %v1390
    %v1392 = vpop.f32.mrb[0].mxu0
    %v1393 = vpop.f32.mrb[0].mxu0
    %v1394 = vpop.f32.mrb[0].mxu0
    %1395 = vdwg.mxu0
    %1396 = vrot.lane.b32.xlu0 %v364, 64
    %v1397 = vpop.permute.xlu0 %1396
    %v1399 = vsel %vm172, %v1191, 0
    %v1402 = vsel %vm1208, %v1397, 0
    %1404 = vmatprep.subr.bf16.mxu0 0
    %1405 = vmatpush1.bf16.msra.mxu0 %v1402
    %1406 = vmatprep.subr.bf16.mxu0 0
    %1407 = vmatpush1.bf16.msra.mxu0 0
    %1408 = vmatprep.subr.bf16.mxu0 0
    %1409 = vmatpush1.bf16.msra.mxu0 0
    %1410 = vmatprep.subr.bf16.mxu0 0
    %1411 = vmatpush1.bf16.msra.mxu0 0
    %1412 = vmatprep.subr.bf16.mxu0 0
    %1413 = vmatpush1.bf16.msra.mxu0 0
    %1414 = vmatprep.subr.bf16.mxu0 0
    %1415 = vmatpush1.bf16.msra.mxu0 0
    %1416 = vmatprep.subr.bf16.mxu0 0
    %1417 = vmatpush1.bf16.msra.mxu0 0
    %1418 = vmatprep.subr.bf16.mxu0 0
    %1419 = vmatpush1.bf16.msra.mxu0 0
    %1420 = vmatprep.subr.bf16.mxu0 0
    %1421 = vmatpush1.bf16.msra.mxu0 0
    %1422 = vmatprep.subr.bf16.mxu0 0
    %1423 = vmatpush1.bf16.msra.mxu0 0
    %1424 = vmatprep.subr.bf16.mxu0 0
    %1425 = vmatpush1.bf16.msra.mxu0 0
    %1426 = vmatprep.subr.bf16.mxu0 0
    %1427 = vmatpush1.bf16.msra.mxu0 0
    %1428 = vmatprep.subr.bf16.mxu0 0
    %1429 = vmatpush1.bf16.msra.mxu0 0
    %1430 = vmatprep.subr.bf16.mxu0 0
    %1431 = vmatpush1.bf16.msra.mxu0 0
    %1432 = vmatprep.subr.bf16.mxu0 0
    %1433 = vmatpush1.bf16.msra.mxu0 0
    %1434 = vmatprep.subr.bf16.mxu0 0
    %1435 = vmatpush1.bf16.msra.mxu0 0
    %1436 = vmatprep.mubr.bf16.mxu0 0
    %1437 = vmatmul.mubr.bf16.gmra.mrb[0].mxu0 %v1399
    %v1438 = vpop.f32.mrb[0].mxu0
    %v1439 = vadd.f32 0.0, %v1438
    %v1440 = vpop.f32.mrb[0].mxu0
    %v1441 = vpop.f32.mrb[0].mxu0
    %v1442 = vpop.f32.mrb[0].mxu0
    %1443 = vdwg.mxu0
    %1444 = vrot.lane.b32.xlu0 %v414, 64
    %v1445 = vpop.permute.xlu0 %1444
    %v1447 = vsel %vm172, %v1192, 0
    %v1450 = vsel %vm1208, %v1445, 0
    %1452 = vmatprep.subr.bf16.mxu0 0
    %1453 = vmatpush1.bf16.msra.mxu0 %v1450
    %1454 = vmatprep.subr.bf16.mxu0 0
    %1455 = vmatpush1.bf16.msra.mxu0 0
    %1456 = vmatprep.subr.bf16.mxu0 0
    %1457 = vmatpush1.bf16.msra.mxu0 0
    %1458 = vmatprep.subr.bf16.mxu0 0
    %1459 = vmatpush1.bf16.msra.mxu0 0
    %1460 = vmatprep.subr.bf16.mxu0 0
    %1461 = vmatpush1.bf16.msra.mxu0 0
    %1462 = vmatprep.subr.bf16.mxu0 0
    %1463 = vmatpush1.bf16.msra.mxu0 0
    %1464 = vmatprep.subr.bf16.mxu0 0
    %1465 = vmatpush1.bf16.msra.mxu0 0
    %1466 = vmatprep.subr.bf16.mxu0 0
    %1467 = vmatpush1.bf16.msra.mxu0 0
    %1468 = vmatprep.subr.bf16.mxu0 0
    %1469 = vmatpush1.bf16.msra.mxu0 0
    %1470 = vmatprep.subr.bf16.mxu0 0
    %1471 = vmatpush1.bf16.msra.mxu0 0
    %1472 = vmatprep.subr.bf16.mxu0 0
    %1473 = vmatpush1.bf16.msra.mxu0 0
    %1474 = vmatprep.subr.bf16.mxu0 0
    %1475 = vmatpush1.bf16.msra.mxu0 0
    %1476 = vmatprep.subr.bf16.mxu0 0
    %1477 = vmatpush1.bf16.msra.mxu0 0
    %1478 = vmatprep.subr.bf16.mxu0 0
    %1479 = vmatpush1.bf16.msra.mxu0 0
    %1480 = vmatprep.subr.bf16.mxu0 0
    %1481 = vmatpush1.bf16.msra.mxu0 0
    %1482 = vmatprep.subr.bf16.mxu0 0
    %1483 = vmatpush1.bf16.msra.mxu0 0
    %1484 = vmatprep.mubr.bf16.mxu0 0
    %1485 = vmatmul.mubr.bf16.gmra.mrb[0].mxu0 %v1447
    %v1486 = vpop.f32.mrb[0].mxu0
    %v1487 = vadd.f32 0.0, %v1486
    %v1488 = vpop.f32.mrb[0].mxu0
    %v1489 = vpop.f32.mrb[0].mxu0
    %v1490 = vpop.f32.mrb[0].mxu0
    %1491 = vdwg.mxu0
    %1492 = vrot.lane.b32.xlu0 %v464, 64
    %v1493 = vpop.permute.xlu0 %1492
    %v1495 = vsel %vm172, %v1193, 0
    %v1498 = vsel %vm1208, %v1493, 0
    %1500 = vmatprep.subr.bf16.mxu0 0
    %1501 = vmatpush1.bf16.msra.mxu0 %v1498
    %1502 = vmatprep.subr.bf16.mxu0 0
    %1503 = vmatpush1.bf16.msra.mxu0 0
    %1504 = vmatprep.subr.bf16.mxu0 0
    %1505 = vmatpush1.bf16.msra.mxu0 0
    %1506 = vmatprep.subr.bf16.mxu0 0
    %1507 = vmatpush1.bf16.msra.mxu0 0
    %1508 = vmatprep.subr.bf16.mxu0 0
    %1509 = vmatpush1.bf16.msra.mxu0 0
    %1510 = vmatprep.subr.bf16.mxu0 0
    %1511 = vmatpush1.bf16.msra.mxu0 0
    %1512 = vmatprep.subr.bf16.mxu0 0
    %1513 = vmatpush1.bf16.msra.mxu0 0
    %1514 = vmatprep.subr.bf16.mxu0 0
    %1515 = vmatpush1.bf16.msra.mxu0 0
    %1516 = vmatprep.subr.bf16.mxu0 0
    %1517 = vmatpush1.bf16.msra.mxu0 0
    %1518 = vmatprep.subr.bf16.mxu0 0
    %1519 = vmatpush1.bf16.msra.mxu0 0
    %1520 = vmatprep.subr.bf16.mxu0 0
    %1521 = vmatpush1.bf16.msra.mxu0 0
    %1522 = vmatprep.subr.bf16.mxu0 0
    %1523 = vmatpush1.bf16.msra.mxu0 0
    %1524 = vmatprep.subr.bf16.mxu0 0
    %1525 = vmatpush1.bf16.msra.mxu0 0
    %1526 = vmatprep.subr.bf16.mxu0 0
    %1527 = vmatpush1.bf16.msra.mxu0 0
    %1528 = vmatprep.subr.bf16.mxu0 0
    %1529 = vmatpush1.bf16.msra.mxu0 0
    %1530 = vmatprep.subr.bf16.mxu0 0
    %1531 = vmatpush1.bf16.msra.mxu0 0
    %1532 = vmatprep.mubr.bf16.mxu0 0
    %1533 = vmatmul.mubr.bf16.gmra.mrb[0].mxu0 %v1495
    %v1534 = vpop.f32.mrb[0].mxu0
    %v1535 = vadd.f32 0.0, %v1534
    %v1536 = vpop.f32.mrb[0].mxu0
    %v1537 = vpop.f32.mrb[0].mxu0
    %v1538 = vpop.f32.mrb[0].mxu0
    %1539 = vdwg.mxu0
    %1540 = vrot.lane.b32.xlu0 %v514, 64
    %v1541 = vpop.permute.xlu0 %1540
    %v1543 = vsel %vm172, %v1194, 0
    %v1546 = vsel %vm1208, %v1541, 0
    %1548 = vmatprep.subr.bf16.mxu0 0
    %1549 = vmatpush1.bf16.msra.mxu0 %v1546
    %1550 = vmatprep.subr.bf16.mxu0 0
    %1551 = vmatpush1.bf16.msra.mxu0 0
    %1552 = vmatprep.subr.bf16.mxu0 0
    %1553 = vmatpush1.bf16.msra.mxu0 0
    %1554 = vmatprep.subr.bf16.mxu0 0
    %1555 = vmatpush1.bf16.msra.mxu0 0
    %1556 = vmatprep.subr.bf16.mxu0 0
    %1557 = vmatpush1.bf16.msra.mxu0 0
    %1558 = vmatprep.subr.bf16.mxu0 0
    %1559 = vmatpush1.bf16.msra.mxu0 0
    %1560 = vmatprep.subr.bf16.mxu0 0
    %1561 = vmatpush1.bf16.msra.mxu0 0
    %1562 = vmatprep.subr.bf16.mxu0 0
    %1563 = vmatpush1.bf16.msra.mxu0 0
    %1564 = vmatprep.subr.bf16.mxu0 0
    %1565 = vmatpush1.bf16.msra.mxu0 0
    %1566 = vmatprep.subr.bf16.mxu0 0
    %1567 = vmatpush1.bf16.msra.mxu0 0
    %1568 = vmatprep.subr.bf16.mxu0 0
    %1569 = vmatpush1.bf16.msra.mxu0 0
    %1570 = vmatprep.subr.bf16.mxu0 0
    %1571 = vmatpush1.bf16.msra.mxu0 0
    %1572 = vmatprep.subr.bf16.mxu0 0
    %1573 = vmatpush1.bf16.msra.mxu0 0
    %1574 = vmatprep.subr.bf16.mxu0 0
    %1575 = vmatpush1.bf16.msra.mxu0 0
    %1576 = vmatprep.subr.bf16.mxu0 0
    %1577 = vmatpush1.bf16.msra.mxu0 0
    %1578 = vmatprep.subr.bf16.mxu0 0
    %1579 = vmatpush1.bf16.msra.mxu0 0
    %1580 = vmatprep.mubr.bf16.mxu0 0
    %1581 = vmatmul.mubr.bf16.gmra.mrb[0].mxu0 %v1543
    %v1582 = vpop.f32.mrb[0].mxu0
    %v1583 = vadd.f32 0.0, %v1582
    %v1584 = vpop.f32.mrb[0].mxu0
    %v1585 = vpop.f32.mrb[0].mxu0
    %v1586 = vpop.f32.mrb[0].mxu0
    %1587 = vdwg.mxu0
    %1588 = vrot.lane.b32.xlu0 %v564, 64
    %v1589 = vpop.permute.xlu0 %1588
    %v1591 = vsel %vm172, %v1195, 0
    %v1594 = vsel %vm1208, %v1589, 0
    %1596 = vmatprep.subr.bf16.mxu0 0
    %1597 = vmatpush1.bf16.msra.mxu0 %v1594
    %1598 = vmatprep.subr.bf16.mxu0 0
    %1599 = vmatpush1.bf16.msra.mxu0 0
    %1600 = vmatprep.subr.bf16.mxu0 0
    %1601 = vmatpush1.bf16.msra.mxu0 0
    %1602 = vmatprep.subr.bf16.mxu0 0
    %1603 = vmatpush1.bf16.msra.mxu0 0
    %1604 = vmatprep.subr.bf16.mxu0 0
    %1605 = vmatpush1.bf16.msra.mxu0 0
    %1606 = vmatprep.subr.bf16.mxu0 0
    %1607 = vmatpush1.bf16.msra.mxu0 0
    %1608 = vmatprep.subr.bf16.mxu0 0
    %1609 = vmatpush1.bf16.msra.mxu0 0
    %1610 = vmatprep.subr.bf16.mxu0 0
    %1611 = vmatpush1.bf16.msra.mxu0 0
    %1612 = vmatprep.subr.bf16.mxu0 0
    %1613 = vmatpush1.bf16.msra.mxu0 0
    %1614 = vmatprep.subr.bf16.mxu0 0
    %1615 = vmatpush1.bf16.msra.mxu0 0
    %1616 = vmatprep.subr.bf16.mxu0 0
    %1617 = vmatpush1.bf16.msra.mxu0 0
    %1618 = vmatprep.subr.bf16.mxu0 0
    %1619 = vmatpush1.bf16.msra.mxu0 0
    %1620 = vmatprep.subr.bf16.mxu0 0
    %1621 = vmatpush1.bf16.msra.mxu0 0
    %1622 = vmatprep.subr.bf16.mxu0 0
    %1623 = vmatpush1.bf16.msra.mxu0 0
    %1624 = vmatprep.subr.bf16.mxu0 0
    %1625 = vmatpush1.bf16.msra.mxu0 0
    %1626 = vmatprep.subr.bf16.mxu0 0
    %1627 = vmatpush1.bf16.msra.mxu0 0
    %1628 = vmatprep.mubr.bf16.mxu0 0
    %1629 = vmatmul.mubr.bf16.gmra.mrb[0].mxu0 %v1591
    %v1630 = vpop.f32.mrb[0].mxu0
    %v1631 = vadd.f32 0.0, %v1630
    %v1632 = vpop.f32.mrb[0].mxu0
    %v1633 = vpop.f32.mrb[0].mxu0
    %v1634 = vpop.f32.mrb[0].mxu0
    %1635 = vdwg.mxu0
    %1636 = vrot.lane.b32.xlu0 %v614, 64
    %v1637 = vpop.permute.xlu0 %1636
    %v1639 = vsel %vm172, %v1196, 0
    %v1642 = vsel %vm1208, %v1637, 0
    %1644 = vmatprep.subr.bf16.mxu0 0
    %1645 = vmatpush1.bf16.msra.mxu0 %v1642
    %1646 = vmatprep.subr.bf16.mxu0 0
    %1647 = vmatpush1.bf16.msra.mxu0 0
    %1648 = vmatprep.subr.bf16.mxu0 0
    %1649 = vmatpush1.bf16.msra.mxu0 0
    %1650 = vmatprep.subr.bf16.mxu0 0
    %1651 = vmatpush1.bf16.msra.mxu0 0
    %1652 = vmatprep.subr.bf16.mxu0 0
    %1653 = vmatpush1.bf16.msra.mxu0 0
    %1654 = vmatprep.subr.bf16.mxu0 0
    %1655 = vmatpush1.bf16.msra.mxu0 0
    %1656 = vmatprep.subr.bf16.mxu0 0
    %1657 = vmatpush1.bf16.msra.mxu0 0
    %1658 = vmatprep.subr.bf16.mxu0 0
    %1659 = vmatpush1.bf16.msra.mxu0 0
    %1660 = vmatprep.subr.bf16.mxu0 0
    %1661 = vmatpush1.bf16.msra.mxu0 0
    %1662 = vmatprep.subr.bf16.mxu0 0
    %1663 = vmatpush1.bf16.msra.mxu0 0
    %1664 = vmatprep.subr.bf16.mxu0 0
    %1665 = vmatpush1.bf16.msra.mxu0 0
    %1666 = vmatprep.subr.bf16.mxu0 0
    %1667 = vmatpush1.bf16.msra.mxu0 0
    %1668 = vmatprep.subr.bf16.mxu0 0
    %1669 = vmatpush1.bf16.msra.mxu0 0
    %1670 = vmatprep.subr.bf16.mxu0 0
    %1671 = vmatpush1.bf16.msra.mxu0 0
    %1672 = vmatprep.subr.bf16.mxu0 0
    %1673 = vmatpush1.bf16.msra.mxu0 0
    %1674 = vmatprep.subr.bf16.mxu0 0
    %1675 = vmatpush1.bf16.msra.mxu0 0
    %1676 = vmatprep.mubr.bf16.mxu0 0
    %1677 = vmatmul.mubr.bf16.gmra.mrb[0].mxu0 %v1639
    %v1678 = vpop.f32.mrb[0].mxu0
    %v1679 = vadd.f32 0.0, %v1678
    %v1680 = vpop.f32.mrb[0].mxu0
    %v1681 = vpop.f32.mrb[0].mxu0
    %v1682 = vpop.f32.mrb[0].mxu0
    %1683 = vdwg.mxu0
    %1684 = vrot.lane.b32.xlu0 %v664, 64
    %v1685 = vpop.permute.xlu0 %1684
    %v1687 = vsel %vm172, %v1197, 0
    %v1690 = vsel %vm1208, %v1685, 0
    %1692 = vmatprep.subr.bf16.mxu0 0
    %1693 = vmatpush1.bf16.msra.mxu0 %v1690
    %1694 = vmatprep.subr.bf16.mxu0 0
    %1695 = vmatpush1.bf16.msra.mxu0 0
    %1696 = vmatprep.subr.bf16.mxu0 0
    %1697 = vmatpush1.bf16.msra.mxu0 0
    %1698 = vmatprep.subr.bf16.mxu0 0
    %1699 = vmatpush1.bf16.msra.mxu0 0
    %1700 = vmatprep.subr.bf16.mxu0 0
    %1701 = vmatpush1.bf16.msra.mxu0 0
    %1702 = vmatprep.subr.bf16.mxu0 0
    %1703 = vmatpush1.bf16.msra.mxu0 0
    %1704 = vmatprep.subr.bf16.mxu0 0
    %1705 = vmatpush1.bf16.msra.mxu0 0
    %1706 = vmatprep.subr.bf16.mxu0 0
    %1707 = vmatpush1.bf16.msra.mxu0 0
    %1708 = vmatprep.subr.bf16.mxu0 0
    %1709 = vmatpush1.bf16.msra.mxu0 0
    %1710 = vmatprep.subr.bf16.mxu0 0
    %1711 = vmatpush1.bf16.msra.mxu0 0
    %1712 = vmatprep.subr.bf16.mxu0 0
    %1713 = vmatpush1.bf16.msra.mxu0 0
    %1714 = vmatprep.subr.bf16.mxu0 0
    %1715 = vmatpush1.bf16.msra.mxu0 0
    %1716 = vmatprep.subr.bf16.mxu0 0
    %1717 = vmatpush1.bf16.msra.mxu0 0
    %1718 = vmatprep.subr.bf16.mxu0 0
    %1719 = vmatpush1.bf16.msra.mxu0 0
    %1720 = vmatprep.subr.bf16.mxu0 0
    %1721 = vmatpush1.bf16.msra.mxu0 0
    %1722 = vmatprep.subr.bf16.mxu0 0
    %1723 = vmatpush1.bf16.msra.mxu0 0
    %1724 = vmatprep.mubr.bf16.mxu0 0
    %1725 = vmatmul.mubr.bf16.gmra.mrb[0].mxu0 %v1687
    %v1726 = vpop.f32.mrb[0].mxu0
    %v1727 = vadd.f32 0.0, %v1726
    %v1728 = vpop.f32.mrb[0].mxu0
    %v1729 = vpop.f32.mrb[0].mxu0
    %v1730 = vpop.f32.mrb[0].mxu0
    %1731 = vdwg.mxu0
    %1732 = vrot.lane.b32.xlu0 %v714, 64
    %v1733 = vpop.permute.xlu0 %1732
    %v1735 = vsel %vm172, %v1198, 0
    %v1738 = vsel %vm1208, %v1733, 0
    %1740 = vmatprep.subr.bf16.mxu0 0
    %1741 = vmatpush1.bf16.msra.mxu0 %v1738
    %1742 = vmatprep.subr.bf16.mxu0 0
    %1743 = vmatpush1.bf16.msra.mxu0 0
    %1744 = vmatprep.subr.bf16.mxu0 0
    %1745 = vmatpush1.bf16.msra.mxu0 0
    %1746 = vmatprep.subr.bf16.mxu0 0
    %1747 = vmatpush1.bf16.msra.mxu0 0
    %1748 = vmatprep.subr.bf16.mxu0 0
    %1749 = vmatpush1.bf16.msra.mxu0 0
    %1750 = vmatprep.subr.bf16.mxu0 0
    %1751 = vmatpush1.bf16.msra.mxu0 0
    %1752 = vmatprep.subr.bf16.mxu0 0
    %1753 = vmatpush1.bf16.msra.mxu0 0
    %1754 = vmatprep.subr.bf16.mxu0 0
    %1755 = vmatpush1.bf16.msra.mxu0 0
    %1756 = vmatprep.subr.bf16.mxu0 0
    %1757 = vmatpush1.bf16.msra.mxu0 0
    %1758 = vmatprep.subr.bf16.mxu0 0
    %1759 = vmatpush1.bf16.msra.mxu0 0
    %1760 = vmatprep.subr.bf16.mxu0 0
    %1761 = vmatpush1.bf16.msra.mxu0 0
    %1762 = vmatprep.subr.bf16.mxu0 0
    %1763 = vmatpush1.bf16.msra.mxu0 0
    %1764 = vmatprep.subr.bf16.mxu0 0
    %1765 = vmatpush1.bf16.msra.mxu0 0
    %1766 = vmatprep.subr.bf16.mxu0 0
    %1767 = vmatpush1.bf16.msra.mxu0 0
    %1768 = vmatprep.subr.bf16.mxu0 0
    %1769 = vmatpush1.bf16.msra.mxu0 0
    %1770 = vmatprep.subr.bf16.mxu0 0
    %1771 = vmatpush1.bf16.msra.mxu0 0
    %1772 = vmatprep.mubr.bf16.mxu0 0
    %1773 = vmatmul.mubr.bf16.gmra.mrb[0].mxu0 %v1735
    %v1774 = vpop.f32.mrb[0].mxu0
    %v1775 = vadd.f32 0.0, %v1774
    %v1776 = vpop.f32.mrb[0].mxu0
    %v1777 = vpop.f32.mrb[0].mxu0
    %v1778 = vpop.f32.mrb[0].mxu0
    %1779 = vdwg.mxu0
    %1780 = vrot.lane.b32.xlu0 %v764, 64
    %v1781 = vpop.permute.xlu0 %1780
    %v1783 = vsel %vm172, %v1199, 0
    %v1786 = vsel %vm1208, %v1781, 0
    %1788 = vmatprep.subr.bf16.mxu0 0
    %1789 = vmatpush1.bf16.msra.mxu0 %v1786
    %1790 = vmatprep.subr.bf16.mxu0 0
    %1791 = vmatpush1.bf16.msra.mxu0 0
    %1792 = vmatprep.subr.bf16.mxu0 0
    %1793 = vmatpush1.bf16.msra.mxu0 0
    %1794 = vmatprep.subr.bf16.mxu0 0
    %1795 = vmatpush1.bf16.msra.mxu0 0
    %1796 = vmatprep.subr.bf16.mxu0 0
    %1797 = vmatpush1.bf16.msra.mxu0 0
    %1798 = vmatprep.subr.bf16.mxu0 0
    %1799 = vmatpush1.bf16.msra.mxu0 0
    %1800 = vmatprep.subr.bf16.mxu0 0
    %1801 = vmatpush1.bf16.msra.mxu0 0
    %1802 = vmatprep.subr.bf16.mxu0 0
    %1803 = vmatpush1.bf16.msra.mxu0 0
    %1804 = vmatprep.subr.bf16.mxu0 0
    %1805 = vmatpush1.bf16.msra.mxu0 0
    %1806 = vmatprep.subr.bf16.mxu0 0
    %1807 = vmatpush1.bf16.msra.mxu0 0
    %1808 = vmatprep.subr.bf16.mxu0 0
    %1809 = vmatpush1.bf16.msra.mxu0 0
    %1810 = vmatprep.subr.bf16.mxu0 0
    %1811 = vmatpush1.bf16.msra.mxu0 0
    %1812 = vmatprep.subr.bf16.mxu0 0
    %1813 = vmatpush1.bf16.msra.mxu0 0
    %1814 = vmatprep.subr.bf16.mxu0 0
    %1815 = vmatpush1.bf16.msra.mxu0 0
    %1816 = vmatprep.subr.bf16.mxu0 0
    %1817 = vmatpush1.bf16.msra.mxu0 0
    %1818 = vmatprep.subr.bf16.mxu0 0
    %1819 = vmatpush1.bf16.msra.mxu0 0
    %1820 = vmatprep.mubr.bf16.mxu0 0
    %1821 = vmatmul.mubr.bf16.gmra.mrb[0].mxu0 %v1783
    %v1822 = vpop.f32.mrb[0].mxu0
    %v1823 = vadd.f32 0.0, %v1822
    %v1824 = vpop.f32.mrb[0].mxu0
    %v1825 = vpop.f32.mrb[0].mxu0
    %v1826 = vpop.f32.mrb[0].mxu0
    %1827 = vdwg.mxu0
    %1828 = vrot.lane.b32.xlu0 %v814, 64
    %v1829 = vpop.permute.xlu0 %1828
    %v1831 = vsel %vm172, %v1200, 0
    %v1834 = vsel %vm1208, %v1829, 0
    %1836 = vmatprep.subr.bf16.mxu0 0
    %1837 = vmatpush1.bf16.msra.mxu0 %v1834
    %1838 = vmatprep.subr.bf16.mxu0 0
    %1839 = vmatpush1.bf16.msra.mxu0 0
    %1840 = vmatprep.subr.bf16.mxu0 0
    %1841 = vmatpush1.bf16.msra.mxu0 0
    %1842 = vmatprep.subr.bf16.mxu0 0
    %1843 = vmatpush1.bf16.msra.mxu0 0
    %1844 = vmatprep.subr.bf16.mxu0 0
    %1845 = vmatpush1.bf16.msra.mxu0 0
    %1846 = vmatprep.subr.bf16.mxu0 0
    %1847 = vmatpush1.bf16.msra.mxu0 0
    %1848 = vmatprep.subr.bf16.mxu0 0
    %1849 = vmatpush1.bf16.msra.mxu0 0
    %1850 = vmatprep.subr.bf16.mxu0 0
    %1851 = vmatpush1.bf16.msra.mxu0 0
    %1852 = vmatprep.subr.bf16.mxu0 0
    %1853 = vmatpush1.bf16.msra.mxu0 0
    %1854 = vmatprep.subr.bf16.mxu0 0
    %1855 = vmatpush1.bf16.msra.mxu0 0
    %1856 = vmatprep.subr.bf16.mxu0 0
    %1857 = vmatpush1.bf16.msra.mxu0 0
    %1858 = vmatprep.subr.bf16.mxu0 0
    %1859 = vmatpush1.bf16.msra.mxu0 0
    %1860 = vmatprep.subr.bf16.mxu0 0
    %1861 = vmatpush1.bf16.msra.mxu0 0
    %1862 = vmatprep.subr.bf16.mxu0 0
    %1863 = vmatpush1.bf16.msra.mxu0 0
    %1864 = vmatprep.subr.bf16.mxu0 0
    %1865 = vmatpush1.bf16.msra.mxu0 0
    %1866 = vmatprep.subr.bf16.mxu0 0
    %1867 = vmatpush1.bf16.msra.mxu0 0
    %1868 = vmatprep.mubr.bf16.mxu0 0
    %1869 = vmatmul.mubr.bf16.gmra.mrb[0].mxu0 %v1831
    %v1870 = vpop.f32.mrb[0].mxu0
    %v1871 = vadd.f32 0.0, %v1870
    %v1872 = vpop.f32.mrb[0].mxu0
    %v1873 = vpop.f32.mrb[0].mxu0
    %v1874 = vpop.f32.mrb[0].mxu0
    %1875 = vdwg.mxu0
    %1876 = vrot.lane.b32.xlu0 %v864, 64
    %v1877 = vpop.permute.xlu0 %1876
    %v1879 = vsel %vm172, %v1201, 0
    %v1882 = vsel %vm1208, %v1877, 0
    %1884 = vmatprep.subr.bf16.mxu0 0
    %1885 = vmatpush1.bf16.msra.mxu0 %v1882
    %1886 = vmatprep.subr.bf16.mxu0 0
    %1887 = vmatpush1.bf16.msra.mxu0 0
    %1888 = vmatprep.subr.bf16.mxu0 0
    %1889 = vmatpush1.bf16.msra.mxu0 0
    %1890 = vmatprep.subr.bf16.mxu0 0
    %1891 = vmatpush1.bf16.msra.mxu0 0
    %1892 = vmatprep.subr.bf16.mxu0 0
    %1893 = vmatpush1.bf16.msra.mxu0 0
    %1894 = vmatprep.subr.bf16.mxu0 0
    %1895 = vmatpush1.bf16.msra.mxu0 0
    %1896 = vmatprep.subr.bf16.mxu0 0
    %1897 = vmatpush1.bf16.msra.mxu0 0
    %1898 = vmatprep.subr.bf16.mxu0 0
    %1899 = vmatpush1.bf16.msra.mxu0 0
    %1900 = vmatprep.subr.bf16.mxu0 0
    %1901 = vmatpush1.bf16.msra.mxu0 0
    %1902 = vmatprep.subr.bf16.mxu0 0
    %1903 = vmatpush1.bf16.msra.mxu0 0
    %1904 = vmatprep.subr.bf16.mxu0 0
    %1905 = vmatpush1.bf16.msra.mxu0 0
    %1906 = vmatprep.subr.bf16.mxu0 0
    %1907 = vmatpush1.bf16.msra.mxu0 0
    %1908 = vmatprep.subr.bf16.mxu0 0
    %1909 = vmatpush1.bf16.msra.mxu0 0
    %1910 = vmatprep.subr.bf16.mxu0 0
    %1911 = vmatpush1.bf16.msra.mxu0 0
    %1912 = vmatprep.subr.bf16.mxu0 0
    %1913 = vmatpush1.bf16.msra.mxu0 0
    %1914 = vmatprep.subr.bf16.mxu0 0
    %1915 = vmatpush1.bf16.msra.mxu0 0
    %1916 = vmatprep.mubr.bf16.mxu0 0
    %1917 = vmatmul.mubr.bf16.gmra.mrb[0].mxu0 %v1879
    %v1918 = vpop.f32.mrb[0].mxu0
    %v1919 = vadd.f32 0.0, %v1918
    %v1920 = vpop.f32.mrb[0].mxu0
    %v1921 = vpop.f32.mrb[0].mxu0
    %v1922 = vpop.f32.mrb[0].mxu0
    %1923 = vdwg.mxu0
    %1924 = vrot.lane.b32.xlu0 %v914, 64
    %v1925 = vpop.permute.xlu0 %1924
    %v1927 = vsel %vm172, %v1202, 0
    %v1930 = vsel %vm1208, %v1925, 0
    %1932 = vmatprep.subr.bf16.mxu0 0
    %1933 = vmatpush1.bf16.msra.mxu0 %v1930
    %1934 = vmatprep.subr.bf16.mxu0 0
    %1935 = vmatpush1.bf16.msra.mxu0 0
    %1936 = vmatprep.subr.bf16.mxu0 0
    %1937 = vmatpush1.bf16.msra.mxu0 0
    %1938 = vmatprep.subr.bf16.mxu0 0
    %1939 = vmatpush1.bf16.msra.mxu0 0
    %1940 = vmatprep.subr.bf16.mxu0 0
    %1941 = vmatpush1.bf16.msra.mxu0 0
    %1942 = vmatprep.subr.bf16.mxu0 0
    %1943 = vmatpush1.bf16.msra.mxu0 0
    %1944 = vmatprep.subr.bf16.mxu0 0
    %1945 = vmatpush1.bf16.msra.mxu0 0
    %1946 = vmatprep.subr.bf16.mxu0 0
    %1947 = vmatpush1.bf16.msra.mxu0 0
    %1948 = vmatprep.subr.bf16.mxu0 0
    %1949 = vmatpush1.bf16.msra.mxu0 0
    %1950 = vmatprep.subr.bf16.mxu0 0
    %1951 = vmatpush1.bf16.msra.mxu0 0
    %1952 = vmatprep.subr.bf16.mxu0 0
    %1953 = vmatpush1.bf16.msra.mxu0 0
    %1954 = vmatprep.subr.bf16.mxu0 0
    %1955 = vmatpush1.bf16.msra.mxu0 0
    %1956 = vmatprep.subr.bf16.mxu0 0
    %1957 = vmatpush1.bf16.msra.mxu0 0
    %1958 = vmatprep.subr.bf16.mxu0 0
    %1959 = vmatpush1.bf16.msra.mxu0 0
    %1960 = vmatprep.subr.bf16.mxu0 0
    %1961 = vmatpush1.bf16.msra.mxu0 0
    %1962 = vmatprep.subr.bf16.mxu0 0
    %1963 = vmatpush1.bf16.msra.mxu0 0
    %1964 = vmatprep.mubr.bf16.mxu0 0
    %1965 = vmatmul.mubr.bf16.gmra.mrb[0].mxu0 %v1927
    %v1966 = vpop.f32.mrb[0].mxu0
    %v1967 = vadd.f32 0.0, %v1966
    %v1968 = vpop.f32.mrb[0].mxu0
    %v1969 = vpop.f32.mrb[0].mxu0
    %v1970 = vpop.f32.mrb[0].mxu0
    %1971 = vdwg.mxu0
    %1976 = vrot.lane.b32.xlu0 %v1439, 8
    %v1977 = vpop.permute.xlu0 %1976
    %1978 = vrot.lane.b32.xlu0 %v1487, 8
    %v1979 = vpop.permute.xlu0 %1978
    %1980 = vrot.lane.b32.xlu0 %v1535, 8
    %v1981 = vpop.permute.xlu0 %1980
    %1982 = vrot.lane.b32.xlu0 %v1583, 8
    %v1983 = vpop.permute.xlu0 %1982
    %1992 = vrot.lane.b32.xlu0 %v1631, 16
    %v1993 = vpop.permute.xlu0 %1992
    %1994 = vrot.lane.b32.xlu0 %v1679, 16
    %v1995 = vpop.permute.xlu0 %1994
    %1996 = vrot.lane.b32.xlu0 %v1727, 16
    %v1997 = vpop.permute.xlu0 %1996
    %1998 = vrot.lane.b32.xlu0 %v1775, 16
    %v1999 = vpop.permute.xlu0 %1998
    %2008 = vrot.lane.b32.xlu0 %v1823, 24
    %v2009 = vpop.permute.xlu0 %2008
    %2010 = vrot.lane.b32.xlu0 %v1871, 24
    %v2011 = vpop.permute.xlu0 %2010
    %2012 = vrot.lane.b32.xlu0 %v1919, 24
    %v2013 = vpop.permute.xlu0 %2012
    %2014 = vrot.lane.b32.xlu0 %v1967, 24
    %v2015 = vpop.permute.xlu0 %2014
    %v2020 = vsel %vm172, %v1247, %v1977
    %v2021 = vsel %vm172, %v1295, %v1979
    %v2022 = vsel %vm172, %v1343, %v1981
    %v2023 = vsel %vm172, %v1391, %v1983
    %vm2024 = vcmask 130048
    %v2025 = vsel %vm2024, %v2020, %v1993
    %v2026 = vsel %vm2024, %v2021, %v1995
    %v2027 = vsel %vm2024, %v2022, %v1997
    %v2028 = vsel %vm2024, %v2023, %v1999
    %vm2029 = vcmask 195584
    %v2030 = vsel %vm2029, %v2025, %v2009
    %v2031 = vsel %vm2029, %v2026, %v2011
    %v2032 = vsel %vm2029, %v2027, %v2013
    %v2033 = vsel %vm2029, %v2028, %v2015
    %2038 = vrot.lane.b32.xlu0 %v1175, 8
    %v2039 = vpop.permute.xlu0 %2038
    %2040 = vrot.lane.b32.xlu0 %v1176, 8
    %v2041 = vpop.permute.xlu0 %2040
    %2042 = vrot.lane.b32.xlu0 %v1177, 8
    %v2043 = vpop.permute.xlu0 %2042
    %2044 = vrot.lane.b32.xlu0 %v1178, 8
    %v2045 = vpop.permute.xlu0 %2044
    %2054 = vrot.lane.b32.xlu0 %v1179, 16
    %v2055 = vpop.permute.xlu0 %2054
    %2056 = vrot.lane.b32.xlu0 %v1180, 16
    %v2057 = vpop.permute.xlu0 %2056
    %2058 = vrot.lane.b32.xlu0 %v1181, 16
    %v2059 = vpop.permute.xlu0 %2058
    %2060 = vrot.lane.b32.xlu0 %v1182, 16
    %v2061 = vpop.permute.xlu0 %2060
    %2070 = vrot.lane.b32.xlu0 %v1183, 24
    %v2071 = vpop.permute.xlu0 %2070
    %2072 = vrot.lane.b32.xlu0 %v1184, 24
    %v2073 = vpop.permute.xlu0 %2072
    %2074 = vrot.lane.b32.xlu0 %v1185, 24
    %v2075 = vpop.permute.xlu0 %2074
    %2076 = vrot.lane.b32.xlu0 %v1186, 24
    %v2077 = vpop.permute.xlu0 %2076
    %v2082 = vsel %vm172, %v1171, %v2039
    %v2083 = vsel %vm172, %v1172, %v2041
    %v2084 = vsel %vm172, %v1173, %v2043
    %v2085 = vsel %vm172, %v1174, %v2045
    %v2086 = vsel %vm2024, %v2082, %v2055
    %v2087 = vsel %vm2024, %v2083, %v2057
    %v2088 = vsel %vm2024, %v2084, %v2059
    %v2089 = vsel %vm2024, %v2085, %v2061
    %v2090 = vsel %vm2029, %v2086, %v2071
    %v2091 = vsel %vm2029, %v2087, %v2073
    %v2092 = vsel %vm2029, %v2088, %v2075
    %v2093 = vsel %vm2029, %v2089, %v2077
    %2094 = vst.msk [vmem:[#allocation4] sm:$0xff] %vm78, %v2090
    %2095 = vst.msk [vmem:[#allocation4 + $0x8] sm:$0xff] %vm78, %v2091
    %2096 = vst.msk [vmem:[#allocation4 + $0x10] sm:$0xff] %vm78, %v2092
    %2097 = vst.msk [vmem:[#allocation4 + $0x18] sm:$0xff] %vm78, %v2093
    %v2098 = vpack.c.bf16 %v2031, %v2030
    %v2099 = vpack.c.bf16 %v2033, %v2032
    %v2100 = vld [vmem:[%s4] sm:$0xf]
    %v2101 = vld [vmem:[%s4 + $0x4] sm:$0xf]
    %v2102 = vld [vmem:[%s4 + $0x8] sm:$0xf]
    %v2103 = vld [vmem:[%s4 + $0xc] sm:$0xf]
    %v2104 = vlaneseq
    %v2105 = vshrl.u32 %v2104, 7
    %v2106 = vsub.s32 0, %v2105
    %v2107 = vrot.slane %v44, %v2106
    %v2112 = vunpack.c.l.b16 %v2100
    %v2113 = vunpack.c.l.b16 %v2101
    %v2114 = vunpack.c.l.b16 %v2102
    %v2115 = vunpack.c.l.b16 %v2103
    %v2116 = vpack.c.b16 %v2113, %v2112
    %v2117 = vpack.c.b16 %v2115, %v2114
    %v2121 = vsel %vm78, %v2098, 0
    %v2124 = vsel %vm78, %v2099, 0
    %2126 = vmatprep.subr.bf16.mxu0 0
    %2127 = vmatpush1.bf16.msra.mxu0 %v2116
    %2128 = vmatprep.subr.bf16.mxu0 0
    %2129 = vmatpush1.bf16.msra.mxu0 %v2117
    %2130 = vmatprep.subr.bf16.mxu0 0
    %2131 = vmatpush1.bf16.msra.mxu0 0
    %2132 = vmatprep.subr.bf16.mxu0 0
    %2133 = vmatpush1.bf16.msra.mxu0 0
    %2134 = vmatprep.subr.bf16.mxu0 0
    %2135 = vmatpush1.bf16.msra.mxu0 0
    %2136 = vmatprep.subr.bf16.mxu0 0
    %2137 = vmatpush1.bf16.msra.mxu0 0
    %2138 = vmatprep.subr.bf16.mxu0 0
    %2139 = vmatpush1.bf16.msra.mxu0 0
    %2140 = vmatprep.subr.bf16.mxu0 0
    %2141 = vmatpush1.bf16.msra.mxu0 0
    %2142 = vmatprep.subr.bf16.mxu0 0
    %2143 = vmatpush1.bf16.msra.mxu0 0
    %2144 = vmatprep.subr.bf16.mxu0 0
    %2145 = vmatpush1.bf16.msra.mxu0 0
    %2146 = vmatprep.subr.bf16.mxu0 0
    %2147 = vmatpush1.bf16.msra.mxu0 0
    %2148 = vmatprep.subr.bf16.mxu0 0
    %2149 = vmatpush1.bf16.msra.mxu0 0
    %2150 = vmatprep.subr.bf16.mxu0 0
    %2151 = vmatpush1.bf16.msra.mxu0 0
    %2152 = vmatprep.subr.bf16.mxu0 0
    %2153 = vmatpush1.bf16.msra.mxu0 0
    %2154 = vmatprep.subr.bf16.mxu0 0
    %2155 = vmatpush1.bf16.msra.mxu0 0
    %2156 = vmatprep.subr.bf16.mxu0 0
    %2157 = vmatpush1.bf16.msra.mxu0 0
    %2158 = vmatprep.mubr.bf16.mxu0 0
    %2159 = vmatmul.mubr.bf16.gmra.mrb[0].mxu0 %v2121
    %v2160 = vpop.f32.mrb[0].mxu0
    %v2161 = vadd.f32 %v2107, %v2160
    %v2162 = vpop.f32.mrb[0].mxu0
    %v2163 = vpop.f32.mrb[0].mxu0
    %v2164 = vadd.f32 %v2107, %v2163
    %v2165 = vpop.f32.mrb[0].mxu0
    %2166 = vmatprep.mubr.bf16.mxu0 0
    %2167 = vmatmul.mubr.bf16.gmra.mrb[0].mxu0 %v2124
    %v2168 = vpop.f32.mrb[0].mxu0
    %v2169 = vadd.f32 %v2107, %v2168
    %v2170 = vpop.f32.mrb[0].mxu0
    %v2171 = vpop.f32.mrb[0].mxu0
    %v2172 = vadd.f32 %v2107, %v2171
    %v2173 = vpop.f32.mrb[0].mxu0
    %2174 = vdwg.mxu0
    %v2175 = vadd.f32 %v2161, %v120
    %v2176 = vadd.f32 %v2164, %v123
    %v2177 = vadd.f32 %v2169, %v128
    %v2178 = vadd.f32 %v2172, %v131
    %v2179 = vsel %vm78, %v2175, 0.0
    %2180 = vadd.xlane.f32.xlu0 %v2179
    %v2181 = vpop.xlane.xlu0 %2180
    %v2182 = vsel %vm78, %v2176, 0.0
    %2183 = vadd.xlane.f32.xlu0 %v2182
    %v2184 = vpop.xlane.xlu0 %2183
    %v2185 = vsel %vm78, %v2177, 0.0
    %2186 = vadd.xlane.f32.xlu0 %v2185
    %v2187 = vpop.xlane.xlu0 %2186
    %v2188 = vsel %vm78, %v2178, 0.0
    %2189 = vadd.xlane.f32.xlu0 %v2188
    %v2190 = vpop.xlane.xlu0 %2189
    %v2191 = vrcp.pop 32.0
    %v2192 = vmul.f32 %v2181, %v2191
    %v2193 = vmul.f32 %v2184, %v2191
    %v2194 = vmul.f32 %v2187, %v2191
    %v2195 = vmul.f32 %v2190, %v2191
    %v2196 = vsub.f32 %v2175, %v2192
    %v2197 = vsub.f32 %v2176, %v2193
    %v2198 = vsub.f32 %v2177, %v2194
    %v2199 = vsub.f32 %v2178, %v2195
    %v2200 = vmul.f32 %v2196, %v2196
    %v2201 = vmul.f32 %v2197, %v2197
    %v2202 = vmul.f32 %v2198, %v2198
    %v2203 = vmul.f32 %v2199, %v2199
    %v2204 = vsel %vm78, %v2200, 0.0
    %2205 = vadd.xlane.f32.xlu0 %v2204
    %v2206 = vpop.xlane.xlu0 %2205
    %v2207 = vsel %vm78, %v2201, 0.0
    %2208 = vadd.xlane.f32.xlu0 %v2207
    %v2209 = vpop.xlane.xlu0 %2208
    %v2210 = vsel %vm78, %v2202, 0.0
    %2211 = vadd.xlane.f32.xlu0 %v2210
    %v2212 = vpop.xlane.xlu0 %2211
    %v2213 = vsel %vm78, %v2203, 0.0
    %2214 = vadd.xlane.f32.xlu0 %v2213
    %v2215 = vpop.xlane.xlu0 %2214
    %v2216 = vmul.f32 %v2206, %v2191
    %v2217 = vmul.f32 %v2209, %v2191
    %v2218 = vmul.f32 %v2212, %v2191
    %v2219 = vmul.f32 %v2215, %v2191
    %v2220 = vadd.f32 %v2216, 1e-05
    %v2221 = vadd.f32 %v2217, 1e-05
    %v2222 = vadd.f32 %v2218, 1e-05
    %v2223 = vadd.f32 %v2219, 1e-05
    %v2224 = vrsqrt.pop %v2220
    %v2225 = vrsqrt.pop %v2221
    %v2226 = vrsqrt.pop %v2222
    %v2227 = vrsqrt.pop %v2223
    %v2228 = vmul.f32 %v2196, %v2224
    %v2229 = vmul.f32 %v2197, %v2225
    %v2230 = vmul.f32 %v2198, %v2226
    %v2231 = vmul.f32 %v2199, %v2227
    %v2232 = vlaneseq
    %v2233 = vshrl.u32 %v2232, 7
    %v2234 = vsub.s32 1, %v2233
    %v2235 = vrot.slane %v44, %v2234
    %v2236 = vmul.f32 %v2228, %v2235
    %v2237 = vmul.f32 %v2229, %v2235
    %v2238 = vmul.f32 %v2230, %v2235
    %v2239 = vmul.f32 %v2231, %v2235
    %v2240 = vlaneseq
    %v2241 = vshrl.u32 %v2240, 7
    %v2242 = vsub.s32 2, %v2241
    %v2243 = vrot.slane %v44, %v2242
    %v2244 = vadd.f32 %v2236, %v2243
    %v2245 = vadd.f32 %v2237, %v2243
    %v2246 = vadd.f32 %v2238, %v2243
    %v2247 = vadd.f32 %v2239, %v2243
    %v2248 = vpack.c.bf16 %v2245, %v2244
    %v2249 = vpack.c.bf16 %v2247, %v2246
    %v2250 = vld [vmem:[%s6] sm:$0xf]
    %v2251 = vld [vmem:[%s6 + $0x4] sm:$0xf]
    %v2252 = vld [vmem:[%s6 + $0x8] sm:$0xf]
    %v2253 = vld [vmem:[%s6 + $0xc] sm:$0xf]
    %v2254 = vld [vmem:[%s7] sm:$0x1]
    %v2256 = vlaneseq
    %v2257 = vshrl.u32 %v2256, 7
    %v2258 = vsub.s32 0, %v2257
    %v2259 = vrot.slane %v2254, %v2258
    %v2265 = vunpack.c.l.b16 %v2250
    %v2266 = vunpack.c.l.b16 %v2251
    %v2267 = vunpack.c.l.b16 %v2252
    %v2268 = vunpack.c.l.b16 %v2253
    %v2269 = vpack.c.b16 %v2266, %v2265
    %v2270 = vpack.c.b16 %v2268, %v2267
    %v2274 = vsel %vm78, %v2248, 0
    %v2277 = vsel %vm78, %v2249, 0
    %2279 = vmatprep.subr.bf16.mxu0 0
    %2280 = vmatpush1.bf16.msra.mxu0 %v2269
    %2281 = vmatprep.subr.bf16.mxu0 0
    %2282 = vmatpush1.bf16.msra.mxu0 %v2270
    %2283 = vmatprep.subr.bf16.mxu0 0
    %2284 = vmatpush1.bf16.msra.mxu0 0
    %2285 = vmatprep.subr.bf16.mxu0 0
    %2286 = vmatpush1.bf16.msra.mxu0 0
    %2287 = vmatprep.subr.bf16.mxu0 0
    %2288 = vmatpush1.bf16.msra.mxu0 0
    %2289 = vmatprep.subr.bf16.mxu0 0
    %2290 = vmatpush1.bf16.msra.mxu0 0
    %2291 = vmatprep.subr.bf16.mxu0 0
    %2292 = vmatpush1.bf16.msra.mxu0 0
    %2293 = vmatprep.subr.bf16.mxu0 0
    %2294 = vmatpush1.bf16.msra.mxu0 0
    %2295 = vmatprep.subr.bf16.mxu0 0
    %2296 = vmatpush1.bf16.msra.mxu0 0
    %2297 = vmatprep.subr.bf16.mxu0 0
    %2298 = vmatpush1.bf16.msra.mxu0 0
    %2299 = vmatprep.subr.bf16.mxu0 0
    %2300 = vmatpush1.bf16.msra.mxu0 0
    %2301 = vmatprep.subr.bf16.mxu0 0
    %2302 = vmatpush1.bf16.msra.mxu0 0
    %2303 = vmatprep.subr.bf16.mxu0 0
    %2304 = vmatpush1.bf16.msra.mxu0 0
    %2305 = vmatprep.subr.bf16.mxu0 0
    %2306 = vmatpush1.bf16.msra.mxu0 0
    %2307 = vmatprep.subr.bf16.mxu0 0
    %2308 = vmatpush1.bf16.msra.mxu0 0
    %2309 = vmatprep.subr.bf16.mxu0 0
    %2310 = vmatpush1.bf16.msra.mxu0 0
    %2311 = vmatprep.mubr.bf16.mxu0 0
    %2312 = vmatmul.mubr.bf16.gmra.mrb[0].mxu0 %v2274
    %v2313 = vpop.f32.mrb[0].mxu0
    %v2314 = vadd.f32 %v2259, %v2313
    %v2315 = vpop.f32.mrb[0].mxu0
    %v2316 = vpop.f32.mrb[0].mxu0
    %v2317 = vadd.f32 %v2259, %v2316
    %v2318 = vpop.f32.mrb[0].mxu0
    %2319 = vmatprep.mubr.bf16.mxu0 0
    %2320 = vmatmul.mubr.bf16.gmra.mrb[0].mxu0 %v2277
    %v2321 = vpop.f32.mrb[0].mxu0
    %v2322 = vadd.f32 %v2259, %v2321
    %v2323 = vpop.f32.mrb[0].mxu0
    %v2324 = vpop.f32.mrb[0].mxu0
    %v2325 = vadd.f32 %v2259, %v2324
    %v2326 = vpop.f32.mrb[0].mxu0
    %2327 = vdwg.mxu0
    %v2328 = vmax.f32 %v2314, 0.0
    %v2329 = vmax.f32 %v2317, 0.0
    %v2330 = vmax.f32 %v2322, 0.0
    %v2331 = vmax.f32 %v2325, 0.0
    %v2332 = vpack.c.bf16 %v2329, %v2328
    %v2333 = vpack.c.bf16 %v2331, %v2330
    %v2334 = vld [vmem:[%s8] sm:$0xf]
    %v2335 = vld [vmem:[%s8 + $0x4] sm:$0xf]
    %v2336 = vld [vmem:[%s8 + $0x8] sm:$0xf]
    %v2337 = vld [vmem:[%s8 + $0xc] sm:$0xf]
    %v2338 = vld [vmem:[%s8 + $0x10] sm:$0xf]
    %v2339 = vld [vmem:[%s8 + $0x14] sm:$0xf]
    %v2340 = vld [vmem:[%s8 + $0x18] sm:$0xf]
    %v2341 = vld [vmem:[%s8 + $0x1c] sm:$0xf]
    %v2342 = vlaneseq
    %v2343 = vshrl.u32 %v2342, 7
    %v2344 = vsub.s32 3, %v2343
    %v2345 = vrot.slane %v44, %v2344
    %v2354 = vunpack.c.l.b16 %v2334
    %v2355 = vunpack.c.l.b16 %v2335
    %v2356 = vunpack.c.l.b16 %v2336
    %v2357 = vunpack.c.l.b16 %v2337
    %v2358 = vunpack.c.l.b16 %v2338
    %v2359 = vunpack.c.l.b16 %v2339
    %v2360 = vunpack.c.l.b16 %v2340
    %v2361 = vunpack.c.l.b16 %v2341
    %v2362 = vpack.c.b16 %v2355, %v2354
    %v2363 = vpack.c.b16 %v2357, %v2356
    %v2364 = vpack.c.b16 %v2359, %v2358
    %v2365 = vpack.c.b16 %v2361, %v2360
    %vm2370 = vcmask 523264
    %v2372 = vsel %vm2370, %v2332, 0
    %v2375 = vsel %vm2370, %v2333, 0
    %2377 = vmatprep.subr.bf16.mxu0 0
    %2378 = vmatpush1.bf16.msra.mxu0 %v2362
    %2379 = vmatprep.subr.bf16.mxu0 0
    %2380 = vmatpush1.bf16.msra.mxu0 %v2363
    %2381 = vmatprep.subr.bf16.mxu0 0
    %2382 = vmatpush1.bf16.msra.mxu0 %v2364
    %2383 = vmatprep.subr.bf16.mxu0 0
    %2384 = vmatpush1.bf16.msra.mxu0 %v2365
    %2385 = vmatprep.subr.bf16.mxu0 0
    %2386 = vmatpush1.bf16.msra.mxu0 0
    %2387 = vmatprep.subr.bf16.mxu0 0
    %2388 = vmatpush1.bf16.msra.mxu0 0
    %2389 = vmatprep.subr.bf16.mxu0 0
    %2390 = vmatpush1.bf16.msra.mxu0 0
    %2391 = vmatprep.subr.bf16.mxu0 0
    %2392 = vmatpush1.bf16.msra.mxu0 0
    %2393 = vmatprep.subr.bf16.mxu0 0
    %2394 = vmatpush1.bf16.msra.mxu0 0
    %2395 = vmatprep.subr.bf16.mxu0 0
    %2396 = vmatpush1.bf16.msra.mxu0 0
    %2397 = vmatprep.subr.bf16.mxu0 0
    %2398 = vmatpush1.bf16.msra.mxu0 0
    %2399 = vmatprep.subr.bf16.mxu0 0
    %2400 = vmatpush1.bf16.msra.mxu0 0
    %2401 = vmatprep.subr.bf16.mxu0 0
    %2402 = vmatpush1.bf16.msra.mxu0 0
    %2403 = vmatprep.subr.bf16.mxu0 0
    %2404 = vmatpush1.bf16.msra.mxu0 0
    %2405 = vmatprep.subr.bf16.mxu0 0
    %2406 = vmatpush1.bf16.msra.mxu0 0
    %2407 = vmatprep.subr.bf16.mxu0 0
    %2408 = vmatpush1.bf16.msra.mxu0 0
    %2409 = vmatprep.mubr.bf16.mxu0 0
    %2410 = vmatmul.mubr.bf16.gmra.mrb[0].mxu0 %v2372
    %v2411 = vpop.f32.mrb[0].mxu0
    %v2412 = vadd.f32 %v2345, %v2411
    %v2413 = vpop.f32.mrb[0].mxu0
    %v2414 = vpop.f32.mrb[0].mxu0
    %v2415 = vadd.f32 %v2345, %v2414
    %v2416 = vpop.f32.mrb[0].mxu0
    %2417 = vmatprep.mubr.bf16.mxu0 0
    %2418 = vmatmul.mubr.bf16.gmra.mrb[0].mxu0 %v2375
    %v2419 = vpop.f32.mrb[0].mxu0
    %v2420 = vadd.f32 %v2345, %v2419
    %v2421 = vpop.f32.mrb[0].mxu0
    %v2422 = vpop.f32.mrb[0].mxu0
    %v2423 = vadd.f32 %v2345, %v2422
    %v2424 = vpop.f32.mrb[0].mxu0
    %2425 = vdwg.mxu0
    %v2430 = vrot.slane %v2412, 7
    %v2431 = vrot.slane %v2415, 7
    %v2432 = vrot.slane %v2420, 7
    %v2433 = vrot.slane %v2423, 7
    %vm2438 = vcmask 1040384
    %v2439 = vsel %vm2438, 0.0, %v2430
    %v2440 = vsel %vm2438, 0.0, %v2431
    %v2441 = vsel %vm2438, 0.0, %v2432
    %v2442 = vsel %vm2438, 0.0, %v2433
    %v2443 = vrot.slane %v2412, 1
    %v2444 = vrot.slane %v2415, 1
    %v2445 = vrot.slane %v2420, 1
    %v2446 = vrot.slane %v2423, 1
    %vm2451 = vcmask 1046528
    %v2452 = vsel %vm2451, %v2443, 0.0
    %v2453 = vsel %vm2451, %v2444, 0.0
    %v2454 = vsel %vm2451, %v2445, 0.0
    %v2455 = vsel %vm2451, %v2446, 0.0
    %2456 = vrot.lane.b32.xlu0 %v2412, 32
    %v2457 = vpop.permute.xlu0 %2456
    %2458 = vrot.lane.b32.xlu0 %v2415, 32
    %v2459 = vpop.permute.xlu0 %2458
    %2460 = vrot.lane.b32.xlu0 %v2420, 32
    %v2461 = vpop.permute.xlu0 %2460
    %2462 = vrot.lane.b32.xlu0 %v2423, 32
    %v2463 = vpop.permute.xlu0 %2462
    %2472 = vrot.lane.b32.xlu0 %v2452, 64
    %v2473 = vpop.permute.xlu0 %2472
    %2474 = vrot.lane.b32.xlu0 %v2453, 64
    %v2475 = vpop.permute.xlu0 %2474
    %2476 = vrot.lane.b32.xlu0 %v2454, 64
    %v2477 = vpop.permute.xlu0 %2476
    %2478 = vrot.lane.b32.xlu0 %v2455, 64
    %v2479 = vpop.permute.xlu0 %2478
    %v2484 = vsel %vm78, %v2439, %v2457
    %v2485 = vsel %vm78, %v2440, %v2459
    %v2486 = vsel %vm78, %v2441, %v2461
    %v2487 = vsel %vm78, %v2442, %v2463
    %v2488 = vsel %vm2370, %v2484, %v2473
    %v2489 = vsel %vm2370, %v2485, %v2475
    %v2490 = vsel %vm2370, %v2486, %v2477
    %v2491 = vsel %vm2370, %v2487, %v2479
    %v2492 = vpack.c.bf16 %v2489, %v2488
    %v2493 = vpack.c.bf16 %v2491, %v2490
    %v2494 = vld [vmem:[%s5] sm:$0xf]
    %v2495 = vld [vmem:[%s5 + $0x4] sm:$0xf]
    %v2496 = vld [vmem:[%s5 + $0x8] sm:$0xf]
    %v2497 = vld [vmem:[%s5 + $0xc] sm:$0xf]
    %v2498 = vld [vmem:[%s5 + $0x10] sm:$0xf]
    %v2499 = vld [vmem:[%s5 + $0x14] sm:$0xf]
    %v2500 = vld [vmem:[%s5 + $0x18] sm:$0xf]
    %v2501 = vld [vmem:[%s5 + $0x1c] sm:$0xf]
    %v2502 = vld [vmem:[%s5 + $0x20] sm:$0xf]
    %v2503 = vld [vmem:[%s5 + $0x24] sm:$0xf]
    %v2504 = vld [vmem:[%s5 + $0x28] sm:$0xf]
    %v2505 = vld [vmem:[%s5 + $0x2c] sm:$0xf]
    %v2506 = vlaneseq
    %v2507 = vshrl.u32 %v2506, 7
    %v2508 = vsub.s32 4, %v2507
    %v2509 = vrot.slane %v44, %v2508
    %v2522 = vunpack.c.l.b16 %v2494
    %v2523 = vunpack.c.l.b16 %v2495
    %v2524 = vunpack.c.l.b16 %v2496
    %v2525 = vunpack.c.l.b16 %v2497
    %v2526 = vunpack.c.l.b16 %v2498
    %v2527 = vunpack.c.l.b16 %v2499
    %v2528 = vunpack.c.l.b16 %v2500
    %v2529 = vunpack.c.l.b16 %v2501
    %v2530 = vunpack.c.l.b16 %v2502
    %v2531 = vunpack.c.l.b16 %v2503
    %v2532 = vunpack.c.l.b16 %v2504
    %v2533 = vunpack.c.l.b16 %v2505
    %v2534 = vpack.c.b16 %v2523, %v2522
    %v2535 = vpack.c.b16 %v2525, %v2524
    %v2536 = vpack.c.b16 %v2527, %v2526
    %v2537 = vpack.c.b16 %v2529, %v2528
    %v2538 = vpack.c.b16 %v2531, %v2530
    %v2539 = vpack.c.b16 %v2533, %v2532
    %vm2546 = vcmask 785408
    %v2548 = vsel %vm2546, %v2492, 0
    %v2551 = vsel %vm2546, %v2493, 0
    %2553 = vmatprep.subr.bf16.mxu0 0
    %2554 = vmatpush1.bf16.msra.mxu0 %v2534
    %2555 = vmatprep.subr.bf16.mxu0 0
    %2556 = vmatpush1.bf16.msra.mxu0 %v2535
    %2557 = vmatprep.subr.bf16.mxu0 0
    %2558 = vmatpush1.bf16.msra.mxu0 %v2536
    %2559 = vmatprep.subr.bf16.mxu0 0
    %2560 = vmatpush1.bf16.msra.mxu0 %v2537
    %2561 = vmatprep.subr.bf16.mxu0 0
    %2562 = vmatpush1.bf16.msra.mxu0 %v2538
    %2563 = vmatprep.subr.bf16.mxu0 0
    %2564 = vmatpush1.bf16.msra.mxu0 %v2539
    %2565 = vmatprep.subr.bf16.mxu0 0
    %2566 = vmatpush1.bf16.msra.mxu0 0
    %2567 = vmatprep.subr.bf16.mxu0 0
    %2568 = vmatpush1.bf16.msra.mxu0 0
    %2569 = vmatprep.subr.bf16.mxu0 0
    %2570 = vmatpush1.bf16.msra.mxu0 0
    %2571 = vmatprep.subr.bf16.mxu0 0
    %2572 = vmatpush1.bf16.msra.mxu0 0
    %2573 = vmatprep.subr.bf16.mxu0 0
    %2574 = vmatpush1.bf16.msra.mxu0 0
    %2575 = vmatprep.subr.bf16.mxu0 0
    %2576 = vmatpush1.bf16.msra.mxu0 0
    %2577 = vmatprep.subr.bf16.mxu0 0
    %2578 = vmatpush1.bf16.msra.mxu0 0
    %2579 = vmatprep.subr.bf16.mxu0 0
    %2580 = vmatpush1.bf16.msra.mxu0 0
    %2581 = vmatprep.subr.bf16.mxu0 0
    %2582 = vmatpush1.bf16.msra.mxu0 0
    %2583 = vmatprep.subr.bf16.mxu0 0
    %2584 = vmatpush1.bf16.msra.mxu0 0
    %2585 = vmatprep.mubr.bf16.mxu0 0
    %2586 = vmatmul.mubr.bf16.gmra.mrb[0].mxu0 %v2548
    %v2587 = vpop.f32.mrb[0].mxu0
    %v2588 = vadd.f32 %v2509, %v2587
    %v2589 = vpop.f32.mrb[0].mxu0
    %v2590 = vpop.f32.mrb[0].mxu0
    %v2591 = vadd.f32 %v2509, %v2590
    %v2592 = vpop.f32.mrb[0].mxu0
    %2593 = vmatprep.mubr.bf16.mxu0 0
    %2594 = vmatmul.mubr.bf16.gmra.mrb[0].mxu0 %v2551
    %v2595 = vpop.f32.mrb[0].mxu0
    %v2596 = vadd.f32 %v2509, %v2595
    %v2597 = vpop.f32.mrb[0].mxu0
    %v2598 = vpop.f32.mrb[0].mxu0
    %v2599 = vadd.f32 %v2509, %v2598
    %v2600 = vpop.f32.mrb[0].mxu0
    %2601 = vdwg.mxu0
    %v2602 = vmax.f32 %v2588, 0.0
    %v2603 = vmax.f32 %v2591, 0.0
    %v2604 = vmax.f32 %v2596, 0.0
    %v2605 = vmax.f32 %v2599, 0.0
    %v2606 = vpack.c.bf16 %v2603, %v2602
    %v2607 = vpack.c.bf16 %v2605, %v2604
    %s2608 = scalar_lea.vmem %s4, 16
    %v2609 = vld [vmem:[%s2608] sm:$0xf]
    %v2610 = vld [vmem:[%s2608 + $0x4] sm:$0xf]
    %v2611 = vld [vmem:[%s2608 + $0x8] sm:$0xf]
    %v2612 = vld [vmem:[%s2608 + $0xc] sm:$0xf]
    %v2613 = vlaneseq
    %v2614 = vshrl.u32 %v2613, 7
    %v2615 = vsub.s32 5, %v2614
    %v2616 = vrot.slane %v44, %v2615
    %v2621 = vunpack.c.l.b16 %v2609
    %v2622 = vunpack.c.l.b16 %v2610
    %v2623 = vunpack.c.l.b16 %v2611
    %v2624 = vunpack.c.l.b16 %v2612
    %v2625 = vpack.c.b16 %v2622, %v2621
    %v2626 = vpack.c.b16 %v2624, %v2623
    %v2630 = vsel %vm78, %v2606, 0
    %v2633 = vsel %vm78, %v2607, 0
    %2635 = vmatprep.subr.bf16.mxu0 0
    %2636 = vmatpush1.bf16.msra.mxu0 %v2625
    %2637 = vmatprep.subr.bf16.mxu0 0
    %2638 = vmatpush1.bf16.msra.mxu0 %v2626
    %2639 = vmatprep.subr.bf16.mxu0 0
    %2640 = vmatpush1.bf16.msra.mxu0 0
    %2641 = vmatprep.subr.bf16.mxu0 0
    %2642 = vmatpush1.bf16.msra.mxu0 0
    %2643 = vmatprep.subr.bf16.mxu0 0
    %2644 = vmatpush1.bf16.msra.mxu0 0
    %2645 = vmatprep.subr.bf16.mxu0 0
    %2646 = vmatpush1.bf16.msra.mxu0 0
    %2647 = vmatprep.subr.bf16.mxu0 0
    %2648 = vmatpush1.bf16.msra.mxu0 0
    %2649 = vmatprep.subr.bf16.mxu0 0
    %2650 = vmatpush1.bf16.msra.mxu0 0
    %2651 = vmatprep.subr.bf16.mxu0 0
    %2652 = vmatpush1.bf16.msra.mxu0 0
    %2653 = vmatprep.subr.bf16.mxu0 0
    %2654 = vmatpush1.bf16.msra.mxu0 0
    %2655 = vmatprep.subr.bf16.mxu0 0
    %2656 = vmatpush1.bf16.msra.mxu0 0
    %2657 = vmatprep.subr.bf16.mxu0 0
    %2658 = vmatpush1.bf16.msra.mxu0 0
    %2659 = vmatprep.subr.bf16.mxu0 0
    %2660 = vmatpush1.bf16.msra.mxu0 0
    %2661 = vmatprep.subr.bf16.mxu0 0
    %2662 = vmatpush1.bf16.msra.mxu0 0
    %2663 = vmatprep.subr.bf16.mxu0 0
    %2664 = vmatpush1.bf16.msra.mxu0 0
    %2665 = vmatprep.subr.bf16.mxu0 0
    %2666 = vmatpush1.bf16.msra.mxu0 0
    %2667 = vmatprep.mubr.bf16.mxu0 0
    %2668 = vmatmul.mubr.bf16.gmra.mrb[0].mxu0 %v2630
    %v2669 = vpop.f32.mrb[0].mxu0
    %v2670 = vadd.f32 %v2616, %v2669
    %v2671 = vpop.f32.mrb[0].mxu0
    %v2672 = vpop.f32.mrb[0].mxu0
    %v2673 = vadd.f32 %v2616, %v2672
    %v2674 = vpop.f32.mrb[0].mxu0
    %2675 = vmatprep.mubr.bf16.mxu0 0
    %2676 = vmatmul.mubr.bf16.gmra.mrb[0].mxu0 %v2633
    %v2677 = vpop.f32.mrb[0].mxu0
    %v2678 = vadd.f32 %v2616, %v2677
    %v2679 = vpop.f32.mrb[0].mxu0
    %v2680 = vpop.f32.mrb[0].mxu0
    %v2681 = vadd.f32 %v2616, %v2680
    %v2682 = vpop.f32.mrb[0].mxu0
    %2683 = vdwg.mxu0
    %v2684 = vadd.f32 %v2670, %v2244
    %v2685 = vadd.f32 %v2673, %v2245
    %v2686 = vadd.f32 %v2678, %v2246
    %v2687 = vadd.f32 %v2681, %v2247
    %v2688 = vsel %vm78, %v2684, 0.0
    %2689 = vadd.xlane.f32.xlu0 %v2688
    %v2690 = vpop.xlane.xlu0 %2689
    %v2691 = vsel %vm78, %v2685, 0.0
    %2692 = vadd.xlane.f32.xlu0 %v2691
    %v2693 = vpop.xlane.xlu0 %2692
    %v2694 = vsel %vm78, %v2686, 0.0
    %2695 = vadd.xlane.f32.xlu0 %v2694
    %v2696 = vpop.xlane.xlu0 %2695
    %v2697 = vsel %vm78, %v2687, 0.0
    %2698 = vadd.xlane.f32.xlu0 %v2697
    %v2699 = vpop.xlane.xlu0 %2698
    %v2700 = vmul.f32 %v2690, %v2191
    %v2701 = vmul.f32 %v2693, %v2191
    %v2702 = vmul.f32 %v2696, %v2191
    %v2703 = vmul.f32 %v2699, %v2191
    %v2704 = vsub.f32 %v2684, %v2700
    %v2705 = vsub.f32 %v2685, %v2701
    %v2706 = vsub.f32 %v2686, %v2702
    %v2707 = vsub.f32 %v2687, %v2703
    %v2708 = vmul.f32 %v2704, %v2704
    %v2709 = vmul.f32 %v2705, %v2705
    %v2710 = vmul.f32 %v2706, %v2706
    %v2711 = vmul.f32 %v2707, %v2707
    %v2712 = vsel %vm78, %v2708, 0.0
    %2713 = vadd.xlane.f32.xlu0 %v2712
    %v2714 = vpop.xlane.xlu0 %2713
    %v2715 = vsel %vm78, %v2709, 0.0
    %2716 = vadd.xlane.f32.xlu0 %v2715
    %v2717 = vpop.xlane.xlu0 %2716
    %v2718 = vsel %vm78, %v2710, 0.0
    %2719 = vadd.xlane.f32.xlu0 %v2718
    %v2720 = vpop.xlane.xlu0 %2719
    %v2721 = vsel %vm78, %v2711, 0.0
    %2722 = vadd.xlane.f32.xlu0 %v2721
    %v2723 = vpop.xlane.xlu0 %2722
    %v2724 = vmul.f32 %v2714, %v2191
    %v2725 = vmul.f32 %v2717, %v2191
    %v2726 = vmul.f32 %v2720, %v2191
    %v2727 = vmul.f32 %v2723, %v2191
    %v2728 = vadd.f32 %v2724, 1e-05
    %v2729 = vadd.f32 %v2725, 1e-05
    %v2730 = vadd.f32 %v2726, 1e-05
    %v2731 = vadd.f32 %v2727, 1e-05
    %v2732 = vrsqrt.pop %v2728
    %v2733 = vrsqrt.pop %v2729
    %v2734 = vrsqrt.pop %v2730
    %v2735 = vrsqrt.pop %v2731
    %v2736 = vmul.f32 %v2704, %v2732
    %v2737 = vmul.f32 %v2705, %v2733
    %v2738 = vmul.f32 %v2706, %v2734
    %v2739 = vmul.f32 %v2707, %v2735
    %v2740 = vlaneseq
    %v2741 = vshrl.u32 %v2740, 7
    %v2742 = vsub.s32 6, %v2741
    %v2743 = vrot.slane %v44, %v2742
    %v2744 = vmul.f32 %v2736, %v2743
    %v2745 = vmul.f32 %v2737, %v2743
    %v2746 = vmul.f32 %v2738, %v2743
    %v2747 = vmul.f32 %v2739, %v2743
    %v2748 = vlaneseq
    %v2749 = vshrl.u32 %v2748, 7
    %v2750 = vsub.s32 7, %v2749
    %v2751 = vrot.slane %v44, %v2750
    %v2752 = vadd.f32 %v2744, %v2751
    %v2753 = vadd.f32 %v2745, %v2751
    %v2754 = vadd.f32 %v2746, %v2751
    %v2755 = vadd.f32 %v2747, %v2751
    %2756 = vst.msk [vmem:[#allocation2] sm:$0xff] %vm78, %v2752
    %2757 = vst.msk [vmem:[#allocation2 + $0x8] sm:$0xff] %vm78, %v2753
    %2758 = vst.msk [vmem:[#allocation2 + $0x10] sm:$0xff] %vm78, %v2754
    %2759 = vst.msk [vmem:[#allocation2 + $0x18] sm:$0xff] %vm78, %v2755
    // Predicated region
    $region42: #{tpu_custom_call.1} parent=1 // pred_check
      _
    $region43: #{tpu_custom_call.1} parent=1 // pred_check_branch
      %2761 = sbr.rel (0) target = $region45
    $region44: #{tpu_custom_call.1} parent=1 // pred_region
      %s2763 = ssub.s32 512, 512
      %2764 = vsyncadd [#allocation3], %s2763
      %s2765 = sshll.u32 [#allocation2], 4
      %s2766 = int_to_ptr.vmem [resolvable:$true] %s2765
      %2771 = dma.vmem_to_hbm [thread:$0]  %s2766, 512, %s10, [#allocation3], 128, 128, 8
    $region45: #{tpu_custom_call.1} parent=1 // pred_fallthru
      _
    // Predicated region
    $region46: #{tpu_custom_call.1} parent=1 // pred_check
      _
    $region47: #{tpu_custom_call.1} parent=1 // pred_check_branch
      %2773 = sbr.rel (0) target = $region49
    $region48: #{tpu_custom_call.1} parent=1 // pred_region
      %s2775 = ssub.s32 512, 512
      %2776 = vsyncadd [#allocation5], %s2775
      %s2777 = sshll.u32 [#allocation4], 4
      %s2778 = int_to_ptr.vmem [resolvable:$true] %s2777
      %2783 = dma.vmem_to_hbm [thread:$0]  %s2778, 512, %s11, [#allocation5], 128, 128, 8
    $region49: #{tpu_custom_call.1} parent=1 // pred_fallthru
      _
    // Predicated region
    $region50: #{tpu_custom_call.1} parent=1 // pred_check
      _
    $region51: #{tpu_custom_call.1} parent=1 // pred_check_branch
      %2785 = sbr.rel (0) target = $region53
    $region52: #{tpu_custom_call.1} parent=1 // pred_region
      %2786 = dma.done [#allocation3], 512
    $region53: #{tpu_custom_call.1} parent=1 // pred_fallthru
      _
    // Predicated region
    $region54: #{tpu_custom_call.1} parent=1 // pred_check
      _
    $region55: #{tpu_custom_call.1} parent=1 // pred_check_branch
      %2788 = sbr.rel (0) target = $region57
    $region56: #{tpu_custom_call.1} parent=1 // pred_region
      %2789 = dma.done [#allocation5], 512
    $region57: #{tpu_custom_call.1} parent=1 // pred_fallthru
      _
    %2790 = vsyncpa [#allocation3], 1
    %2791 = vsyncpa [#allocation5], 1

</llo_original>
